<compile_context>
chip_gen: v7x
topology: tpu7x:2x2x1
jax: 0.10.0
libtpu: 0.0.40
codegen_flags: <defaults>
</compile_context>

<pallas_src>
import functools

import jax
import jax.numpy as jnp
from jax.experimental import pallas as pl
from jax.experimental.pallas import tpu as pltpu


def _round_up(n, m):
    return ((n + m - 1) // m) * m


def _device_kind():
    try:
        return jax.devices()[0].device_kind.lower()
    except Exception:
        return ""


# Flipped to False (once) if the dense-store relayout fails to lower on this Mosaic build.
_DENSE_OUTPUT_OK = True


def mlp_kernel(x_ref,
               w1_ref, b1_ref,
               w2_ref, b2_ref,
               w3_ref, b3_ref,
               w4_ref, b4_ref,
               w5_ref, b5_ref,
               o_ref, *, bf16_epilogue):
    """Whole forward pass fused in one kernel (weights + intermediates are VMEM-resident)."""
    wide = ((w1_ref, b1_ref), (w2_ref, b2_ref), (w3_ref, b3_ref), (w4_ref, b4_ref))

    if bf16_epilogue:
        # v6e/v7x: bf16-native VPU -> bias add + ReLU in bf16; MXU accumulates in f32.
        h = x_ref[...].astype(jnp.bfloat16)
        for w_ref, b_ref in wide:
            acc = jnp.dot(h, w_ref[...], preferred_element_type=jnp.float32)
            h = jnp.maximum(acc.astype(jnp.bfloat16) + b_ref[...], 0.0)
        h = h.astype(jnp.float32)
    else:
        # v5e and older (no bf16 VPU): keep the elementwise epilogue in f32; the MXU is
        # still fed in bf16 with f32 accumulation.
        h = x_ref[...]
        for w_ref, b_ref in wide:
            acc = jnp.dot(h.astype(jnp.bfloat16), w_ref[...],
                          preferred_element_type=jnp.float32)
            h = jnp.maximum(acc + b_ref[...], 0.0)

    # fc5 (32 -> 1): VPU broadcast-multiply + lane (XLU) reduction; avoids an N=1 MXU pass.
    out = jnp.sum(h * w5_ref[...], axis=-1, keepdims=True) + b5_ref[...]  # (tb, 1) f32

    if len(o_ref.shape) == 3:
        # Lane-dense output tile: one relayout of the column into (tb//128, 128), then
        # unmasked vector stores + a dense HBM writeback DMA.
        o_ref[0] = out.reshape(o_ref.shape[1:]).astype(o_ref.dtype)
    else:
        # Fallback layout: plain (tb, 1) column store.
        o_ref[...] = out.astype(o_ref.dtype)


def simple_model_forward(x, params, *, tile_b=2048):
    """x: (B, input_node) float32. params: list of 5 tuples (W(in,out) f32, b(1,out) f32)."""
    global _DENSE_OUTPUT_OK
    B, D = x.shape

    kind = _device_kind()
    # bf16 elementwise epilogue only on bf16-native VPUs (v6e / v7x and newer).
    bf16_epilogue = bool(kind) and not any(t in kind for t in ("v2", "v3", "v4", "v5"))
    # v7x has 2 TensorCores per chip; only the "parallel" batch grid axis shards across them.
    dual_core = ("v7" in kind) or ("7x" in kind)

    # --- batch tile selection --------------------------------------------------------
    # tb is a multiple of 128 so the output tile can be stored lane-dense as (tb//128, 128).
    b128 = _round_up(B, 128)
    tb = min(_round_up(max(int(tile_b), 128), 128), b128)
    if dual_core and b128 >= 256:
        # Guarantee >= 2 grid steps on dual-core chips so both TCs get work.
        tb = min(tb, _round_up(b128 // 2, 128))
    Bp = _round_up(B, tb)
    if Bp != B:
        x = jnp.pad(x, ((0, Bp - B), (0, 0)))
    nb = Bp // tb

    (w1, b1), (w2, b2), (w3, b3), (w4, b4), (w5, b5) = params
    # Wide layers feed the MXU in bf16 (cast once here; f32 accumulation in-kernel).
    w1, w2, w3, w4 = (w.astype(jnp.bfloat16) for w in (w1, w2, w3, w4))
    if bf16_epilogue:
        b1, b2, b3, b4 = (b.astype(jnp.bfloat16) for b in (b1, b2, b3, b4))
    # fc5 runs on the VPU as broadcast-multiply + lane reduce: keep f32, row layout (1, 32).
    w5_row = w5.T.astype(jnp.float32)
    flat_params = [w1, b1, w2, b2, w3, b3, w4, b4, w5_row, b5]

    # Parameters are identical for every grid step: keep them VMEM-resident, untiled and
    # un-pipelined (no per-step double-buffering / DMA descriptors).
    param_specs = [pl.BlockSpec(memory_space=pltpu.MemorySpace.VMEM) for _ in flat_params]
    in_specs = [pl.BlockSpec((tb, D), lambda i: (i, 0))] + param_specs
    kernel = functools.partial(mlp_kernel, bf16_epilogue=bf16_epilogue)

    def make_call(dense):
        if dense:
            out_specs = pl.BlockSpec((1, tb // 128, 128), lambda i: (i, 0, 0))
            out_shape = jax.ShapeDtypeStruct((nb, tb // 128, 128), jnp.float32)
        else:
            out_specs = pl.BlockSpec((tb, 1), lambda i: (i, 0))
            out_shape = jax.ShapeDtypeStruct((Bp, 1), jnp.float32)
        return pl.pallas_call(
            kernel,
            out_shape=out_shape,
            grid_spec=pltpu.PrefetchScalarGridSpec(
                num_scalar_prefetch=0,
                grid=(nb,),
                in_specs=in_specs,
                out_specs=out_specs,
            ),
            compiler_params=pltpu.CompilerParams(
                # Batch tiles are independent -> megacore sharding on v7x when grid >= 2.
                dimension_semantics=("parallel",),
                # Covers the larger tile on v5e (16 MiB default); == default on v6e/v7x.
                vmem_limit_bytes=32 * 1024 * 1024,
            ),
        )

    out = None
    if _DENSE_OUTPUT_OK:
        try:
            out = make_call(dense=True)(x, *flat_params).reshape(Bp, 1)
        except Exception:
            # The column->dense relayout did not lower on this Mosaic build; fall back to
            # the known-good lane-sparse (tb, 1) output layout.
            _DENSE_OUTPUT_OK = False
    if out is None:
        out = make_call(dense=False)(x, *flat_params)
    return out[:B]


def init_params(key, input_node):
    """Deterministic init mimicking nn.Linear shapes; W stored as (in, out), b as (1, out)."""
    dims = [input_node, 256, 128, 64, 32, 1]
    params = []
    for i in range(5):
        fan_in, fan_out = dims[i], dims[i + 1]
        key, kw, kb = jax.random.split(key, 3)
        bound = 1.0 / jnp.sqrt(fan_in)
        w = jax.random.uniform(kw, (fan_in, fan_out), jnp.float32, -bound, bound)
        b = jax.random.uniform(kb, (1, fan_out), jnp.float32, -bound, bound)
        params.append((w, b))
    return params


def reference_forward(x, params):
    h = x
    for i, (w, b) in enumerate(params):
        h = h @ w + b
        if i < 4:
            h = jnp.maximum(h, 0.0)
    return h


if __name__ == "__main__":
    key = jax.random.PRNGKey(0)
    input_node = 32

    params = init_params(key, input_node)

    # Case 1: batch not a multiple of the tile -> exercises padding (+ a 2-step grid on v7x).
    key, kx = jax.random.split(key)
    x_big = jax.random.normal(kx, (500, input_node), jnp.float32)
    out_big = jax.block_until_ready(simple_model_forward(x_big, params))
    ref_big = reference_forward(x_big, params)
    assert out_big.shape == (500, 1)
    assert jnp.allclose(out_big, ref_big, atol=3e-2, rtol=3e-2), "mismatch vs reference (big)"

    # Case 2: tiny batch -> pads to one 128-row tile, single grid step.
    key, kx2 = jax.random.split(key)
    x_small = jax.random.normal(kx2, (8, input_node), jnp.float32)
    out_small = jax.block_until_ready(simple_model_forward(x_small, params))
    ref_small = reference_forward(x_small, params)
    assert out_small.shape == (8, 1)
    assert jnp.allclose(out_small, ref_small, atol=3e-2, rtol=3e-2), "mismatch vs reference (small)"

    print("KERNEL_OK")
</pallas_src>

<mosaic_0001>
module attributes {stable_mosaic.version = 11 : i64} {
  func.func @mlp_kernel(%arg0: i32, %arg1: memref<512x32xf32, #tpu.memory_space<vmem>>, %arg2: memref<32x256xbf16, #tpu.memory_space<vmem>>, %arg3: memref<1x256xbf16, #tpu.memory_space<vmem>>, %arg4: memref<256x128xbf16, #tpu.memory_space<vmem>>, %arg5: memref<1x128xbf16, #tpu.memory_space<vmem>>, %arg6: memref<128x64xbf16, #tpu.memory_space<vmem>>, %arg7: memref<1x64xbf16, #tpu.memory_space<vmem>>, %arg8: memref<64x32xbf16, #tpu.memory_space<vmem>>, %arg9: memref<1x32xbf16, #tpu.memory_space<vmem>>, %arg10: memref<1x32xf32, #tpu.memory_space<vmem>>, %arg11: memref<1x1xf32, #tpu.memory_space<vmem>>, %arg12: memref<1x4x128xf32, #tpu.memory_space<vmem>>) attributes {dimension_semantics = [#tpu.dimension_semantics<parallel>], iteration_bounds = array<i64: 1>, scalar_prefetch = 0 : i64, scratch_operands = 0 : i64, tpu.core_type = #tpu.core_type<tc>, window_params = [{transform_indices = @transform_0, window_bounds = array<i64: 512, 32>}, {pipeline_mode = #tpu.pipeline_mode<synchronous>, transform_indices = @transform_1, window_bounds = array<i64: 32, 256>}, {pipeline_mode = #tpu.pipeline_mode<synchronous>, transform_indices = @transform_2, window_bounds = array<i64: 1, 256>}, {pipeline_mode = #tpu.pipeline_mode<synchronous>, transform_indices = @transform_3, window_bounds = array<i64: 256, 128>}, {pipeline_mode = #tpu.pipeline_mode<synchronous>, transform_indices = @transform_4, window_bounds = array<i64: 1, 128>}, {pipeline_mode = #tpu.pipeline_mode<synchronous>, transform_indices = @transform_5, window_bounds = array<i64: 128, 64>}, {pipeline_mode = #tpu.pipeline_mode<synchronous>, transform_indices = @transform_6, window_bounds = array<i64: 1, 64>}, {pipeline_mode = #tpu.pipeline_mode<synchronous>, transform_indices = @transform_7, window_bounds = array<i64: 64, 32>}, {pipeline_mode = #tpu.pipeline_mode<synchronous>, transform_indices = @transform_8, window_bounds = array<i64: 1, 32>}, {pipeline_mode = #tpu.pipeline_mode<synchronous>, transform_indices = @transform_9, window_bounds = array<i64: 1, 32>}, {pipeline_mode = #tpu.pipeline_mode<synchronous>, transform_indices = @transform_10, window_bounds = array<i64: 1, 1>}, {transform_indices = @transform_11, window_bounds = array<i64: 1, 4, 128>}]} {
    %c0 = arith.constant 0 : index
    %c0_0 = arith.constant 0 : index
    %0 = vector.load %arg1[%c0, %c0_0] : memref<512x32xf32, #tpu.memory_space<vmem>>, vector<512x32xf32>
    %1 = arith.truncf %0 : vector<512x32xf32> to vector<512x32xbf16>
    %c0_1 = arith.constant 0 : index
    %c0_2 = arith.constant 0 : index
    %2 = vector.load %arg2[%c0_1, %c0_2] : memref<32x256xbf16, #tpu.memory_space<vmem>>, vector<32x256xbf16>
    %cst = arith.constant dense<0.000000e+00> : vector<512x256xf32>
    %3 = tpu.matmul %1, %2, %cst {dimension_numbers = #tpu.dot_dimension_numbers<[1], [0], [0], [1], [0, 0, 1, 1], [], []>} : vector<512x32xbf16>, vector<32x256xbf16>, vector<512x256xf32> -> vector<512x256xf32>
    %4 = arith.truncf %3 : vector<512x256xf32> to vector<512x256xbf16>
    %c0_3 = arith.constant 0 : index
    %c0_4 = arith.constant 0 : index
    %5 = vector.load %arg3[%c0_3, %c0_4] : memref<1x256xbf16, #tpu.memory_space<vmem>>, vector<1x256xbf16>
    %6 = vector.broadcast %5 : vector<1x256xbf16> to vector<512x256xbf16>
    %7 = arith.addf %4, %6 : vector<512x256xbf16>
    %cst_5 = arith.constant 0.000000e+00 : bf16
    %8 = vector.broadcast %cst_5 : bf16 to vector<512x256xbf16>
    %9 = arith.maximumf %7, %8 : vector<512x256xbf16>
    %c0_6 = arith.constant 0 : index
    %c0_7 = arith.constant 0 : index
    %10 = vector.load %arg4[%c0_6, %c0_7] : memref<256x128xbf16, #tpu.memory_space<vmem>>, vector<256x128xbf16>
    %cst_8 = arith.constant dense<0.000000e+00> : vector<512x128xf32>
    %11 = tpu.matmul %9, %10, %cst_8 {dimension_numbers = #tpu.dot_dimension_numbers<[1], [0], [0], [1], [0, 0, 1, 1], [], []>} : vector<512x256xbf16>, vector<256x128xbf16>, vector<512x128xf32> -> vector<512x128xf32>
    %12 = arith.truncf %11 : vector<512x128xf32> to vector<512x128xbf16>
    %c0_9 = arith.constant 0 : index
    %c0_10 = arith.constant 0 : index
    %13 = vector.load %arg5[%c0_9, %c0_10] : memref<1x128xbf16, #tpu.memory_space<vmem>>, vector<1x128xbf16>
    %14 = vector.broadcast %13 : vector<1x128xbf16> to vector<512x128xbf16>
    %15 = arith.addf %12, %14 : vector<512x128xbf16>
    %cst_11 = arith.constant 0.000000e+00 : bf16
    %16 = vector.broadcast %cst_11 : bf16 to vector<512x128xbf16>
    %17 = arith.maximumf %15, %16 : vector<512x128xbf16>
    %c0_12 = arith.constant 0 : index
    %c0_13 = arith.constant 0 : index
    %18 = vector.load %arg6[%c0_12, %c0_13] : memref<128x64xbf16, #tpu.memory_space<vmem>>, vector<128x64xbf16>
    %cst_14 = arith.constant dense<0.000000e+00> : vector<512x64xf32>
    %19 = tpu.matmul %17, %18, %cst_14 {dimension_numbers = #tpu.dot_dimension_numbers<[1], [0], [0], [1], [0, 0, 1, 1], [], []>} : vector<512x128xbf16>, vector<128x64xbf16>, vector<512x64xf32> -> vector<512x64xf32>
    %20 = arith.truncf %19 : vector<512x64xf32> to vector<512x64xbf16>
    %c0_15 = arith.constant 0 : index
    %c0_16 = arith.constant 0 : index
    %21 = vector.load %arg7[%c0_15, %c0_16] : memref<1x64xbf16, #tpu.memory_space<vmem>>, vector<1x64xbf16>
    %22 = vector.broadcast %21 : vector<1x64xbf16> to vector<512x64xbf16>
    %23 = arith.addf %20, %22 : vector<512x64xbf16>
    %cst_17 = arith.constant 0.000000e+00 : bf16
    %24 = vector.broadcast %cst_17 : bf16 to vector<512x64xbf16>
    %25 = arith.maximumf %23, %24 : vector<512x64xbf16>
    %c0_18 = arith.constant 0 : index
    %c0_19 = arith.constant 0 : index
    %26 = vector.load %arg8[%c0_18, %c0_19] : memref<64x32xbf16, #tpu.memory_space<vmem>>, vector<64x32xbf16>
    %cst_20 = arith.constant dense<0.000000e+00> : vector<512x32xf32>
    %27 = tpu.matmul %25, %26, %cst_20 {dimension_numbers = #tpu.dot_dimension_numbers<[1], [0], [0], [1], [0, 0, 1, 1], [], []>} : vector<512x64xbf16>, vector<64x32xbf16>, vector<512x32xf32> -> vector<512x32xf32>
    %28 = arith.truncf %27 : vector<512x32xf32> to vector<512x32xbf16>
    %c0_21 = arith.constant 0 : index
    %c0_22 = arith.constant 0 : index
    %29 = vector.load %arg9[%c0_21, %c0_22] : memref<1x32xbf16, #tpu.memory_space<vmem>>, vector<1x32xbf16>
    %30 = vector.broadcast %29 : vector<1x32xbf16> to vector<512x32xbf16>
    %31 = arith.addf %28, %30 : vector<512x32xbf16>
    %cst_23 = arith.constant 0.000000e+00 : bf16
    %32 = vector.broadcast %cst_23 : bf16 to vector<512x32xbf16>
    %33 = arith.maximumf %31, %32 : vector<512x32xbf16>
    %34 = arith.extf %33 : vector<512x32xbf16> to vector<512x32xf32>
    %c0_24 = arith.constant 0 : index
    %c0_25 = arith.constant 0 : index
    %35 = vector.load %arg10[%c0_24, %c0_25] : memref<1x32xf32, #tpu.memory_space<vmem>>, vector<1x32xf32>
    %36 = vector.broadcast %35 : vector<1x32xf32> to vector<512x32xf32>
    %37 = arith.mulf %34, %36 : vector<512x32xf32>
    %cst_26 = arith.constant dense<0.000000e+00> : vector<512xf32>
    %38 = vector.multi_reduction <add>, %37, %cst_26 [1] : vector<512x32xf32> to vector<512xf32>
    %39 = vector.shape_cast %38 : vector<512xf32> to vector<512x1xf32>
    %c0_27 = arith.constant 0 : index
    %c0_28 = arith.constant 0 : index
    %40 = vector.load %arg11[%c0_27, %c0_28] : memref<1x1xf32, #tpu.memory_space<vmem>>, vector<1x1xf32>
    %41 = vector.broadcast %40 : vector<1x1xf32> to vector<512x1xf32>
    %42 = arith.addf %39, %41 : vector<512x1xf32>
    %43 = vector.shape_cast %42 : vector<512x1xf32> to vector<4x128xf32>
    %c0_29 = arith.constant 0 : index
    %c0_30 = arith.constant 0 : index
    %c0_31 = arith.constant 0 : index
    %44 = vector.load %arg12[%c0_29, %c0_30, %c0_31] : memref<1x4x128xf32, #tpu.memory_space<vmem>>, vector<1x4x128xf32>
    %45 = vector.shape_cast %44 : vector<1x4x128xf32> to vector<4x128xf32>
    %46 = vector.shape_cast %43 : vector<4x128xf32> to vector<1x4x128xf32>
    tpu.vector_store %arg12[%c0_29, %c0_30, %c0_31], %46 {strides = array<i32>} : memref<1x4x128xf32, #tpu.memory_space<vmem>>, vector<1x4x128xf32>,
    return
  }
  func.func @transform_0(%arg0: i32) -> (i32, i32) {
    %c0_i32 = arith.constant 0 : i32
    %c0_i32_0 = arith.constant 0 : i32
    return %arg0, %c0_i32 : i32, i32
  }
  func.func @transform_1(%arg0: i32) -> (i32, i32) {
    %c0_i32 = arith.constant 0 : i32
    %c0_i32_0 = arith.constant 0 : i32
    %c0_i32_1 = arith.constant 0 : i32
    return %c0_i32, %c0_i32_0 : i32, i32
  }
  func.func @transform_2(%arg0: i32) -> (i32, i32) {
    %c0_i32 = arith.constant 0 : i32
    %c0_i32_0 = arith.constant 0 : i32
    %c0_i32_1 = arith.constant 0 : i32
    return %c0_i32, %c0_i32_0 : i32, i32
  }
  func.func @transform_3(%arg0: i32) -> (i32, i32) {
    %c0_i32 = arith.constant 0 : i32
    %c0_i32_0 = arith.constant 0 : i32
    %c0_i32_1 = arith.constant 0 : i32
    return %c0_i32, %c0_i32_0 : i32, i32
  }
  func.func @transform_4(%arg0: i32) -> (i32, i32) {
    %c0_i32 = arith.constant 0 : i32
    %c0_i32_0 = arith.constant 0 : i32
    %c0_i32_1 = arith.constant 0 : i32
    return %c0_i32, %c0_i32_0 : i32, i32
  }
  func.func @transform_5(%arg0: i32) -> (i32, i32) {
    %c0_i32 = arith.constant 0 : i32
    %c0_i32_0 = arith.constant 0 : i32
    %c0_i32_1 = arith.constant 0 : i32
    return %c0_i32, %c0_i32_0 : i32, i32
  }
  func.func @transform_6(%arg0: i32) -> (i32, i32) {
    %c0_i32 = arith.constant 0 : i32
    %c0_i32_0 = arith.constant 0 : i32
    %c0_i32_1 = arith.constant 0 : i32
    return %c0_i32, %c0_i32_0 : i32, i32
  }
  func.func @transform_7(%arg0: i32) -> (i32, i32) {
    %c0_i32 = arith.constant 0 : i32
    %c0_i32_0 = arith.constant 0 : i32
    %c0_i32_1 = arith.constant 0 : i32
    return %c0_i32, %c0_i32_0 : i32, i32
  }
  func.func @transform_8(%arg0: i32) -> (i32, i32) {
    %c0_i32 = arith.constant 0 : i32
    %c0_i32_0 = arith.constant 0 : i32
    %c0_i32_1 = arith.constant 0 : i32
    return %c0_i32, %c0_i32_0 : i32, i32
  }
  func.func @transform_9(%arg0: i32) -> (i32, i32) {
    %c0_i32 = arith.constant 0 : i32
    %c0_i32_0 = arith.constant 0 : i32
    %c0_i32_1 = arith.constant 0 : i32
    return %c0_i32, %c0_i32_0 : i32, i32
  }
  func.func @transform_10(%arg0: i32) -> (i32, i32) {
    %c0_i32 = arith.constant 0 : i32
    %c0_i32_0 = arith.constant 0 : i32
    %c0_i32_1 = arith.constant 0 : i32
    return %c0_i32, %c0_i32_0 : i32, i32
  }
  func.func @transform_11(%arg0: i32) -> (i32, i32, i32) {
    %c0_i32 = arith.constant 0 : i32
    %c0_i32_0 = arith.constant 0 : i32
    %c0_i32_1 = arith.constant 0 : i32
    return %arg0, %c0_i32, %c0_i32_0 : i32, i32, i32
  }
}

module attributes {stable_mosaic.version = 11 : i64} {
  func.func @mlp_kernel(%arg0: i32, %arg1: memref<512x32xf32, #tpu.memory_space<vmem>>, %arg2: memref<32x256xbf16, #tpu.memory_space<vmem>>, %arg3: memref<1x256xbf16, #tpu.memory_space<vmem>>, %arg4: memref<256x128xbf16, #tpu.memory_space<vmem>>, %arg5: memref<1x128xbf16, #tpu.memory_space<vmem>>, %arg6: memref<128x64xbf16, #tpu.memory_space<vmem>>, %arg7: memref<1x64xbf16, #tpu.memory_space<vmem>>, %arg8: memref<64x32xbf16, #tpu.memory_space<vmem>>, %arg9: memref<1x32xbf16, #tpu.memory_space<vmem>>, %arg10: memref<1x32xf32, #tpu.memory_space<vmem>>, %arg11: memref<1x1xf32, #tpu.memory_space<vmem>>, %arg12: memref<512x1xf32, #tpu.memory_space<vmem>>) attributes {dimension_semantics = [#tpu.dimension_semantics<parallel>], iteration_bounds = array<i64: 1>, scalar_prefetch = 0 : i64, scratch_operands = 0 : i64, tpu.core_type = #tpu.core_type<tc>, window_params = [{transform_indices = @transform_0, window_bounds = array<i64: 512, 32>}, {pipeline_mode = #tpu.pipeline_mode<synchronous>, transform_indices = @transform_1, window_bounds = array<i64: 32, 256>}, {pipeline_mode = #tpu.pipeline_mode<synchronous>, transform_indices = @transform_2, window_bounds = array<i64: 1, 256>}, {pipeline_mode = #tpu.pipeline_mode<synchronous>, transform_indices = @transform_3, window_bounds = array<i64: 256, 128>}, {pipeline_mode = #tpu.pipeline_mode<synchronous>, transform_indices = @transform_4, window_bounds = array<i64: 1, 128>}, {pipeline_mode = #tpu.pipeline_mode<synchronous>, transform_indices = @transform_5, window_bounds = array<i64: 128, 64>}, {pipeline_mode = #tpu.pipeline_mode<synchronous>, transform_indices = @transform_6, window_bounds = array<i64: 1, 64>}, {pipeline_mode = #tpu.pipeline_mode<synchronous>, transform_indices = @transform_7, window_bounds = array<i64: 64, 32>}, {pipeline_mode = #tpu.pipeline_mode<synchronous>, transform_indices = @transform_8, window_bounds = array<i64: 1, 32>}, {pipeline_mode = #tpu.pipeline_mode<synchronous>, transform_indices = @transform_9, window_bounds = array<i64: 1, 32>}, {pipeline_mode = #tpu.pipeline_mode<synchronous>, transform_indices = @transform_10, window_bounds = array<i64: 1, 1>}, {transform_indices = @transform_11, window_bounds = array<i64: 512, 1>}]} {
    %c0 = arith.constant 0 : index
    %c0_0 = arith.constant 0 : index
    %0 = vector.load %arg1[%c0, %c0_0] : memref<512x32xf32, #tpu.memory_space<vmem>>, vector<512x32xf32>
    %1 = arith.truncf %0 : vector<512x32xf32> to vector<512x32xbf16>
    %c0_1 = arith.constant 0 : index
    %c0_2 = arith.constant 0 : index
    %2 = vector.load %arg2[%c0_1, %c0_2] : memref<32x256xbf16, #tpu.memory_space<vmem>>, vector<32x256xbf16>
    %cst = arith.constant dense<0.000000e+00> : vector<512x256xf32>
    %3 = tpu.matmul %1, %2, %cst {dimension_numbers = #tpu.dot_dimension_numbers<[1], [0], [0], [1], [0, 0, 1, 1], [], []>} : vector<512x32xbf16>, vector<32x256xbf16>, vector<512x256xf32> -> vector<512x256xf32>
    %4 = arith.truncf %3 : vector<512x256xf32> to vector<512x256xbf16>
    %c0_3 = arith.constant 0 : index
    %c0_4 = arith.constant 0 : index
    %5 = vector.load %arg3[%c0_3, %c0_4] : memref<1x256xbf16, #tpu.memory_space<vmem>>, vector<1x256xbf16>
    %6 = vector.broadcast %5 : vector<1x256xbf16> to vector<512x256xbf16>
    %7 = arith.addf %4, %6 : vector<512x256xbf16>
    %cst_5 = arith.constant 0.000000e+00 : bf16
    %8 = vector.broadcast %cst_5 : bf16 to vector<512x256xbf16>
    %9 = arith.maximumf %7, %8 : vector<512x256xbf16>
    %c0_6 = arith.constant 0 : index
    %c0_7 = arith.constant 0 : index
    %10 = vector.load %arg4[%c0_6, %c0_7] : memref<256x128xbf16, #tpu.memory_space<vmem>>, vector<256x128xbf16>
    %cst_8 = arith.constant dense<0.000000e+00> : vector<512x128xf32>
    %11 = tpu.matmul %9, %10, %cst_8 {dimension_numbers = #tpu.dot_dimension_numbers<[1], [0], [0], [1], [0, 0, 1, 1], [], []>} : vector<512x256xbf16>, vector<256x128xbf16>, vector<512x128xf32> -> vector<512x128xf32>
    %12 = arith.truncf %11 : vector<512x128xf32> to vector<512x128xbf16>
    %c0_9 = arith.constant 0 : index
    %c0_10 = arith.constant 0 : index
    %13 = vector.load %arg5[%c0_9, %c0_10] : memref<1x128xbf16, #tpu.memory_space<vmem>>, vector<1x128xbf16>
    %14 = vector.broadcast %13 : vector<1x128xbf16> to vector<512x128xbf16>
    %15 = arith.addf %12, %14 : vector<512x128xbf16>
    %cst_11 = arith.constant 0.000000e+00 : bf16
    %16 = vector.broadcast %cst_11 : bf16 to vector<512x128xbf16>
    %17 = arith.maximumf %15, %16 : vector<512x128xbf16>
    %c0_12 = arith.constant 0 : index
    %c0_13 = arith.constant 0 : index
    %18 = vector.load %arg6[%c0_12, %c0_13] : memref<128x64xbf16, #tpu.memory_space<vmem>>, vector<128x64xbf16>
    %cst_14 = arith.constant dense<0.000000e+00> : vector<512x64xf32>
    %19 = tpu.matmul %17, %18, %cst_14 {dimension_numbers = #tpu.dot_dimension_numbers<[1], [0], [0], [1], [0, 0, 1, 1], [], []>} : vector<512x128xbf16>, vector<128x64xbf16>, vector<512x64xf32> -> vector<512x64xf32>
    %20 = arith.truncf %19 : vector<512x64xf32> to vector<512x64xbf16>
    %c0_15 = arith.constant 0 : index
    %c0_16 = arith.constant 0 : index
    %21 = vector.load %arg7[%c0_15, %c0_16] : memref<1x64xbf16, #tpu.memory_space<vmem>>, vector<1x64xbf16>
    %22 = vector.broadcast %21 : vector<1x64xbf16> to vector<512x64xbf16>
    %23 = arith.addf %20, %22 : vector<512x64xbf16>
    %cst_17 = arith.constant 0.000000e+00 : bf16
    %24 = vector.broadcast %cst_17 : bf16 to vector<512x64xbf16>
    %25 = arith.maximumf %23, %24 : vector<512x64xbf16>
    %c0_18 = arith.constant 0 : index
    %c0_19 = arith.constant 0 : index
    %26 = vector.load %arg8[%c0_18, %c0_19] : memref<64x32xbf16, #tpu.memory_space<vmem>>, vector<64x32xbf16>
    %cst_20 = arith.constant dense<0.000000e+00> : vector<512x32xf32>
    %27 = tpu.matmul %25, %26, %cst_20 {dimension_numbers = #tpu.dot_dimension_numbers<[1], [0], [0], [1], [0, 0, 1, 1], [], []>} : vector<512x64xbf16>, vector<64x32xbf16>, vector<512x32xf32> -> vector<512x32xf32>
    %28 = arith.truncf %27 : vector<512x32xf32> to vector<512x32xbf16>
    %c0_21 = arith.constant 0 : index
    %c0_22 = arith.constant 0 : index
    %29 = vector.load %arg9[%c0_21, %c0_22] : memref<1x32xbf16, #tpu.memory_space<vmem>>, vector<1x32xbf16>
    %30 = vector.broadcast %29 : vector<1x32xbf16> to vector<512x32xbf16>
    %31 = arith.addf %28, %30 : vector<512x32xbf16>
    %cst_23 = arith.constant 0.000000e+00 : bf16
    %32 = vector.broadcast %cst_23 : bf16 to vector<512x32xbf16>
    %33 = arith.maximumf %31, %32 : vector<512x32xbf16>
    %34 = arith.extf %33 : vector<512x32xbf16> to vector<512x32xf32>
    %c0_24 = arith.constant 0 : index
    %c0_25 = arith.constant 0 : index
    %35 = vector.load %arg10[%c0_24, %c0_25] : memref<1x32xf32, #tpu.memory_space<vmem>>, vector<1x32xf32>
    %36 = vector.broadcast %35 : vector<1x32xf32> to vector<512x32xf32>
    %37 = arith.mulf %34, %36 : vector<512x32xf32>
    %cst_26 = arith.constant dense<0.000000e+00> : vector<512xf32>
    %38 = vector.multi_reduction <add>, %37, %cst_26 [1] : vector<512x32xf32> to vector<512xf32>
    %39 = vector.shape_cast %38 : vector<512xf32> to vector<512x1xf32>
    %c0_27 = arith.constant 0 : index
    %c0_28 = arith.constant 0 : index
    %40 = vector.load %arg11[%c0_27, %c0_28] : memref<1x1xf32, #tpu.memory_space<vmem>>, vector<1x1xf32>
    %41 = vector.broadcast %40 : vector<1x1xf32> to vector<512x1xf32>
    %42 = arith.addf %39, %41 : vector<512x1xf32>
    %c0_29 = arith.constant 0 : index
    %c0_30 = arith.constant 0 : index
    %43 = vector.load %arg12[%c0_29, %c0_30] : memref<512x1xf32, #tpu.memory_space<vmem>>, vector<512x1xf32>
    tpu.vector_store %arg12[%c0_29, %c0_30], %42 {strides = array<i32>} : memref<512x1xf32, #tpu.memory_space<vmem>>, vector<512x1xf32>,
    return
  }
  func.func @transform_0(%arg0: i32) -> (i32, i32) {
    %c0_i32 = arith.constant 0 : i32
    %c0_i32_0 = arith.constant 0 : i32
    return %arg0, %c0_i32 : i32, i32
  }
  func.func @transform_1(%arg0: i32) -> (i32, i32) {
    %c0_i32 = arith.constant 0 : i32
    %c0_i32_0 = arith.constant 0 : i32
    %c0_i32_1 = arith.constant 0 : i32
    return %c0_i32, %c0_i32_0 : i32, i32
  }
  func.func @transform_2(%arg0: i32) -> (i32, i32) {
    %c0_i32 = arith.constant 0 : i32
    %c0_i32_0 = arith.constant 0 : i32
    %c0_i32_1 = arith.constant 0 : i32
    return %c0_i32, %c0_i32_0 : i32, i32
  }
  func.func @transform_3(%arg0: i32) -> (i32, i32) {
    %c0_i32 = arith.constant 0 : i32
    %c0_i32_0 = arith.constant 0 : i32
    %c0_i32_1 = arith.constant 0 : i32
    return %c0_i32, %c0_i32_0 : i32, i32
  }
  func.func @transform_4(%arg0: i32) -> (i32, i32) {
    %c0_i32 = arith.constant 0 : i32
    %c0_i32_0 = arith.constant 0 : i32
    %c0_i32_1 = arith.constant 0 : i32
    return %c0_i32, %c0_i32_0 : i32, i32
  }
  func.func @transform_5(%arg0: i32) -> (i32, i32) {
    %c0_i32 = arith.constant 0 : i32
    %c0_i32_0 = arith.constant 0 : i32
    %c0_i32_1 = arith.constant 0 : i32
    return %c0_i32, %c0_i32_0 : i32, i32
  }
  func.func @transform_6(%arg0: i32) -> (i32, i32) {
    %c0_i32 = arith.constant 0 : i32
    %c0_i32_0 = arith.constant 0 : i32
    %c0_i32_1 = arith.constant 0 : i32
    return %c0_i32, %c0_i32_0 : i32, i32
  }
  func.func @transform_7(%arg0: i32) -> (i32, i32) {
    %c0_i32 = arith.constant 0 : i32
    %c0_i32_0 = arith.constant 0 : i32
    %c0_i32_1 = arith.constant 0 : i32
    return %c0_i32, %c0_i32_0 : i32, i32
  }
  func.func @transform_8(%arg0: i32) -> (i32, i32) {
    %c0_i32 = arith.constant 0 : i32
    %c0_i32_0 = arith.constant 0 : i32
    %c0_i32_1 = arith.constant 0 : i32
    return %c0_i32, %c0_i32_0 : i32, i32
  }
  func.func @transform_9(%arg0: i32) -> (i32, i32) {
    %c0_i32 = arith.constant 0 : i32
    %c0_i32_0 = arith.constant 0 : i32
    %c0_i32_1 = arith.constant 0 : i32
    return %c0_i32, %c0_i32_0 : i32, i32
  }
  func.func @transform_10(%arg0: i32) -> (i32, i32) {
    %c0_i32 = arith.constant 0 : i32
    %c0_i32_0 = arith.constant 0 : i32
    %c0_i32_1 = arith.constant 0 : i32
    return %c0_i32, %c0_i32_0 : i32, i32
  }
  func.func @transform_11(%arg0: i32) -> (i32, i32) {
    %c0_i32 = arith.constant 0 : i32
    %c0_i32_0 = arith.constant 0 : i32
    return %arg0, %c0_i32 : i32, i32
  }
}

</mosaic_0001>

<llo_original>
// kernel: tpu_custom_call.1
$region0: #{tpu_custom_call.1}
  #allocation0 [shape = 'u32[]', space=smem, size = 0x4, offset = 0x4, fixed_abs, tag = 'smem constant byte address 0x4 - core index']
  #allocation1 [shape = 'u32[144,128]{1,0:T(1,128)}', space=vmem, size = 0x12000, scoped, tag = 'internal scratch']
  #allocation2 [shape = 'f32[1,1]{1,0:T(1,128)S(1)}', space=vmem, size = 0x200, scoped, tag = 'scoped memory for tpu_custom_call.1']
  %s0 = inlined_call_operand.vmem [shape: f32[512,32], index: 0, kind: input, shape index: {}]
  %s1 = inlined_call_operand.vmem [shape: bf16[32,256], index: 1, kind: input, shape index: {}]
  %s2 = inlined_call_operand.vmem [shape: bf16[1,256], index: 2, kind: input, shape index: {}]
  %s3 = inlined_call_operand.vmem [shape: bf16[256,128], index: 3, kind: input, shape index: {}]
  %s4 = inlined_call_operand.vmem [shape: bf16[1,128], index: 4, kind: input, shape index: {}]
  %s5 = inlined_call_operand.vmem [shape: bf16[128,64], index: 5, kind: input, shape index: {}]
  %s6 = inlined_call_operand.vmem [shape: bf16[1,64], index: 6, kind: input, shape index: {}]
  %s7 = inlined_call_operand.vmem [shape: bf16[64,32], index: 7, kind: input, shape index: {}]
  %s8 = inlined_call_operand.vmem [shape: bf16[1,32], index: 8, kind: input, shape index: {}]
  %s9 = inlined_call_operand.vmem [shape: f32[1,32], index: 9, kind: input, shape index: {}]
  %s10 = inlined_call_operand.<no memory space> [shape: f32[1,1], index: 10, kind: input, shape index: {}]
  %s11 = inlined_call_operand.hbm [shape: f32[1,4,128], index: 11, kind: output, shape index: {}]
  %s12 = sld [smem:[#allocation0]]
  $region54: #{tpu_custom_call.1} parent=0
    _
  %s14 = ssub.s32 1, %s12
  %s15 = scalar_select 0, %s14, %s12
  %v16 = vstv %s10
  %17 = vst [vmem:[#allocation2] sm:$0x1] %v16
  $region1: #{tpu_custom_call.1} parent=0
    #allocation3 [shape = 'u8[2048]{0}', space=vmem, size = 0x800, scoped, tag = 'output window, operand 0, single buffered']
    #allocation4 [shape = 's32[1]{0}', space=sflag, size = 0x4, scoped, tag = 'scoped memory for tpu_custom_call.1']
    %18 = vsyncpa [#allocation4], 0
    // Predicated region
    $region2: #{tpu_custom_call.1} parent=1 // pred_check
      _
    $region3: #{tpu_custom_call.1} parent=1 // pred_check_branch
      %20 = sbr.rel (0) target = $region5
    $region4: #{tpu_custom_call.1} parent=1 // pred_region
      _
    $region5: #{tpu_custom_call.1} parent=1 // pred_fallthru
      _
    // Predicated region
    $region6: #{tpu_custom_call.1} parent=1 // pred_check
      _
    $region7: #{tpu_custom_call.1} parent=1 // pred_check_branch
      %22 = sbr.rel (0) target = $region9
    $region8: #{tpu_custom_call.1} parent=1 // pred_region
      _
    $region9: #{tpu_custom_call.1} parent=1 // pred_fallthru
      _
    // Predicated region
    $region10: #{tpu_custom_call.1} parent=1 // pred_check
      _
    $region11: #{tpu_custom_call.1} parent=1 // pred_check_branch
      %24 = sbr.rel (0) target = $region13
    $region12: #{tpu_custom_call.1} parent=1 // pred_region
      _
    $region13: #{tpu_custom_call.1} parent=1 // pred_fallthru
      _
    // Predicated region
    $region14: #{tpu_custom_call.1} parent=1 // pred_check
      _
    $region15: #{tpu_custom_call.1} parent=1 // pred_check_branch
      %26 = sbr.rel (0) target = $region17
    $region16: #{tpu_custom_call.1} parent=1 // pred_region
      _
    $region17: #{tpu_custom_call.1} parent=1 // pred_fallthru
      _
    // Predicated region
    $region18: #{tpu_custom_call.1} parent=1 // pred_check
      _
    $region19: #{tpu_custom_call.1} parent=1 // pred_check_branch
      %28 = sbr.rel (0) target = $region21
    $region20: #{tpu_custom_call.1} parent=1 // pred_region
      _
    $region21: #{tpu_custom_call.1} parent=1 // pred_fallthru
      _
    // Predicated region
    $region22: #{tpu_custom_call.1} parent=1 // pred_check
      _
    $region23: #{tpu_custom_call.1} parent=1 // pred_check_branch
      %30 = sbr.rel (0) target = $region25
    $region24: #{tpu_custom_call.1} parent=1 // pred_region
      _
    $region25: #{tpu_custom_call.1} parent=1 // pred_fallthru
      _
    // Predicated region
    $region26: #{tpu_custom_call.1} parent=1 // pred_check
      _
    $region27: #{tpu_custom_call.1} parent=1 // pred_check_branch
      %32 = sbr.rel (0) target = $region29
    $region28: #{tpu_custom_call.1} parent=1 // pred_region
      _
    $region29: #{tpu_custom_call.1} parent=1 // pred_fallthru
      _
    // Predicated region
    $region30: #{tpu_custom_call.1} parent=1 // pred_check
      _
    $region31: #{tpu_custom_call.1} parent=1 // pred_check_branch
      %34 = sbr.rel (0) target = $region33
    $region32: #{tpu_custom_call.1} parent=1 // pred_region
      _
    $region33: #{tpu_custom_call.1} parent=1 // pred_fallthru
      _
    // Predicated region
    $region34: #{tpu_custom_call.1} parent=1 // pred_check
      _
    $region35: #{tpu_custom_call.1} parent=1 // pred_check_branch
      %36 = sbr.rel (0) target = $region37
    $region36: #{tpu_custom_call.1} parent=1 // pred_region
      _
    $region37: #{tpu_custom_call.1} parent=1 // pred_fallthru
      _
    // Predicated region
    $region38: #{tpu_custom_call.1} parent=1 // pred_check
      _
    $region39: #{tpu_custom_call.1} parent=1 // pred_check_branch
      %38 = sbr.rel (0) target = $region41
    $region40: #{tpu_custom_call.1} parent=1 // pred_region
      _
    $region41: #{tpu_custom_call.1} parent=1 // pred_fallthru
      _
    // Predicated region
    $region42: #{tpu_custom_call.1} parent=1 // pred_check
      _
    $region43: #{tpu_custom_call.1} parent=1 // pred_check_branch
      %40 = sbr.rel (0) target = $region45
    $region44: #{tpu_custom_call.1} parent=1 // pred_region
      _
    $region45: #{tpu_custom_call.1} parent=1 // pred_fallthru
      _
    %v42 = vld [vmem:[%s0] sm:$0xff]
    %v43 = vld [vmem:[%s0 + $0x8] sm:$0xff]
    %v44 = vld [vmem:[%s0 + $0x10] sm:$0xff]
    %v45 = vld [vmem:[%s0 + $0x18] sm:$0xff]
    %v46 = vld [vmem:[%s0 + $0x20] sm:$0xff]
    %v47 = vld [vmem:[%s0 + $0x28] sm:$0xff]
    %v48 = vld [vmem:[%s0 + $0x30] sm:$0xff]
    %v49 = vld [vmem:[%s0 + $0x38] sm:$0xff]
    %v50 = vld [vmem:[%s0 + $0x40] sm:$0xff]
    %v51 = vld [vmem:[%s0 + $0x48] sm:$0xff]
    %v52 = vld [vmem:[%s0 + $0x50] sm:$0xff]
    %v53 = vld [vmem:[%s0 + $0x58] sm:$0xff]
    %v54 = vld [vmem:[%s0 + $0x60] sm:$0xff]
    %v55 = vld [vmem:[%s0 + $0x68] sm:$0xff]
    %v56 = vld [vmem:[%s0 + $0x70] sm:$0xff]
    %v57 = vld [vmem:[%s0 + $0x78] sm:$0xff]
    %v58 = vld [vmem:[%s0 + $0x80] sm:$0xff]
    %v59 = vld [vmem:[%s0 + $0x88] sm:$0xff]
    %v60 = vld [vmem:[%s0 + $0x90] sm:$0xff]
    %v61 = vld [vmem:[%s0 + $0x98] sm:$0xff]
    %v62 = vld [vmem:[%s0 + $0xa0] sm:$0xff]
    %v63 = vld [vmem:[%s0 + $0xa8] sm:$0xff]
    %v64 = vld [vmem:[%s0 + $0xb0] sm:$0xff]
    %v65 = vld [vmem:[%s0 + $0xb8] sm:$0xff]
    %v66 = vld [vmem:[%s0 + $0xc0] sm:$0xff]
    %v67 = vld [vmem:[%s0 + $0xc8] sm:$0xff]
    %v68 = vld [vmem:[%s0 + $0xd0] sm:$0xff]
    %v69 = vld [vmem:[%s0 + $0xd8] sm:$0xff]
    %v70 = vld [vmem:[%s0 + $0xe0] sm:$0xff]
    %v71 = vld [vmem:[%s0 + $0xe8] sm:$0xff]
    %v72 = vld [vmem:[%s0 + $0xf0] sm:$0xff]
    %v73 = vld [vmem:[%s0 + $0xf8] sm:$0xff]
    %v74 = vld [vmem:[%s0 + $0x100] sm:$0xff]
    %v75 = vld [vmem:[%s0 + $0x108] sm:$0xff]
    %v76 = vld [vmem:[%s0 + $0x110] sm:$0xff]
    %v77 = vld [vmem:[%s0 + $0x118] sm:$0xff]
    %v78 = vld [vmem:[%s0 + $0x120] sm:$0xff]
    %v79 = vld [vmem:[%s0 + $0x128] sm:$0xff]
    %v80 = vld [vmem:[%s0 + $0x130] sm:$0xff]
    %v81 = vld [vmem:[%s0 + $0x138] sm:$0xff]
    %v82 = vld [vmem:[%s0 + $0x140] sm:$0xff]
    %v83 = vld [vmem:[%s0 + $0x148] sm:$0xff]
    %v84 = vld [vmem:[%s0 + $0x150] sm:$0xff]
    %v85 = vld [vmem:[%s0 + $0x158] sm:$0xff]
    %v86 = vld [vmem:[%s0 + $0x160] sm:$0xff]
    %v87 = vld [vmem:[%s0 + $0x168] sm:$0xff]
    %v88 = vld [vmem:[%s0 + $0x170] sm:$0xff]
    %v89 = vld [vmem:[%s0 + $0x178] sm:$0xff]
    %v90 = vld [vmem:[%s0 + $0x180] sm:$0xff]
    %v91 = vld [vmem:[%s0 + $0x188] sm:$0xff]
    %v92 = vld [vmem:[%s0 + $0x190] sm:$0xff]
    %v93 = vld [vmem:[%s0 + $0x198] sm:$0xff]
    %v94 = vld [vmem:[%s0 + $0x1a0] sm:$0xff]
    %v95 = vld [vmem:[%s0 + $0x1a8] sm:$0xff]
    %v96 = vld [vmem:[%s0 + $0x1b0] sm:$0xff]
    %v97 = vld [vmem:[%s0 + $0x1b8] sm:$0xff]
    %v98 = vld [vmem:[%s0 + $0x1c0] sm:$0xff]
    %v99 = vld [vmem:[%s0 + $0x1c8] sm:$0xff]
    %v100 = vld [vmem:[%s0 + $0x1d0] sm:$0xff]
    %v101 = vld [vmem:[%s0 + $0x1d8] sm:$0xff]
    %v102 = vld [vmem:[%s0 + $0x1e0] sm:$0xff]
    %v103 = vld [vmem:[%s0 + $0x1e8] sm:$0xff]
    %v104 = vld [vmem:[%s0 + $0x1f0] sm:$0xff]
    %v105 = vld [vmem:[%s0 + $0x1f8] sm:$0xff]
    %v106 = vpack.c.bf16 %v43, %v42
    %v107 = vpack.c.bf16 %v45, %v44
    %v108 = vpack.c.bf16 %v47, %v46
    %v109 = vpack.c.bf16 %v49, %v48
    %v110 = vpack.c.bf16 %v51, %v50
    %v111 = vpack.c.bf16 %v53, %v52
    %v112 = vpack.c.bf16 %v55, %v54
    %v113 = vpack.c.bf16 %v57, %v56
    %v114 = vpack.c.bf16 %v59, %v58
    %v115 = vpack.c.bf16 %v61, %v60
    %v116 = vpack.c.bf16 %v63, %v62
    %v117 = vpack.c.bf16 %v65, %v64
    %v118 = vpack.c.bf16 %v67, %v66
    %v119 = vpack.c.bf16 %v69, %v68
    %v120 = vpack.c.bf16 %v71, %v70
    %v121 = vpack.c.bf16 %v73, %v72
    %v122 = vpack.c.bf16 %v75, %v74
    %v123 = vpack.c.bf16 %v77, %v76
    %v124 = vpack.c.bf16 %v79, %v78
    %v125 = vpack.c.bf16 %v81, %v80
    %v126 = vpack.c.bf16 %v83, %v82
    %v127 = vpack.c.bf16 %v85, %v84
    %v128 = vpack.c.bf16 %v87, %v86
    %v129 = vpack.c.bf16 %v89, %v88
    %v130 = vpack.c.bf16 %v91, %v90
    %v131 = vpack.c.bf16 %v93, %v92
    %v132 = vpack.c.bf16 %v95, %v94
    %v133 = vpack.c.bf16 %v97, %v96
    %v134 = vpack.c.bf16 %v99, %v98
    %v135 = vpack.c.bf16 %v101, %v100
    %v136 = vpack.c.bf16 %v103, %v102
    %v137 = vpack.c.bf16 %v105, %v104
    %v138 = vld [vmem:[%s1] sm:$0xff]
    %v139 = vld [vmem:[%s1 + $0x8] sm:$0xff]
    %v140 = vld [vmem:[%s1 + $0x10] sm:$0xff]
    %v141 = vld [vmem:[%s1 + $0x18] sm:$0xff]
    %v146 = vunpack.c.l.b16 %v138
    %v147 = vunpack.c.h.b16 %v138
    %v148 = vunpack.c.l.b16 %v139
    %v149 = vunpack.c.h.b16 %v139
    %v150 = vunpack.c.l.b16 %v140
    %v151 = vunpack.c.h.b16 %v140
    %v152 = vunpack.c.l.b16 %v141
    %v153 = vunpack.c.h.b16 %v141
    %v154 = vpack.c.b16 %v148, %v146
    %v155 = vpack.c.b16 %v149, %v147
    %v156 = vpack.c.b16 %v152, %v150
    %v157 = vpack.c.b16 %v153, %v151
    %vm162 = vcmask 261120
    %v164 = vsel %vm162, %v106, 0
    %v167 = vsel %vm162, %v107, 0
    %v170 = vsel %vm162, %v108, 0
    %v173 = vsel %vm162, %v109, 0
    %v176 = vsel %vm162, %v110, 0
    %v179 = vsel %vm162, %v111, 0
    %v182 = vsel %vm162, %v112, 0
    %v185 = vsel %vm162, %v113, 0
    %v188 = vsel %vm162, %v114, 0
    %v191 = vsel %vm162, %v115, 0
    %v194 = vsel %vm162, %v116, 0
    %v197 = vsel %vm162, %v117, 0
    %v200 = vsel %vm162, %v118, 0
    %v203 = vsel %vm162, %v119, 0
    %v206 = vsel %vm162, %v120, 0
    %v209 = vsel %vm162, %v121, 0
    %v212 = vsel %vm162, %v122, 0
    %v215 = vsel %vm162, %v123, 0
    %v218 = vsel %vm162, %v124, 0
    %v221 = vsel %vm162, %v125, 0
    %v224 = vsel %vm162, %v126, 0
    %v227 = vsel %vm162, %v127, 0
    %v230 = vsel %vm162, %v128, 0
    %v233 = vsel %vm162, %v129, 0
    %v236 = vsel %vm162, %v130, 0
    %v239 = vsel %vm162, %v131, 0
    %v242 = vsel %vm162, %v132, 0
    %v245 = vsel %vm162, %v133, 0
    %v248 = vsel %vm162, %v134, 0
    %v251 = vsel %vm162, %v135, 0
    %v254 = vsel %vm162, %v136, 0
    %v257 = vsel %vm162, %v137, 0
    %259 = vmatprep.subr.bf16.mxu0 %v155
    %260 = vmatpush1.bf16.msra.mxu0 %v154
    %261 = vmatprep.subr.bf16.mxu0 %v157
    %262 = vmatpush1.bf16.msra.mxu0 %v156
    %263 = vmatprep.subr.bf16.mxu0 0
    %264 = vmatpush1.bf16.msra.mxu0 0
    %265 = vmatprep.subr.bf16.mxu0 0
    %266 = vmatpush1.bf16.msra.mxu0 0
    %267 = vmatprep.subr.bf16.mxu0 0
    %268 = vmatpush1.bf16.msra.mxu0 0
    %269 = vmatprep.subr.bf16.mxu0 0
    %270 = vmatpush1.bf16.msra.mxu0 0
    %271 = vmatprep.subr.bf16.mxu0 0
    %272 = vmatpush1.bf16.msra.mxu0 0
    %273 = vmatprep.subr.bf16.mxu0 0
    %274 = vmatpush1.bf16.msra.mxu0 0
    %275 = vmatprep.subr.bf16.mxu0 0
    %276 = vmatpush1.bf16.msra.mxu0 0
    %277 = vmatprep.subr.bf16.mxu0 0
    %278 = vmatpush1.bf16.msra.mxu0 0
    %279 = vmatprep.subr.bf16.mxu0 0
    %280 = vmatpush1.bf16.msra.mxu0 0
    %281 = vmatprep.subr.bf16.mxu0 0
    %282 = vmatpush1.bf16.msra.mxu0 0
    %283 = vmatprep.subr.bf16.mxu0 0
    %284 = vmatpush1.bf16.msra.mxu0 0
    %285 = vmatprep.subr.bf16.mxu0 0
    %286 = vmatpush1.bf16.msra.mxu0 0
    %287 = vmatprep.subr.bf16.mxu0 0
    %288 = vmatpush1.bf16.msra.mxu0 0
    %289 = vmatprep.subr.bf16.mxu0 0
    %290 = vmatpush1.bf16.msra.mxu0 0
    %291 = vmatprep.mubr.bf16.mxu0 0
    %292 = vmatmul.mubr.bf16.gmra.mrb[0].mxu0 %v164
    %v293 = vpop.f32.mrb[0].mxu0
    %v294 = vadd.f32 0.0, %v293
    %v295 = vpop.f32.mrb[0].mxu0
    %v296 = vadd.f32 0.0, %v295
    %v297 = vpop.f32.mrb[0].mxu0
    %v298 = vadd.f32 0.0, %v297
    %v299 = vpop.f32.mrb[0].mxu0
    %v300 = vadd.f32 0.0, %v299
    %301 = vmatprep.mubr.bf16.mxu0 0
    %302 = vmatmul.mubr.bf16.gmra.mrb[0].mxu0 %v167
    %v303 = vpop.f32.mrb[0].mxu0
    %v304 = vadd.f32 0.0, %v303
    %v305 = vpop.f32.mrb[0].mxu0
    %v306 = vadd.f32 0.0, %v305
    %v307 = vpop.f32.mrb[0].mxu0
    %v308 = vadd.f32 0.0, %v307
    %v309 = vpop.f32.mrb[0].mxu0
    %v310 = vadd.f32 0.0, %v309
    %311 = vmatprep.mubr.bf16.mxu0 0
    %312 = vmatmul.mubr.bf16.gmra.mrb[0].mxu0 %v170
    %v313 = vpop.f32.mrb[0].mxu0
    %v314 = vadd.f32 0.0, %v313
    %v315 = vpop.f32.mrb[0].mxu0
    %v316 = vadd.f32 0.0, %v315
    %v317 = vpop.f32.mrb[0].mxu0
    %v318 = vadd.f32 0.0, %v317
    %v319 = vpop.f32.mrb[0].mxu0
    %v320 = vadd.f32 0.0, %v319
    %321 = vmatprep.mubr.bf16.mxu0 0
    %322 = vmatmul.mubr.bf16.gmra.mrb[0].mxu0 %v173
    %v323 = vpop.f32.mrb[0].mxu0
    %v324 = vadd.f32 0.0, %v323
    %v325 = vpop.f32.mrb[0].mxu0
    %v326 = vadd.f32 0.0, %v325
    %v327 = vpop.f32.mrb[0].mxu0
    %v328 = vadd.f32 0.0, %v327
    %v329 = vpop.f32.mrb[0].mxu0
    %v330 = vadd.f32 0.0, %v329
    %331 = vmatprep.mubr.bf16.mxu0 0
    %332 = vmatmul.mubr.bf16.gmra.mrb[0].mxu0 %v176
    %v333 = vpop.f32.mrb[0].mxu0
    %v334 = vadd.f32 0.0, %v333
    %v335 = vpop.f32.mrb[0].mxu0
    %v336 = vadd.f32 0.0, %v335
    %v337 = vpop.f32.mrb[0].mxu0
    %v338 = vadd.f32 0.0, %v337
    %v339 = vpop.f32.mrb[0].mxu0
    %v340 = vadd.f32 0.0, %v339
    %341 = vmatprep.mubr.bf16.mxu0 0
    %342 = vmatmul.mubr.bf16.gmra.mrb[0].mxu0 %v179
    %v343 = vpop.f32.mrb[0].mxu0
    %v344 = vadd.f32 0.0, %v343
    %v345 = vpop.f32.mrb[0].mxu0
    %v346 = vadd.f32 0.0, %v345
    %v347 = vpop.f32.mrb[0].mxu0
    %v348 = vadd.f32 0.0, %v347
    %v349 = vpop.f32.mrb[0].mxu0
    %v350 = vadd.f32 0.0, %v349
    %351 = vmatprep.mubr.bf16.mxu0 0
    %352 = vmatmul.mubr.bf16.gmra.mrb[0].mxu0 %v182
    %v353 = vpop.f32.mrb[0].mxu0
    %v354 = vadd.f32 0.0, %v353
    %v355 = vpop.f32.mrb[0].mxu0
    %v356 = vadd.f32 0.0, %v355
    %v357 = vpop.f32.mrb[0].mxu0
    %v358 = vadd.f32 0.0, %v357
    %v359 = vpop.f32.mrb[0].mxu0
    %v360 = vadd.f32 0.0, %v359
    %361 = vmatprep.mubr.bf16.mxu0 0
    %362 = vmatmul.mubr.bf16.gmra.mrb[0].mxu0 %v185
    %v363 = vpop.f32.mrb[0].mxu0
    %v364 = vadd.f32 0.0, %v363
    %v365 = vpop.f32.mrb[0].mxu0
    %v366 = vadd.f32 0.0, %v365
    %v367 = vpop.f32.mrb[0].mxu0
    %v368 = vadd.f32 0.0, %v367
    %v369 = vpop.f32.mrb[0].mxu0
    %v370 = vadd.f32 0.0, %v369
    %371 = vmatprep.mubr.bf16.mxu0 0
    %372 = vmatmul.mubr.bf16.gmra.mrb[0].mxu0 %v188
    %v373 = vpop.f32.mrb[0].mxu0
    %v374 = vadd.f32 0.0, %v373
    %v375 = vpop.f32.mrb[0].mxu0
    %v376 = vadd.f32 0.0, %v375
    %v377 = vpop.f32.mrb[0].mxu0
    %v378 = vadd.f32 0.0, %v377
    %v379 = vpop.f32.mrb[0].mxu0
    %v380 = vadd.f32 0.0, %v379
    %381 = vmatprep.mubr.bf16.mxu0 0
    %382 = vmatmul.mubr.bf16.gmra.mrb[0].mxu0 %v191
    %v383 = vpop.f32.mrb[0].mxu0
    %v384 = vadd.f32 0.0, %v383
    %v385 = vpop.f32.mrb[0].mxu0
    %v386 = vadd.f32 0.0, %v385
    %v387 = vpop.f32.mrb[0].mxu0
    %v388 = vadd.f32 0.0, %v387
    %v389 = vpop.f32.mrb[0].mxu0
    %v390 = vadd.f32 0.0, %v389
    %391 = vmatprep.mubr.bf16.mxu0 0
    %392 = vmatmul.mubr.bf16.gmra.mrb[0].mxu0 %v194
    %v393 = vpop.f32.mrb[0].mxu0
    %v394 = vadd.f32 0.0, %v393
    %v395 = vpop.f32.mrb[0].mxu0
    %v396 = vadd.f32 0.0, %v395
    %v397 = vpop.f32.mrb[0].mxu0
    %v398 = vadd.f32 0.0, %v397
    %v399 = vpop.f32.mrb[0].mxu0
    %v400 = vadd.f32 0.0, %v399
    %401 = vmatprep.mubr.bf16.mxu0 0
    %402 = vmatmul.mubr.bf16.gmra.mrb[0].mxu0 %v197
    %v403 = vpop.f32.mrb[0].mxu0
    %v404 = vadd.f32 0.0, %v403
    %v405 = vpop.f32.mrb[0].mxu0
    %v406 = vadd.f32 0.0, %v405
    %v407 = vpop.f32.mrb[0].mxu0
    %v408 = vadd.f32 0.0, %v407
    %v409 = vpop.f32.mrb[0].mxu0
    %v410 = vadd.f32 0.0, %v409
    %411 = vmatprep.mubr.bf16.mxu0 0
    %412 = vmatmul.mubr.bf16.gmra.mrb[0].mxu0 %v200
    %v413 = vpop.f32.mrb[0].mxu0
    %v414 = vadd.f32 0.0, %v413
    %v415 = vpop.f32.mrb[0].mxu0
    %v416 = vadd.f32 0.0, %v415
    %v417 = vpop.f32.mrb[0].mxu0
    %v418 = vadd.f32 0.0, %v417
    %v419 = vpop.f32.mrb[0].mxu0
    %v420 = vadd.f32 0.0, %v419
    %421 = vmatprep.mubr.bf16.mxu0 0
    %422 = vmatmul.mubr.bf16.gmra.mrb[0].mxu0 %v203
    %v423 = vpop.f32.mrb[0].mxu0
    %v424 = vadd.f32 0.0, %v423
    %v425 = vpop.f32.mrb[0].mxu0
    %v426 = vadd.f32 0.0, %v425
    %v427 = vpop.f32.mrb[0].mxu0
    %v428 = vadd.f32 0.0, %v427
    %v429 = vpop.f32.mrb[0].mxu0
    %v430 = vadd.f32 0.0, %v429
    %431 = vmatprep.mubr.bf16.mxu0 0
    %432 = vmatmul.mubr.bf16.gmra.mrb[0].mxu0 %v206
    %v433 = vpop.f32.mrb[0].mxu0
    %v434 = vadd.f32 0.0, %v433
    %v435 = vpop.f32.mrb[0].mxu0
    %v436 = vadd.f32 0.0, %v435
    %v437 = vpop.f32.mrb[0].mxu0
    %v438 = vadd.f32 0.0, %v437
    %v439 = vpop.f32.mrb[0].mxu0
    %v440 = vadd.f32 0.0, %v439
    %441 = vmatprep.mubr.bf16.mxu0 0
    %442 = vmatmul.mubr.bf16.gmra.mrb[0].mxu0 %v209
    %v443 = vpop.f32.mrb[0].mxu0
    %v444 = vadd.f32 0.0, %v443
    %v445 = vpop.f32.mrb[0].mxu0
    %v446 = vadd.f32 0.0, %v445
    %v447 = vpop.f32.mrb[0].mxu0
    %v448 = vadd.f32 0.0, %v447
    %v449 = vpop.f32.mrb[0].mxu0
    %v450 = vadd.f32 0.0, %v449
    %451 = vmatprep.mubr.bf16.mxu0 0
    %452 = vmatmul.mubr.bf16.gmra.mrb[0].mxu0 %v212
    %v453 = vpop.f32.mrb[0].mxu0
    %v454 = vadd.f32 0.0, %v453
    %v455 = vpop.f32.mrb[0].mxu0
    %v456 = vadd.f32 0.0, %v455
    %v457 = vpop.f32.mrb[0].mxu0
    %v458 = vadd.f32 0.0, %v457
    %v459 = vpop.f32.mrb[0].mxu0
    %v460 = vadd.f32 0.0, %v459
    %461 = vmatprep.mubr.bf16.mxu0 0
    %462 = vmatmul.mubr.bf16.gmra.mrb[0].mxu0 %v215
    %v463 = vpop.f32.mrb[0].mxu0
    %v464 = vadd.f32 0.0, %v463
    %v465 = vpop.f32.mrb[0].mxu0
    %v466 = vadd.f32 0.0, %v465
    %v467 = vpop.f32.mrb[0].mxu0
    %v468 = vadd.f32 0.0, %v467
    %v469 = vpop.f32.mrb[0].mxu0
    %v470 = vadd.f32 0.0, %v469
    %471 = vmatprep.mubr.bf16.mxu0 0
    %472 = vmatmul.mubr.bf16.gmra.mrb[0].mxu0 %v218
    %v473 = vpop.f32.mrb[0].mxu0
    %v474 = vadd.f32 0.0, %v473
    %v475 = vpop.f32.mrb[0].mxu0
    %v476 = vadd.f32 0.0, %v475
    %v477 = vpop.f32.mrb[0].mxu0
    %v478 = vadd.f32 0.0, %v477
    %v479 = vpop.f32.mrb[0].mxu0
    %v480 = vadd.f32 0.0, %v479
    %481 = vmatprep.mubr.bf16.mxu0 0
    %482 = vmatmul.mubr.bf16.gmra.mrb[0].mxu0 %v221
    %v483 = vpop.f32.mrb[0].mxu0
    %v484 = vadd.f32 0.0, %v483
    %v485 = vpop.f32.mrb[0].mxu0
    %v486 = vadd.f32 0.0, %v485
    %v487 = vpop.f32.mrb[0].mxu0
    %v488 = vadd.f32 0.0, %v487
    %v489 = vpop.f32.mrb[0].mxu0
    %v490 = vadd.f32 0.0, %v489
    %491 = vmatprep.mubr.bf16.mxu0 0
    %492 = vmatmul.mubr.bf16.gmra.mrb[0].mxu0 %v224
    %v493 = vpop.f32.mrb[0].mxu0
    %v494 = vadd.f32 0.0, %v493
    %v495 = vpop.f32.mrb[0].mxu0
    %v496 = vadd.f32 0.0, %v495
    %v497 = vpop.f32.mrb[0].mxu0
    %v498 = vadd.f32 0.0, %v497
    %v499 = vpop.f32.mrb[0].mxu0
    %v500 = vadd.f32 0.0, %v499
    %501 = vmatprep.mubr.bf16.mxu0 0
    %502 = vmatmul.mubr.bf16.gmra.mrb[0].mxu0 %v227
    %v503 = vpop.f32.mrb[0].mxu0
    %v504 = vadd.f32 0.0, %v503
    %v505 = vpop.f32.mrb[0].mxu0
    %v506 = vadd.f32 0.0, %v505
    %v507 = vpop.f32.mrb[0].mxu0
    %v508 = vadd.f32 0.0, %v507
    %v509 = vpop.f32.mrb[0].mxu0
    %v510 = vadd.f32 0.0, %v509
    %511 = vmatprep.mubr.bf16.mxu0 0
    %512 = vmatmul.mubr.bf16.gmra.mrb[0].mxu0 %v230
    %v513 = vpop.f32.mrb[0].mxu0
    %v514 = vadd.f32 0.0, %v513
    %v515 = vpop.f32.mrb[0].mxu0
    %v516 = vadd.f32 0.0, %v515
    %v517 = vpop.f32.mrb[0].mxu0
    %v518 = vadd.f32 0.0, %v517
    %v519 = vpop.f32.mrb[0].mxu0
    %v520 = vadd.f32 0.0, %v519
    %521 = vmatprep.mubr.bf16.mxu0 0
    %522 = vmatmul.mubr.bf16.gmra.mrb[0].mxu0 %v233
    %v523 = vpop.f32.mrb[0].mxu0
    %v524 = vadd.f32 0.0, %v523
    %v525 = vpop.f32.mrb[0].mxu0
    %v526 = vadd.f32 0.0, %v525
    %v527 = vpop.f32.mrb[0].mxu0
    %v528 = vadd.f32 0.0, %v527
    %v529 = vpop.f32.mrb[0].mxu0
    %v530 = vadd.f32 0.0, %v529
    %531 = vmatprep.mubr.bf16.mxu0 0
    %532 = vmatmul.mubr.bf16.gmra.mrb[0].mxu0 %v236
    %v533 = vpop.f32.mrb[0].mxu0
    %v534 = vadd.f32 0.0, %v533
    %v535 = vpop.f32.mrb[0].mxu0
    %v536 = vadd.f32 0.0, %v535
    %v537 = vpop.f32.mrb[0].mxu0
    %v538 = vadd.f32 0.0, %v537
    %v539 = vpop.f32.mrb[0].mxu0
    %v540 = vadd.f32 0.0, %v539
    %541 = vmatprep.mubr.bf16.mxu0 0
    %542 = vmatmul.mubr.bf16.gmra.mrb[0].mxu0 %v239
    %v543 = vpop.f32.mrb[0].mxu0
    %v544 = vadd.f32 0.0, %v543
    %v545 = vpop.f32.mrb[0].mxu0
    %v546 = vadd.f32 0.0, %v545
    %v547 = vpop.f32.mrb[0].mxu0
    %v548 = vadd.f32 0.0, %v547
    %v549 = vpop.f32.mrb[0].mxu0
    %v550 = vadd.f32 0.0, %v549
    %551 = vmatprep.mubr.bf16.mxu0 0
    %552 = vmatmul.mubr.bf16.gmra.mrb[0].mxu0 %v242
    %v553 = vpop.f32.mrb[0].mxu0
    %v554 = vadd.f32 0.0, %v553
    %v555 = vpop.f32.mrb[0].mxu0
    %v556 = vadd.f32 0.0, %v555
    %v557 = vpop.f32.mrb[0].mxu0
    %v558 = vadd.f32 0.0, %v557
    %v559 = vpop.f32.mrb[0].mxu0
    %v560 = vadd.f32 0.0, %v559
    %561 = vmatprep.mubr.bf16.mxu0 0
    %562 = vmatmul.mubr.bf16.gmra.mrb[0].mxu0 %v245
    %v563 = vpop.f32.mrb[0].mxu0
    %v564 = vadd.f32 0.0, %v563
    %v565 = vpop.f32.mrb[0].mxu0
    %v566 = vadd.f32 0.0, %v565
    %v567 = vpop.f32.mrb[0].mxu0
    %v568 = vadd.f32 0.0, %v567
    %v569 = vpop.f32.mrb[0].mxu0
    %v570 = vadd.f32 0.0, %v569
    %571 = vmatprep.mubr.bf16.mxu0 0
    %572 = vmatmul.mubr.bf16.gmra.mrb[0].mxu0 %v248
    %v573 = vpop.f32.mrb[0].mxu0
    %v574 = vadd.f32 0.0, %v573
    %v575 = vpop.f32.mrb[0].mxu0
    %v576 = vadd.f32 0.0, %v575
    %v577 = vpop.f32.mrb[0].mxu0
    %v578 = vadd.f32 0.0, %v577
    %v579 = vpop.f32.mrb[0].mxu0
    %v580 = vadd.f32 0.0, %v579
    %581 = vmatprep.mubr.bf16.mxu0 0
    %582 = vmatmul.mubr.bf16.gmra.mrb[0].mxu0 %v251
    %v583 = vpop.f32.mrb[0].mxu0
    %v584 = vadd.f32 0.0, %v583
    %v585 = vpop.f32.mrb[0].mxu0
    %v586 = vadd.f32 0.0, %v585
    %v587 = vpop.f32.mrb[0].mxu0
    %v588 = vadd.f32 0.0, %v587
    %v589 = vpop.f32.mrb[0].mxu0
    %v590 = vadd.f32 0.0, %v589
    %591 = vmatprep.mubr.bf16.mxu0 0
    %592 = vmatmul.mubr.bf16.gmra.mrb[0].mxu0 %v254
    %v593 = vpop.f32.mrb[0].mxu0
    %v594 = vadd.f32 0.0, %v593
    %v595 = vpop.f32.mrb[0].mxu0
    %v596 = vadd.f32 0.0, %v595
    %v597 = vpop.f32.mrb[0].mxu0
    %v598 = vadd.f32 0.0, %v597
    %v599 = vpop.f32.mrb[0].mxu0
    %v600 = vadd.f32 0.0, %v599
    %601 = vmatprep.mubr.bf16.mxu0 0
    %602 = vmatmul.mubr.bf16.gmra.mrb[0].mxu0 %v257
    %v603 = vpop.f32.mrb[0].mxu0
    %v604 = vadd.f32 0.0, %v603
    %v605 = vpop.f32.mrb[0].mxu0
    %v606 = vadd.f32 0.0, %v605
    %v607 = vpop.f32.mrb[0].mxu0
    %v608 = vadd.f32 0.0, %v607
    %v609 = vpop.f32.mrb[0].mxu0
    %v610 = vadd.f32 0.0, %v609
    %611 = vdwg.mxu0
    %v612 = vpack.c.bf16 %v298, %v294
    %v613 = vpack.c.bf16 %v300, %v296
    %v614 = vpack.c.bf16 %v308, %v304
    %v615 = vpack.c.bf16 %v310, %v306
    %v616 = vpack.c.bf16 %v318, %v314
    %v617 = vpack.c.bf16 %v320, %v316
    %v618 = vpack.c.bf16 %v328, %v324
    %v619 = vpack.c.bf16 %v330, %v326
    %v620 = vpack.c.bf16 %v338, %v334
    %v621 = vpack.c.bf16 %v340, %v336
    %v622 = vpack.c.bf16 %v348, %v344
    %v623 = vpack.c.bf16 %v350, %v346
    %v624 = vpack.c.bf16 %v358, %v354
    %v625 = vpack.c.bf16 %v360, %v356
    %v626 = vpack.c.bf16 %v368, %v364
    %v627 = vpack.c.bf16 %v370, %v366
    %v628 = vpack.c.bf16 %v378, %v374
    %v629 = vpack.c.bf16 %v380, %v376
    %v630 = vpack.c.bf16 %v388, %v384
    %v631 = vpack.c.bf16 %v390, %v386
    %v632 = vpack.c.bf16 %v398, %v394
    %v633 = vpack.c.bf16 %v400, %v396
    %v634 = vpack.c.bf16 %v408, %v404
    %v635 = vpack.c.bf16 %v410, %v406
    %v636 = vpack.c.bf16 %v418, %v414
    %v637 = vpack.c.bf16 %v420, %v416
    %v638 = vpack.c.bf16 %v428, %v424
    %v639 = vpack.c.bf16 %v430, %v426
    %v640 = vpack.c.bf16 %v438, %v434
    %v641 = vpack.c.bf16 %v440, %v436
    %v642 = vpack.c.bf16 %v448, %v444
    %v643 = vpack.c.bf16 %v450, %v446
    %v644 = vpack.c.bf16 %v458, %v454
    %v645 = vpack.c.bf16 %v460, %v456
    %v646 = vpack.c.bf16 %v468, %v464
    %v647 = vpack.c.bf16 %v470, %v466
    %v648 = vpack.c.bf16 %v478, %v474
    %v649 = vpack.c.bf16 %v480, %v476
    %v650 = vpack.c.bf16 %v488, %v484
    %v651 = vpack.c.bf16 %v490, %v486
    %v652 = vpack.c.bf16 %v498, %v494
    %v653 = vpack.c.bf16 %v500, %v496
    %v654 = vpack.c.bf16 %v508, %v504
    %v655 = vpack.c.bf16 %v510, %v506
    %v656 = vpack.c.bf16 %v518, %v514
    %v657 = vpack.c.bf16 %v520, %v516
    %v658 = vpack.c.bf16 %v528, %v524
    %v659 = vpack.c.bf16 %v530, %v526
    %v660 = vpack.c.bf16 %v538, %v534
    %v661 = vpack.c.bf16 %v540, %v536
    %v662 = vpack.c.bf16 %v548, %v544
    %v663 = vpack.c.bf16 %v550, %v546
    %v664 = vpack.c.bf16 %v558, %v554
    %v665 = vpack.c.bf16 %v560, %v556
    %v666 = vpack.c.bf16 %v568, %v564
    %v667 = vpack.c.bf16 %v570, %v566
    %v668 = vpack.c.bf16 %v578, %v574
    %v669 = vpack.c.bf16 %v580, %v576
    %v670 = vpack.c.bf16 %v588, %v584
    %v671 = vpack.c.bf16 %v590, %v586
    %v672 = vpack.c.bf16 %v598, %v594
    %v673 = vpack.c.bf16 %v600, %v596
    %v674 = vpack.c.bf16 %v608, %v604
    %v675 = vpack.c.bf16 %v610, %v606
    %v676 = vld [vmem:[%s2] sm:$0x3]
    %v679 = vunpack.c.l.s4 1966171168
    %v680 = vunpack.c.0.s8 %v679
    %v681 = vlaneseq
    %v682 = vshrl.u32 %v681, 7
    %v683 = vsub.s32 %v680, %v682
    %v684 = vrot.slane %v676, %v683
    %v685 = vcombine.high %v684, %v684
    %v687 = vunpack.c.l.s4 1966171168
    %v688 = vunpack.c.0.s8 %v687
    %v689 = vlaneseq
    %v690 = vshrl.u32 %v689, 7
    %v691 = vsub.s32 %v688, %v690
    %v692 = vrot.slane %v684, %v691
    %v694 = vunpack.c.l.s4 1966171168
    %v695 = vunpack.c.0.s8 %v694
    %v696 = vlaneseq
    %v697 = vshrl.u32 %v696, 7
    %v698 = vsub.s32 %v695, %v697
    %v699 = vrot.slane %v685, %v698
    %v701 = vpack.i.b16 %v692, %v692
    %v703 = vlaneseq
    %v704 = vshrl.u32 %v703, 7
    %v705 = vsub.s32 0, %v704
    %v706 = vrot.slane %v701, %v705
    %v708 = vpack.i.b16 %v699, %v699
    %v710 = vlaneseq
    %v711 = vshrl.u32 %v710, 7
    %v712 = vsub.s32 0, %v711
    %v713 = vrot.slane %v708, %v712
    %v714 = vadd.bf16 %v612, %v706
    %v715 = vadd.bf16 %v613, %v713
    %v716 = vadd.bf16 %v614, %v706
    %v717 = vadd.bf16 %v615, %v713
    %v718 = vadd.bf16 %v616, %v706
    %v719 = vadd.bf16 %v617, %v713
    %v720 = vadd.bf16 %v618, %v706
    %v721 = vadd.bf16 %v619, %v713
    %v722 = vadd.bf16 %v620, %v706
    %v723 = vadd.bf16 %v621, %v713
    %v724 = vadd.bf16 %v622, %v706
    %v725 = vadd.bf16 %v623, %v713
    %v726 = vadd.bf16 %v624, %v706
    %v727 = vadd.bf16 %v625, %v713
    %v728 = vadd.bf16 %v626, %v706
    %v729 = vadd.bf16 %v627, %v713
    %v730 = vadd.bf16 %v628, %v706
    %v731 = vadd.bf16 %v629, %v713
    %v732 = vadd.bf16 %v630, %v706
    %v733 = vadd.bf16 %v631, %v713
    %v734 = vadd.bf16 %v632, %v706
    %v735 = vadd.bf16 %v633, %v713
    %v736 = vadd.bf16 %v634, %v706
    %v737 = vadd.bf16 %v635, %v713
    %v738 = vadd.bf16 %v636, %v706
    %v739 = vadd.bf16 %v637, %v713
    %v740 = vadd.bf16 %v638, %v706
    %v741 = vadd.bf16 %v639, %v713
    %v742 = vadd.bf16 %v640, %v706
    %v743 = vadd.bf16 %v641, %v713
    %v744 = vadd.bf16 %v642, %v706
    %v745 = vadd.bf16 %v643, %v713
    %v746 = vadd.bf16 %v644, %v706
    %v747 = vadd.bf16 %v645, %v713
    %v748 = vadd.bf16 %v646, %v706
    %v749 = vadd.bf16 %v647, %v713
    %v750 = vadd.bf16 %v648, %v706
    %v751 = vadd.bf16 %v649, %v713
    %v752 = vadd.bf16 %v650, %v706
    %v753 = vadd.bf16 %v651, %v713
    %v754 = vadd.bf16 %v652, %v706
    %v755 = vadd.bf16 %v653, %v713
    %v756 = vadd.bf16 %v654, %v706
    %v757 = vadd.bf16 %v655, %v713
    %v758 = vadd.bf16 %v656, %v706
    %v759 = vadd.bf16 %v657, %v713
    %v760 = vadd.bf16 %v658, %v706
    %v761 = vadd.bf16 %v659, %v713
    %v762 = vadd.bf16 %v660, %v706
    %v763 = vadd.bf16 %v661, %v713
    %v764 = vadd.bf16 %v662, %v706
    %v765 = vadd.bf16 %v663, %v713
    %v766 = vadd.bf16 %v664, %v706
    %v767 = vadd.bf16 %v665, %v713
    %v768 = vadd.bf16 %v666, %v706
    %v769 = vadd.bf16 %v667, %v713
    %v770 = vadd.bf16 %v668, %v706
    %v771 = vadd.bf16 %v669, %v713
    %v772 = vadd.bf16 %v670, %v706
    %v773 = vadd.bf16 %v671, %v713
    %v774 = vadd.bf16 %v672, %v706
    %v775 = vadd.bf16 %v673, %v713
    %v776 = vadd.bf16 %v674, %v706
    %v777 = vadd.bf16 %v675, %v713
    %v778 = vmax.bf16 %v714, 0
    %v779 = vmax.bf16 %v715, 0
    %v780 = vmax.bf16 %v716, 0
    %v781 = vmax.bf16 %v717, 0
    %v782 = vmax.bf16 %v718, 0
    %v783 = vmax.bf16 %v719, 0
    %v784 = vmax.bf16 %v720, 0
    %v785 = vmax.bf16 %v721, 0
    %v786 = vmax.bf16 %v722, 0
    %v787 = vmax.bf16 %v723, 0
    %v788 = vmax.bf16 %v724, 0
    %v789 = vmax.bf16 %v725, 0
    %v790 = vmax.bf16 %v726, 0
    %v791 = vmax.bf16 %v727, 0
    %v792 = vmax.bf16 %v728, 0
    %v793 = vmax.bf16 %v729, 0
    %v794 = vmax.bf16 %v730, 0
    %v795 = vmax.bf16 %v731, 0
    %v796 = vmax.bf16 %v732, 0
    %v797 = vmax.bf16 %v733, 0
    %v798 = vmax.bf16 %v734, 0
    %v799 = vmax.bf16 %v735, 0
    %v800 = vmax.bf16 %v736, 0
    %v801 = vmax.bf16 %v737, 0
    %v802 = vmax.bf16 %v738, 0
    %v803 = vmax.bf16 %v739, 0
    %v804 = vmax.bf16 %v740, 0
    %v805 = vmax.bf16 %v741, 0
    %v806 = vmax.bf16 %v742, 0
    %v807 = vmax.bf16 %v743, 0
    %v808 = vmax.bf16 %v744, 0
    %v809 = vmax.bf16 %v745, 0
    %v810 = vmax.bf16 %v746, 0
    %v811 = vmax.bf16 %v747, 0
    %v812 = vmax.bf16 %v748, 0
    %v813 = vmax.bf16 %v749, 0
    %v814 = vmax.bf16 %v750, 0
    %v815 = vmax.bf16 %v751, 0
    %v816 = vmax.bf16 %v752, 0
    %v817 = vmax.bf16 %v753, 0
    %v818 = vmax.bf16 %v754, 0
    %v819 = vmax.bf16 %v755, 0
    %v820 = vmax.bf16 %v756, 0
    %v821 = vmax.bf16 %v757, 0
    %v822 = vmax.bf16 %v758, 0
    %v823 = vmax.bf16 %v759, 0
    %v824 = vmax.bf16 %v760, 0
    %v825 = vmax.bf16 %v761, 0
    %v826 = vmax.bf16 %v762, 0
    %v827 = vmax.bf16 %v763, 0
    %v828 = vmax.bf16 %v764, 0
    %v829 = vmax.bf16 %v765, 0
    %v830 = vmax.bf16 %v766, 0
    %v831 = vmax.bf16 %v767, 0
    %v832 = vmax.bf16 %v768, 0
    %v833 = vmax.bf16 %v769, 0
    %v834 = vmax.bf16 %v770, 0
    %v835 = vmax.bf16 %v771, 0
    %v836 = vmax.bf16 %v772, 0
    %v837 = vmax.bf16 %v773, 0
    %v838 = vmax.bf16 %v774, 0
    %v839 = vmax.bf16 %v775, 0
    %v840 = vmax.bf16 %v776, 0
    %v841 = vmax.bf16 %v777, 0
    %v842 = vld [vmem:[%s3] sm:$0xf]
    %v843 = vld [vmem:[%s3 + $0x4] sm:$0xf]
    %v844 = vld [vmem:[%s3 + $0x8] sm:$0xf]
    %v845 = vld [vmem:[%s3 + $0xc] sm:$0xf]
    %v846 = vld [vmem:[%s3 + $0x10] sm:$0xf]
    %v847 = vld [vmem:[%s3 + $0x14] sm:$0xf]
    %v848 = vld [vmem:[%s3 + $0x18] sm:$0xf]
    %v849 = vld [vmem:[%s3 + $0x1c] sm:$0xf]
    %v850 = vld [vmem:[%s3 + $0x20] sm:$0xf]
    %v851 = vld [vmem:[%s3 + $0x24] sm:$0xf]
    %v852 = vld [vmem:[%s3 + $0x28] sm:$0xf]
    %v853 = vld [vmem:[%s3 + $0x2c] sm:$0xf]
    %v854 = vld [vmem:[%s3 + $0x30] sm:$0xf]
    %v855 = vld [vmem:[%s3 + $0x34] sm:$0xf]
    %v856 = vld [vmem:[%s3 + $0x38] sm:$0xf]
    %v857 = vld [vmem:[%s3 + $0x3c] sm:$0xf]
    %v858 = vld [vmem:[%s3 + $0x40] sm:$0xf]
    %v859 = vld [vmem:[%s3 + $0x44] sm:$0xf]
    %v860 = vld [vmem:[%s3 + $0x48] sm:$0xf]
    %v861 = vld [vmem:[%s3 + $0x4c] sm:$0xf]
    %v862 = vld [vmem:[%s3 + $0x50] sm:$0xf]
    %v863 = vld [vmem:[%s3 + $0x54] sm:$0xf]
    %v864 = vld [vmem:[%s3 + $0x58] sm:$0xf]
    %v865 = vld [vmem:[%s3 + $0x5c] sm:$0xf]
    %v866 = vld [vmem:[%s3 + $0x60] sm:$0xf]
    %v867 = vld [vmem:[%s3 + $0x64] sm:$0xf]
    %v868 = vld [vmem:[%s3 + $0x68] sm:$0xf]
    %v869 = vld [vmem:[%s3 + $0x6c] sm:$0xf]
    %v870 = vld [vmem:[%s3 + $0x70] sm:$0xf]
    %v871 = vld [vmem:[%s3 + $0x74] sm:$0xf]
    %v872 = vld [vmem:[%s3 + $0x78] sm:$0xf]
    %v873 = vld [vmem:[%s3 + $0x7c] sm:$0xf]
    %v906 = vunpack.c.l.b16 %v842
    %v907 = vunpack.c.l.b16 %v843
    %v908 = vunpack.c.l.b16 %v844
    %v909 = vunpack.c.l.b16 %v845
    %v910 = vunpack.c.l.b16 %v846
    %v911 = vunpack.c.l.b16 %v847
    %v912 = vunpack.c.l.b16 %v848
    %v913 = vunpack.c.l.b16 %v849
    %v914 = vunpack.c.l.b16 %v850
    %v915 = vunpack.c.l.b16 %v851
    %v916 = vunpack.c.l.b16 %v852
    %v917 = vunpack.c.l.b16 %v853
    %v918 = vunpack.c.l.b16 %v854
    %v919 = vunpack.c.l.b16 %v855
    %v920 = vunpack.c.l.b16 %v856
    %v921 = vunpack.c.l.b16 %v857
    %v922 = vunpack.c.l.b16 %v858
    %v923 = vunpack.c.l.b16 %v859
    %v924 = vunpack.c.l.b16 %v860
    %v925 = vunpack.c.l.b16 %v861
    %v926 = vunpack.c.l.b16 %v862
    %v927 = vunpack.c.l.b16 %v863
    %v928 = vunpack.c.l.b16 %v864
    %v929 = vunpack.c.l.b16 %v865
    %v930 = vunpack.c.l.b16 %v866
    %v931 = vunpack.c.l.b16 %v867
    %v932 = vunpack.c.l.b16 %v868
    %v933 = vunpack.c.l.b16 %v869
    %v934 = vunpack.c.l.b16 %v870
    %v935 = vunpack.c.l.b16 %v871
    %v936 = vunpack.c.l.b16 %v872
    %v937 = vunpack.c.l.b16 %v873
    %v938 = vpack.c.b16 %v907, %v906
    %v939 = vpack.c.b16 %v909, %v908
    %v940 = vpack.c.b16 %v911, %v910
    %v941 = vpack.c.b16 %v913, %v912
    %v942 = vpack.c.b16 %v915, %v914
    %v943 = vpack.c.b16 %v917, %v916
    %v944 = vpack.c.b16 %v919, %v918
    %v945 = vpack.c.b16 %v921, %v920
    %v946 = vpack.c.b16 %v923, %v922
    %v947 = vpack.c.b16 %v925, %v924
    %v948 = vpack.c.b16 %v927, %v926
    %v949 = vpack.c.b16 %v929, %v928
    %v950 = vpack.c.b16 %v931, %v930
    %v951 = vpack.c.b16 %v933, %v932
    %v952 = vpack.c.b16 %v935, %v934
    %v953 = vpack.c.b16 %v937, %v936
    %970 = vmatprep.subr.bf16.mxu0 0
    %971 = vmatpush1.bf16.msra.mxu0 %v938
    %972 = vmatprep.subr.bf16.mxu0 0
    %973 = vmatpush1.bf16.msra.mxu0 %v939
    %974 = vmatprep.subr.bf16.mxu0 0
    %975 = vmatpush1.bf16.msra.mxu0 %v940
    %976 = vmatprep.subr.bf16.mxu0 0
    %977 = vmatpush1.bf16.msra.mxu0 %v941
    %978 = vmatprep.subr.bf16.mxu0 0
    %979 = vmatpush1.bf16.msra.mxu0 %v942
    %980 = vmatprep.subr.bf16.mxu0 0
    %981 = vmatpush1.bf16.msra.mxu0 %v943
    %982 = vmatprep.subr.bf16.mxu0 0
    %983 = vmatpush1.bf16.msra.mxu0 %v944
    %984 = vmatprep.subr.bf16.mxu0 0
    %985 = vmatpush1.bf16.msra.mxu0 %v945
    %986 = vmatprep.subr.bf16.mxu0 0
    %987 = vmatpush1.bf16.msra.mxu0 %v946
    %988 = vmatprep.subr.bf16.mxu0 0
    %989 = vmatpush1.bf16.msra.mxu0 %v947
    %990 = vmatprep.subr.bf16.mxu0 0
    %991 = vmatpush1.bf16.msra.mxu0 %v948
    %992 = vmatprep.subr.bf16.mxu0 0
    %993 = vmatpush1.bf16.msra.mxu0 %v949
    %994 = vmatprep.subr.bf16.mxu0 0
    %995 = vmatpush1.bf16.msra.mxu0 %v950
    %996 = vmatprep.subr.bf16.mxu0 0
    %997 = vmatpush1.bf16.msra.mxu0 %v951
    %998 = vmatprep.subr.bf16.mxu0 0
    %999 = vmatpush1.bf16.msra.mxu0 %v952
    %1000 = vmatprep.subr.bf16.mxu0 0
    %1001 = vmatpush1.bf16.msra.mxu0 %v953
    %1002 = vmatprep.mubr.bf16.mxu0 %v779
    %1003 = vmatmul.mubr.bf16.gmra.mrb[0].mxu0 %v778
    %v1004 = vpop.f32.mrb[0].mxu0
    %v1005 = vadd.f32 0.0, %v1004
    %v1006 = vpop.f32.mrb[0].mxu0
    %v1007 = vpop.f32.mrb[0].mxu0
    %v1008 = vadd.f32 0.0, %v1007
    %v1009 = vpop.f32.mrb[0].mxu0
    %1010 = vmatprep.mubr.bf16.mxu0 %v781
    %1011 = vmatmul.mubr.bf16.gmra.mrb[0].mxu0 %v780
    %v1012 = vpop.f32.mrb[0].mxu0
    %v1013 = vadd.f32 0.0, %v1012
    %v1014 = vpop.f32.mrb[0].mxu0
    %v1015 = vpop.f32.mrb[0].mxu0
    %v1016 = vadd.f32 0.0, %v1015
    %v1017 = vpop.f32.mrb[0].mxu0
    %1018 = vmatprep.mubr.bf16.mxu0 %v783
    %1019 = vmatmul.mubr.bf16.gmra.mrb[0].mxu0 %v782
    %v1020 = vpop.f32.mrb[0].mxu0
    %v1021 = vadd.f32 0.0, %v1020
    %v1022 = vpop.f32.mrb[0].mxu0
    %v1023 = vpop.f32.mrb[0].mxu0
    %v1024 = vadd.f32 0.0, %v1023
    %v1025 = vpop.f32.mrb[0].mxu0
    %1026 = vmatprep.mubr.bf16.mxu0 %v785
    %1027 = vmatmul.mubr.bf16.gmra.mrb[0].mxu0 %v784
    %v1028 = vpop.f32.mrb[0].mxu0
    %v1029 = vadd.f32 0.0, %v1028
    %v1030 = vpop.f32.mrb[0].mxu0
    %v1031 = vpop.f32.mrb[0].mxu0
    %v1032 = vadd.f32 0.0, %v1031
    %v1033 = vpop.f32.mrb[0].mxu0
    %1034 = vmatprep.mubr.bf16.mxu0 %v787
    %1035 = vmatmul.mubr.bf16.gmra.mrb[0].mxu0 %v786
    %v1036 = vpop.f32.mrb[0].mxu0
    %v1037 = vadd.f32 0.0, %v1036
    %v1038 = vpop.f32.mrb[0].mxu0
    %v1039 = vpop.f32.mrb[0].mxu0
    %v1040 = vadd.f32 0.0, %v1039
    %v1041 = vpop.f32.mrb[0].mxu0
    %1042 = vmatprep.mubr.bf16.mxu0 %v789
    %1043 = vmatmul.mubr.bf16.gmra.mrb[0].mxu0 %v788
    %v1044 = vpop.f32.mrb[0].mxu0
    %v1045 = vadd.f32 0.0, %v1044
    %v1046 = vpop.f32.mrb[0].mxu0
    %v1047 = vpop.f32.mrb[0].mxu0
    %v1048 = vadd.f32 0.0, %v1047
    %v1049 = vpop.f32.mrb[0].mxu0
    %1050 = vmatprep.mubr.bf16.mxu0 %v791
    %1051 = vmatmul.mubr.bf16.gmra.mrb[0].mxu0 %v790
    %v1052 = vpop.f32.mrb[0].mxu0
    %v1053 = vadd.f32 0.0, %v1052
    %v1054 = vpop.f32.mrb[0].mxu0
    %v1055 = vpop.f32.mrb[0].mxu0
    %v1056 = vadd.f32 0.0, %v1055
    %v1057 = vpop.f32.mrb[0].mxu0
    %1058 = vmatprep.mubr.bf16.mxu0 %v793
    %1059 = vmatmul.mubr.bf16.gmra.mrb[0].mxu0 %v792
    %v1060 = vpop.f32.mrb[0].mxu0
    %v1061 = vadd.f32 0.0, %v1060
    %v1062 = vpop.f32.mrb[0].mxu0
    %v1063 = vpop.f32.mrb[0].mxu0
    %v1064 = vadd.f32 0.0, %v1063
    %v1065 = vpop.f32.mrb[0].mxu0
    %1066 = vmatprep.mubr.bf16.mxu0 %v795
    %1067 = vmatmul.mubr.bf16.gmra.mrb[0].mxu0 %v794
    %v1068 = vpop.f32.mrb[0].mxu0
    %v1069 = vadd.f32 0.0, %v1068
    %v1070 = vpop.f32.mrb[0].mxu0
    %v1071 = vpop.f32.mrb[0].mxu0
    %v1072 = vadd.f32 0.0, %v1071
    %v1073 = vpop.f32.mrb[0].mxu0
    %1074 = vmatprep.mubr.bf16.mxu0 %v797
    %1075 = vmatmul.mubr.bf16.gmra.mrb[0].mxu0 %v796
    %v1076 = vpop.f32.mrb[0].mxu0
    %v1077 = vadd.f32 0.0, %v1076
    %v1078 = vpop.f32.mrb[0].mxu0
    %v1079 = vpop.f32.mrb[0].mxu0
    %v1080 = vadd.f32 0.0, %v1079
    %v1081 = vpop.f32.mrb[0].mxu0
    %1082 = vmatprep.mubr.bf16.mxu0 %v799
    %1083 = vmatmul.mubr.bf16.gmra.mrb[0].mxu0 %v798
    %v1084 = vpop.f32.mrb[0].mxu0
    %v1085 = vadd.f32 0.0, %v1084
    %v1086 = vpop.f32.mrb[0].mxu0
    %v1087 = vpop.f32.mrb[0].mxu0
    %v1088 = vadd.f32 0.0, %v1087
    %v1089 = vpop.f32.mrb[0].mxu0
    %1090 = vmatprep.mubr.bf16.mxu0 %v801
    %1091 = vmatmul.mubr.bf16.gmra.mrb[0].mxu0 %v800
    %v1092 = vpop.f32.mrb[0].mxu0
    %v1093 = vadd.f32 0.0, %v1092
    %v1094 = vpop.f32.mrb[0].mxu0
    %v1095 = vpop.f32.mrb[0].mxu0
    %v1096 = vadd.f32 0.0, %v1095
    %v1097 = vpop.f32.mrb[0].mxu0
    %1098 = vmatprep.mubr.bf16.mxu0 %v803
    %1099 = vmatmul.mubr.bf16.gmra.mrb[0].mxu0 %v802
    %v1100 = vpop.f32.mrb[0].mxu0
    %v1101 = vadd.f32 0.0, %v1100
    %v1102 = vpop.f32.mrb[0].mxu0
    %v1103 = vpop.f32.mrb[0].mxu0
    %v1104 = vadd.f32 0.0, %v1103
    %v1105 = vpop.f32.mrb[0].mxu0
    %1106 = vmatprep.mubr.bf16.mxu0 %v805
    %1107 = vmatmul.mubr.bf16.gmra.mrb[0].mxu0 %v804
    %v1108 = vpop.f32.mrb[0].mxu0
    %v1109 = vadd.f32 0.0, %v1108
    %v1110 = vpop.f32.mrb[0].mxu0
    %v1111 = vpop.f32.mrb[0].mxu0
    %v1112 = vadd.f32 0.0, %v1111
    %v1113 = vpop.f32.mrb[0].mxu0
    %1114 = vmatprep.mubr.bf16.mxu0 %v807
    %1115 = vmatmul.mubr.bf16.gmra.mrb[0].mxu0 %v806
    %v1116 = vpop.f32.mrb[0].mxu0
    %v1117 = vadd.f32 0.0, %v1116
    %v1118 = vpop.f32.mrb[0].mxu0
    %v1119 = vpop.f32.mrb[0].mxu0
    %v1120 = vadd.f32 0.0, %v1119
    %v1121 = vpop.f32.mrb[0].mxu0
    %1122 = vmatprep.mubr.bf16.mxu0 %v809
    %1123 = vmatmul.mubr.bf16.gmra.mrb[0].mxu0 %v808
    %v1124 = vpop.f32.mrb[0].mxu0
    %v1125 = vadd.f32 0.0, %v1124
    %v1126 = vpop.f32.mrb[0].mxu0
    %v1127 = vpop.f32.mrb[0].mxu0
    %v1128 = vadd.f32 0.0, %v1127
    %v1129 = vpop.f32.mrb[0].mxu0
    %1130 = vmatprep.mubr.bf16.mxu0 %v811
    %1131 = vmatmul.mubr.bf16.gmra.mrb[0].mxu0 %v810
    %v1132 = vpop.f32.mrb[0].mxu0
    %v1133 = vadd.f32 0.0, %v1132
    %v1134 = vpop.f32.mrb[0].mxu0
    %v1135 = vpop.f32.mrb[0].mxu0
    %v1136 = vadd.f32 0.0, %v1135
    %v1137 = vpop.f32.mrb[0].mxu0
    %1138 = vmatprep.mubr.bf16.mxu0 %v813
    %1139 = vmatmul.mubr.bf16.gmra.mrb[0].mxu0 %v812
    %v1140 = vpop.f32.mrb[0].mxu0
    %v1141 = vadd.f32 0.0, %v1140
    %v1142 = vpop.f32.mrb[0].mxu0
    %v1143 = vpop.f32.mrb[0].mxu0
    %v1144 = vadd.f32 0.0, %v1143
    %v1145 = vpop.f32.mrb[0].mxu0
    %1146 = vmatprep.mubr.bf16.mxu0 %v815
    %1147 = vmatmul.mubr.bf16.gmra.mrb[0].mxu0 %v814
    %v1148 = vpop.f32.mrb[0].mxu0
    %v1149 = vadd.f32 0.0, %v1148
    %v1150 = vpop.f32.mrb[0].mxu0
    %v1151 = vpop.f32.mrb[0].mxu0
    %v1152 = vadd.f32 0.0, %v1151
    %v1153 = vpop.f32.mrb[0].mxu0
    %1154 = vmatprep.mubr.bf16.mxu0 %v817
    %1155 = vmatmul.mubr.bf16.gmra.mrb[0].mxu0 %v816
    %v1156 = vpop.f32.mrb[0].mxu0
    %v1157 = vadd.f32 0.0, %v1156
    %v1158 = vpop.f32.mrb[0].mxu0
    %v1159 = vpop.f32.mrb[0].mxu0
    %v1160 = vadd.f32 0.0, %v1159
    %v1161 = vpop.f32.mrb[0].mxu0
    %1162 = vmatprep.mubr.bf16.mxu0 %v819
    %1163 = vmatmul.mubr.bf16.gmra.mrb[0].mxu0 %v818
    %v1164 = vpop.f32.mrb[0].mxu0
    %v1165 = vadd.f32 0.0, %v1164
    %v1166 = vpop.f32.mrb[0].mxu0
    %v1167 = vpop.f32.mrb[0].mxu0
    %v1168 = vadd.f32 0.0, %v1167
    %v1169 = vpop.f32.mrb[0].mxu0
    %1170 = vmatprep.mubr.bf16.mxu0 %v821
    %1171 = vmatmul.mubr.bf16.gmra.mrb[0].mxu0 %v820
    %v1172 = vpop.f32.mrb[0].mxu0
    %v1173 = vadd.f32 0.0, %v1172
    %v1174 = vpop.f32.mrb[0].mxu0
    %v1175 = vpop.f32.mrb[0].mxu0
    %v1176 = vadd.f32 0.0, %v1175
    %v1177 = vpop.f32.mrb[0].mxu0
    %1178 = vmatprep.mubr.bf16.mxu0 %v823
    %1179 = vmatmul.mubr.bf16.gmra.mrb[0].mxu0 %v822
    %v1180 = vpop.f32.mrb[0].mxu0
    %v1181 = vadd.f32 0.0, %v1180
    %v1182 = vpop.f32.mrb[0].mxu0
    %v1183 = vpop.f32.mrb[0].mxu0
    %v1184 = vadd.f32 0.0, %v1183
    %v1185 = vpop.f32.mrb[0].mxu0
    %1186 = vmatprep.mubr.bf16.mxu0 %v825
    %1187 = vmatmul.mubr.bf16.gmra.mrb[0].mxu0 %v824
    %v1188 = vpop.f32.mrb[0].mxu0
    %v1189 = vadd.f32 0.0, %v1188
    %v1190 = vpop.f32.mrb[0].mxu0
    %v1191 = vpop.f32.mrb[0].mxu0
    %v1192 = vadd.f32 0.0, %v1191
    %v1193 = vpop.f32.mrb[0].mxu0
    %1194 = vmatprep.mubr.bf16.mxu0 %v827
    %1195 = vmatmul.mubr.bf16.gmra.mrb[0].mxu0 %v826
    %v1196 = vpop.f32.mrb[0].mxu0
    %v1197 = vadd.f32 0.0, %v1196
    %v1198 = vpop.f32.mrb[0].mxu0
    %v1199 = vpop.f32.mrb[0].mxu0
    %v1200 = vadd.f32 0.0, %v1199
    %v1201 = vpop.f32.mrb[0].mxu0
    %1202 = vmatprep.mubr.bf16.mxu0 %v829
    %1203 = vmatmul.mubr.bf16.gmra.mrb[0].mxu0 %v828
    %v1204 = vpop.f32.mrb[0].mxu0
    %v1205 = vadd.f32 0.0, %v1204
    %v1206 = vpop.f32.mrb[0].mxu0
    %v1207 = vpop.f32.mrb[0].mxu0
    %v1208 = vadd.f32 0.0, %v1207
    %v1209 = vpop.f32.mrb[0].mxu0
    %1210 = vmatprep.mubr.bf16.mxu0 %v831
    %1211 = vmatmul.mubr.bf16.gmra.mrb[0].mxu0 %v830
    %v1212 = vpop.f32.mrb[0].mxu0
    %v1213 = vadd.f32 0.0, %v1212
    %v1214 = vpop.f32.mrb[0].mxu0
    %v1215 = vpop.f32.mrb[0].mxu0
    %v1216 = vadd.f32 0.0, %v1215
    %v1217 = vpop.f32.mrb[0].mxu0
    %1218 = vmatprep.mubr.bf16.mxu0 %v833
    %1219 = vmatmul.mubr.bf16.gmra.mrb[0].mxu0 %v832
    %v1220 = vpop.f32.mrb[0].mxu0
    %v1221 = vadd.f32 0.0, %v1220
    %v1222 = vpop.f32.mrb[0].mxu0
    %v1223 = vpop.f32.mrb[0].mxu0
    %v1224 = vadd.f32 0.0, %v1223
    %v1225 = vpop.f32.mrb[0].mxu0
    %1226 = vmatprep.mubr.bf16.mxu0 %v835
    %1227 = vmatmul.mubr.bf16.gmra.mrb[0].mxu0 %v834
    %v1228 = vpop.f32.mrb[0].mxu0
    %v1229 = vadd.f32 0.0, %v1228
    %v1230 = vpop.f32.mrb[0].mxu0
    %v1231 = vpop.f32.mrb[0].mxu0
    %v1232 = vadd.f32 0.0, %v1231
    %v1233 = vpop.f32.mrb[0].mxu0
    %1234 = vmatprep.mubr.bf16.mxu0 %v837
    %1235 = vmatmul.mubr.bf16.gmra.mrb[0].mxu0 %v836
    %v1236 = vpop.f32.mrb[0].mxu0
    %v1237 = vadd.f32 0.0, %v1236
    %v1238 = vpop.f32.mrb[0].mxu0
    %v1239 = vpop.f32.mrb[0].mxu0
    %v1240 = vadd.f32 0.0, %v1239
    %v1241 = vpop.f32.mrb[0].mxu0
    %1242 = vmatprep.mubr.bf16.mxu0 %v839
    %1243 = vmatmul.mubr.bf16.gmra.mrb[0].mxu0 %v838
    %v1244 = vpop.f32.mrb[0].mxu0
    %v1245 = vadd.f32 0.0, %v1244
    %v1246 = vpop.f32.mrb[0].mxu0
    %v1247 = vpop.f32.mrb[0].mxu0
    %v1248 = vadd.f32 0.0, %v1247
    %v1249 = vpop.f32.mrb[0].mxu0
    %1250 = vmatprep.mubr.bf16.mxu0 %v841
    %1251 = vmatmul.mubr.bf16.gmra.mrb[0].mxu0 %v840
    %v1252 = vpop.f32.mrb[0].mxu0
    %v1253 = vadd.f32 0.0, %v1252
    %v1254 = vpop.f32.mrb[0].mxu0
    %v1255 = vpop.f32.mrb[0].mxu0
    %v1256 = vadd.f32 0.0, %v1255
    %v1257 = vpop.f32.mrb[0].mxu0
    %1258 = vdwg.mxu0
    %v1259 = vpack.c.bf16 %v1008, %v1005
    %v1260 = vpack.c.bf16 %v1016, %v1013
    %v1261 = vpack.c.bf16 %v1024, %v1021
    %v1262 = vpack.c.bf16 %v1032, %v1029
    %v1263 = vpack.c.bf16 %v1040, %v1037
    %v1264 = vpack.c.bf16 %v1048, %v1045
    %v1265 = vpack.c.bf16 %v1056, %v1053
    %v1266 = vpack.c.bf16 %v1064, %v1061
    %v1267 = vpack.c.bf16 %v1072, %v1069
    %v1268 = vpack.c.bf16 %v1080, %v1077
    %v1269 = vpack.c.bf16 %v1088, %v1085
    %v1270 = vpack.c.bf16 %v1096, %v1093
    %v1271 = vpack.c.bf16 %v1104, %v1101
    %v1272 = vpack.c.bf16 %v1112, %v1109
    %v1273 = vpack.c.bf16 %v1120, %v1117
    %v1274 = vpack.c.bf16 %v1128, %v1125
    %v1275 = vpack.c.bf16 %v1136, %v1133
    %v1276 = vpack.c.bf16 %v1144, %v1141
    %v1277 = vpack.c.bf16 %v1152, %v1149
    %v1278 = vpack.c.bf16 %v1160, %v1157
    %v1279 = vpack.c.bf16 %v1168, %v1165
    %v1280 = vpack.c.bf16 %v1176, %v1173
    %v1281 = vpack.c.bf16 %v1184, %v1181
    %v1282 = vpack.c.bf16 %v1192, %v1189
    %v1283 = vpack.c.bf16 %v1200, %v1197
    %v1284 = vpack.c.bf16 %v1208, %v1205
    %v1285 = vpack.c.bf16 %v1216, %v1213
    %v1286 = vpack.c.bf16 %v1224, %v1221
    %v1287 = vpack.c.bf16 %v1232, %v1229
    %v1288 = vpack.c.bf16 %v1240, %v1237
    %v1289 = vpack.c.bf16 %v1248, %v1245
    %v1290 = vpack.c.bf16 %v1256, %v1253
    %v1291 = vld [vmem:[%s4] sm:$0x1]
    %v1293 = vpack.i.b16 %v1291, %v1291
    %v1295 = vlaneseq
    %v1296 = vshrl.u32 %v1295, 7
    %v1297 = vsub.s32 0, %v1296
    %v1298 = vrot.slane %v1293, %v1297
    %v1299 = vadd.bf16 %v1259, %v1298
    %v1300 = vadd.bf16 %v1260, %v1298
    %v1301 = vadd.bf16 %v1261, %v1298
    %v1302 = vadd.bf16 %v1262, %v1298
    %v1303 = vadd.bf16 %v1263, %v1298
    %v1304 = vadd.bf16 %v1264, %v1298
    %v1305 = vadd.bf16 %v1265, %v1298
    %v1306 = vadd.bf16 %v1266, %v1298
    %v1307 = vadd.bf16 %v1267, %v1298
    %v1308 = vadd.bf16 %v1268, %v1298
    %v1309 = vadd.bf16 %v1269, %v1298
    %v1310 = vadd.bf16 %v1270, %v1298
    %v1311 = vadd.bf16 %v1271, %v1298
    %v1312 = vadd.bf16 %v1272, %v1298
    %v1313 = vadd.bf16 %v1273, %v1298
    %v1314 = vadd.bf16 %v1274, %v1298
    %v1315 = vadd.bf16 %v1275, %v1298
    %v1316 = vadd.bf16 %v1276, %v1298
    %v1317 = vadd.bf16 %v1277, %v1298
    %v1318 = vadd.bf16 %v1278, %v1298
    %v1319 = vadd.bf16 %v1279, %v1298
    %v1320 = vadd.bf16 %v1280, %v1298
    %v1321 = vadd.bf16 %v1281, %v1298
    %v1322 = vadd.bf16 %v1282, %v1298
    %v1323 = vadd.bf16 %v1283, %v1298
    %v1324 = vadd.bf16 %v1284, %v1298
    %v1325 = vadd.bf16 %v1285, %v1298
    %v1326 = vadd.bf16 %v1286, %v1298
    %v1327 = vadd.bf16 %v1287, %v1298
    %v1328 = vadd.bf16 %v1288, %v1298
    %v1329 = vadd.bf16 %v1289, %v1298
    %v1330 = vadd.bf16 %v1290, %v1298
    %v1331 = vmax.bf16 %v1299, 0
    %v1332 = vmax.bf16 %v1300, 0
    %v1333 = vmax.bf16 %v1301, 0
    %v1334 = vmax.bf16 %v1302, 0
    %v1335 = vmax.bf16 %v1303, 0
    %v1336 = vmax.bf16 %v1304, 0
    %v1337 = vmax.bf16 %v1305, 0
    %v1338 = vmax.bf16 %v1306, 0
    %v1339 = vmax.bf16 %v1307, 0
    %v1340 = vmax.bf16 %v1308, 0
    %v1341 = vmax.bf16 %v1309, 0
    %v1342 = vmax.bf16 %v1310, 0
    %v1343 = vmax.bf16 %v1311, 0
    %v1344 = vmax.bf16 %v1312, 0
    %v1345 = vmax.bf16 %v1313, 0
    %v1346 = vmax.bf16 %v1314, 0
    %v1347 = vmax.bf16 %v1315, 0
    %v1348 = vmax.bf16 %v1316, 0
    %v1349 = vmax.bf16 %v1317, 0
    %v1350 = vmax.bf16 %v1318, 0
    %v1351 = vmax.bf16 %v1319, 0
    %v1352 = vmax.bf16 %v1320, 0
    %v1353 = vmax.bf16 %v1321, 0
    %v1354 = vmax.bf16 %v1322, 0
    %v1355 = vmax.bf16 %v1323, 0
    %v1356 = vmax.bf16 %v1324, 0
    %v1357 = vmax.bf16 %v1325, 0
    %v1358 = vmax.bf16 %v1326, 0
    %v1359 = vmax.bf16 %v1327, 0
    %v1360 = vmax.bf16 %v1328, 0
    %v1361 = vmax.bf16 %v1329, 0
    %v1362 = vmax.bf16 %v1330, 0
    %v1363 = vld [vmem:[%s5] sm:$0xf]
    %v1364 = vld [vmem:[%s5 + $0x4] sm:$0xf]
    %v1365 = vld [vmem:[%s5 + $0x8] sm:$0xf]
    %v1366 = vld [vmem:[%s5 + $0xc] sm:$0xf]
    %v1367 = vld [vmem:[%s5 + $0x10] sm:$0xf]
    %v1368 = vld [vmem:[%s5 + $0x14] sm:$0xf]
    %v1369 = vld [vmem:[%s5 + $0x18] sm:$0xf]
    %v1370 = vld [vmem:[%s5 + $0x1c] sm:$0xf]
    %v1371 = vld [vmem:[%s5 + $0x20] sm:$0xf]
    %v1372 = vld [vmem:[%s5 + $0x24] sm:$0xf]
    %v1373 = vld [vmem:[%s5 + $0x28] sm:$0xf]
    %v1374 = vld [vmem:[%s5 + $0x2c] sm:$0xf]
    %v1375 = vld [vmem:[%s5 + $0x30] sm:$0xf]
    %v1376 = vld [vmem:[%s5 + $0x34] sm:$0xf]
    %v1377 = vld [vmem:[%s5 + $0x38] sm:$0xf]
    %v1378 = vld [vmem:[%s5 + $0x3c] sm:$0xf]
    %v1395 = vunpack.c.l.b16 %v1363
    %v1396 = vunpack.c.l.b16 %v1364
    %v1397 = vunpack.c.l.b16 %v1365
    %v1398 = vunpack.c.l.b16 %v1366
    %v1399 = vunpack.c.l.b16 %v1367
    %v1400 = vunpack.c.l.b16 %v1368
    %v1401 = vunpack.c.l.b16 %v1369
    %v1402 = vunpack.c.l.b16 %v1370
    %v1403 = vunpack.c.l.b16 %v1371
    %v1404 = vunpack.c.l.b16 %v1372
    %v1405 = vunpack.c.l.b16 %v1373
    %v1406 = vunpack.c.l.b16 %v1374
    %v1407 = vunpack.c.l.b16 %v1375
    %v1408 = vunpack.c.l.b16 %v1376
    %v1409 = vunpack.c.l.b16 %v1377
    %v1410 = vunpack.c.l.b16 %v1378
    %v1411 = vpack.c.b16 %v1396, %v1395
    %v1412 = vpack.c.b16 %v1398, %v1397
    %v1413 = vpack.c.b16 %v1400, %v1399
    %v1414 = vpack.c.b16 %v1402, %v1401
    %v1415 = vpack.c.b16 %v1404, %v1403
    %v1416 = vpack.c.b16 %v1406, %v1405
    %v1417 = vpack.c.b16 %v1408, %v1407
    %v1418 = vpack.c.b16 %v1410, %v1409
    %1427 = vmatprep.subr.bf16.mxu0 0
    %1428 = vmatpush1.bf16.msra.mxu0 %v1411
    %1429 = vmatprep.subr.bf16.mxu0 0
    %1430 = vmatpush1.bf16.msra.mxu0 %v1412
    %1431 = vmatprep.subr.bf16.mxu0 0
    %1432 = vmatpush1.bf16.msra.mxu0 %v1413
    %1433 = vmatprep.subr.bf16.mxu0 0
    %1434 = vmatpush1.bf16.msra.mxu0 %v1414
    %1435 = vmatprep.subr.bf16.mxu0 0
    %1436 = vmatpush1.bf16.msra.mxu0 %v1415
    %1437 = vmatprep.subr.bf16.mxu0 0
    %1438 = vmatpush1.bf16.msra.mxu0 %v1416
    %1439 = vmatprep.subr.bf16.mxu0 0
    %1440 = vmatpush1.bf16.msra.mxu0 %v1417
    %1441 = vmatprep.subr.bf16.mxu0 0
    %1442 = vmatpush1.bf16.msra.mxu0 %v1418
    %1443 = vmatprep.subr.bf16.mxu0 0
    %1444 = vmatpush1.bf16.msra.mxu0 0
    %1445 = vmatprep.subr.bf16.mxu0 0
    %1446 = vmatpush1.bf16.msra.mxu0 0
    %1447 = vmatprep.subr.bf16.mxu0 0
    %1448 = vmatpush1.bf16.msra.mxu0 0
    %1449 = vmatprep.subr.bf16.mxu0 0
    %1450 = vmatpush1.bf16.msra.mxu0 0
    %1451 = vmatprep.subr.bf16.mxu0 0
    %1452 = vmatpush1.bf16.msra.mxu0 0
    %1453 = vmatprep.subr.bf16.mxu0 0
    %1454 = vmatpush1.bf16.msra.mxu0 0
    %1455 = vmatprep.subr.bf16.mxu0 0
    %1456 = vmatpush1.bf16.msra.mxu0 0
    %1457 = vmatprep.subr.bf16.mxu0 0
    %1458 = vmatpush1.bf16.msra.mxu0 0
    %1459 = vmatprep.mubr.bf16.mxu0 0
    %1460 = vmatmul.mubr.bf16.gmra.mrb[0].mxu0 %v1331
    %v1461 = vpop.f32.mrb[0].mxu0
    %v1462 = vadd.f32 0.0, %v1461
    %v1463 = vpop.f32.mrb[0].mxu0
    %v1464 = vpop.f32.mrb[0].mxu0
    %v1465 = vadd.f32 0.0, %v1464
    %v1466 = vpop.f32.mrb[0].mxu0
    %1467 = vmatprep.mubr.bf16.mxu0 0
    %1468 = vmatmul.mubr.bf16.gmra.mrb[0].mxu0 %v1332
    %v1469 = vpop.f32.mrb[0].mxu0
    %v1470 = vadd.f32 0.0, %v1469
    %v1471 = vpop.f32.mrb[0].mxu0
    %v1472 = vpop.f32.mrb[0].mxu0
    %v1473 = vadd.f32 0.0, %v1472
    %v1474 = vpop.f32.mrb[0].mxu0
    %1475 = vmatprep.mubr.bf16.mxu0 0
    %1476 = vmatmul.mubr.bf16.gmra.mrb[0].mxu0 %v1333
    %v1477 = vpop.f32.mrb[0].mxu0
    %v1478 = vadd.f32 0.0, %v1477
    %v1479 = vpop.f32.mrb[0].mxu0
    %v1480 = vpop.f32.mrb[0].mxu0
    %v1481 = vadd.f32 0.0, %v1480
    %v1482 = vpop.f32.mrb[0].mxu0
    %1483 = vmatprep.mubr.bf16.mxu0 0
    %1484 = vmatmul.mubr.bf16.gmra.mrb[0].mxu0 %v1334
    %v1485 = vpop.f32.mrb[0].mxu0
    %v1486 = vadd.f32 0.0, %v1485
    %v1487 = vpop.f32.mrb[0].mxu0
    %v1488 = vpop.f32.mrb[0].mxu0
    %v1489 = vadd.f32 0.0, %v1488
    %v1490 = vpop.f32.mrb[0].mxu0
    %1491 = vmatprep.mubr.bf16.mxu0 0
    %1492 = vmatmul.mubr.bf16.gmra.mrb[0].mxu0 %v1335
    %v1493 = vpop.f32.mrb[0].mxu0
    %v1494 = vadd.f32 0.0, %v1493
    %v1495 = vpop.f32.mrb[0].mxu0
    %v1496 = vpop.f32.mrb[0].mxu0
    %v1497 = vadd.f32 0.0, %v1496
    %v1498 = vpop.f32.mrb[0].mxu0
    %1499 = vmatprep.mubr.bf16.mxu0 0
    %1500 = vmatmul.mubr.bf16.gmra.mrb[0].mxu0 %v1336
    %v1501 = vpop.f32.mrb[0].mxu0
    %v1502 = vadd.f32 0.0, %v1501
    %v1503 = vpop.f32.mrb[0].mxu0
    %v1504 = vpop.f32.mrb[0].mxu0
    %v1505 = vadd.f32 0.0, %v1504
    %v1506 = vpop.f32.mrb[0].mxu0
    %1507 = vmatprep.mubr.bf16.mxu0 0
    %1508 = vmatmul.mubr.bf16.gmra.mrb[0].mxu0 %v1337
    %v1509 = vpop.f32.mrb[0].mxu0
    %v1510 = vadd.f32 0.0, %v1509
    %v1511 = vpop.f32.mrb[0].mxu0
    %v1512 = vpop.f32.mrb[0].mxu0
    %v1513 = vadd.f32 0.0, %v1512
    %v1514 = vpop.f32.mrb[0].mxu0
    %1515 = vmatprep.mubr.bf16.mxu0 0
    %1516 = vmatmul.mubr.bf16.gmra.mrb[0].mxu0 %v1338
    %v1517 = vpop.f32.mrb[0].mxu0
    %v1518 = vadd.f32 0.0, %v1517
    %v1519 = vpop.f32.mrb[0].mxu0
    %v1520 = vpop.f32.mrb[0].mxu0
    %v1521 = vadd.f32 0.0, %v1520
    %v1522 = vpop.f32.mrb[0].mxu0
    %1523 = vmatprep.mubr.bf16.mxu0 0
    %1524 = vmatmul.mubr.bf16.gmra.mrb[0].mxu0 %v1339
    %v1525 = vpop.f32.mrb[0].mxu0
    %v1526 = vadd.f32 0.0, %v1525
    %v1527 = vpop.f32.mrb[0].mxu0
    %v1528 = vpop.f32.mrb[0].mxu0
    %v1529 = vadd.f32 0.0, %v1528
    %v1530 = vpop.f32.mrb[0].mxu0
    %1531 = vmatprep.mubr.bf16.mxu0 0
    %1532 = vmatmul.mubr.bf16.gmra.mrb[0].mxu0 %v1340
    %v1533 = vpop.f32.mrb[0].mxu0
    %v1534 = vadd.f32 0.0, %v1533
    %v1535 = vpop.f32.mrb[0].mxu0
    %v1536 = vpop.f32.mrb[0].mxu0
    %v1537 = vadd.f32 0.0, %v1536
    %v1538 = vpop.f32.mrb[0].mxu0
    %1539 = vmatprep.mubr.bf16.mxu0 0
    %1540 = vmatmul.mubr.bf16.gmra.mrb[0].mxu0 %v1341
    %v1541 = vpop.f32.mrb[0].mxu0
    %v1542 = vadd.f32 0.0, %v1541
    %v1543 = vpop.f32.mrb[0].mxu0
    %v1544 = vpop.f32.mrb[0].mxu0
    %v1545 = vadd.f32 0.0, %v1544
    %v1546 = vpop.f32.mrb[0].mxu0
    %1547 = vmatprep.mubr.bf16.mxu0 0
    %1548 = vmatmul.mubr.bf16.gmra.mrb[0].mxu0 %v1342
    %v1549 = vpop.f32.mrb[0].mxu0
    %v1550 = vadd.f32 0.0, %v1549
    %v1551 = vpop.f32.mrb[0].mxu0
    %v1552 = vpop.f32.mrb[0].mxu0
    %v1553 = vadd.f32 0.0, %v1552
    %v1554 = vpop.f32.mrb[0].mxu0
    %1555 = vmatprep.mubr.bf16.mxu0 0
    %1556 = vmatmul.mubr.bf16.gmra.mrb[0].mxu0 %v1343
    %v1557 = vpop.f32.mrb[0].mxu0
    %v1558 = vadd.f32 0.0, %v1557
    %v1559 = vpop.f32.mrb[0].mxu0
    %v1560 = vpop.f32.mrb[0].mxu0
    %v1561 = vadd.f32 0.0, %v1560
    %v1562 = vpop.f32.mrb[0].mxu0
    %1563 = vmatprep.mubr.bf16.mxu0 0
    %1564 = vmatmul.mubr.bf16.gmra.mrb[0].mxu0 %v1344
    %v1565 = vpop.f32.mrb[0].mxu0
    %v1566 = vadd.f32 0.0, %v1565
    %v1567 = vpop.f32.mrb[0].mxu0
    %v1568 = vpop.f32.mrb[0].mxu0
    %v1569 = vadd.f32 0.0, %v1568
    %v1570 = vpop.f32.mrb[0].mxu0
    %1571 = vmatprep.mubr.bf16.mxu0 0
    %1572 = vmatmul.mubr.bf16.gmra.mrb[0].mxu0 %v1345
    %v1573 = vpop.f32.mrb[0].mxu0
    %v1574 = vadd.f32 0.0, %v1573
    %v1575 = vpop.f32.mrb[0].mxu0
    %v1576 = vpop.f32.mrb[0].mxu0
    %v1577 = vadd.f32 0.0, %v1576
    %v1578 = vpop.f32.mrb[0].mxu0
    %1579 = vmatprep.mubr.bf16.mxu0 0
    %1580 = vmatmul.mubr.bf16.gmra.mrb[0].mxu0 %v1346
    %v1581 = vpop.f32.mrb[0].mxu0
    %v1582 = vadd.f32 0.0, %v1581
    %v1583 = vpop.f32.mrb[0].mxu0
    %v1584 = vpop.f32.mrb[0].mxu0
    %v1585 = vadd.f32 0.0, %v1584
    %v1586 = vpop.f32.mrb[0].mxu0
    %1587 = vmatprep.mubr.bf16.mxu0 0
    %1588 = vmatmul.mubr.bf16.gmra.mrb[0].mxu0 %v1347
    %v1589 = vpop.f32.mrb[0].mxu0
    %v1590 = vadd.f32 0.0, %v1589
    %v1591 = vpop.f32.mrb[0].mxu0
    %v1592 = vpop.f32.mrb[0].mxu0
    %v1593 = vadd.f32 0.0, %v1592
    %v1594 = vpop.f32.mrb[0].mxu0
    %1595 = vmatprep.mubr.bf16.mxu0 0
    %1596 = vmatmul.mubr.bf16.gmra.mrb[0].mxu0 %v1348
    %v1597 = vpop.f32.mrb[0].mxu0
    %v1598 = vadd.f32 0.0, %v1597
    %v1599 = vpop.f32.mrb[0].mxu0
    %v1600 = vpop.f32.mrb[0].mxu0
    %v1601 = vadd.f32 0.0, %v1600
    %v1602 = vpop.f32.mrb[0].mxu0
    %1603 = vmatprep.mubr.bf16.mxu0 0
    %1604 = vmatmul.mubr.bf16.gmra.mrb[0].mxu0 %v1349
    %v1605 = vpop.f32.mrb[0].mxu0
    %v1606 = vadd.f32 0.0, %v1605
    %v1607 = vpop.f32.mrb[0].mxu0
    %v1608 = vpop.f32.mrb[0].mxu0
    %v1609 = vadd.f32 0.0, %v1608
    %v1610 = vpop.f32.mrb[0].mxu0
    %1611 = vmatprep.mubr.bf16.mxu0 0
    %1612 = vmatmul.mubr.bf16.gmra.mrb[0].mxu0 %v1350
    %v1613 = vpop.f32.mrb[0].mxu0
    %v1614 = vadd.f32 0.0, %v1613
    %v1615 = vpop.f32.mrb[0].mxu0
    %v1616 = vpop.f32.mrb[0].mxu0
    %v1617 = vadd.f32 0.0, %v1616
    %v1618 = vpop.f32.mrb[0].mxu0
    %1619 = vmatprep.mubr.bf16.mxu0 0
    %1620 = vmatmul.mubr.bf16.gmra.mrb[0].mxu0 %v1351
    %v1621 = vpop.f32.mrb[0].mxu0
    %v1622 = vadd.f32 0.0, %v1621
    %v1623 = vpop.f32.mrb[0].mxu0
    %v1624 = vpop.f32.mrb[0].mxu0
    %v1625 = vadd.f32 0.0, %v1624
    %v1626 = vpop.f32.mrb[0].mxu0
    %1627 = vmatprep.mubr.bf16.mxu0 0
    %1628 = vmatmul.mubr.bf16.gmra.mrb[0].mxu0 %v1352
    %v1629 = vpop.f32.mrb[0].mxu0
    %v1630 = vadd.f32 0.0, %v1629
    %v1631 = vpop.f32.mrb[0].mxu0
    %v1632 = vpop.f32.mrb[0].mxu0
    %v1633 = vadd.f32 0.0, %v1632
    %v1634 = vpop.f32.mrb[0].mxu0
    %1635 = vmatprep.mubr.bf16.mxu0 0
    %1636 = vmatmul.mubr.bf16.gmra.mrb[0].mxu0 %v1353
    %v1637 = vpop.f32.mrb[0].mxu0
    %v1638 = vadd.f32 0.0, %v1637
    %v1639 = vpop.f32.mrb[0].mxu0
    %v1640 = vpop.f32.mrb[0].mxu0
    %v1641 = vadd.f32 0.0, %v1640
    %v1642 = vpop.f32.mrb[0].mxu0
    %1643 = vmatprep.mubr.bf16.mxu0 0
    %1644 = vmatmul.mubr.bf16.gmra.mrb[0].mxu0 %v1354
    %v1645 = vpop.f32.mrb[0].mxu0
    %v1646 = vadd.f32 0.0, %v1645
    %v1647 = vpop.f32.mrb[0].mxu0
    %v1648 = vpop.f32.mrb[0].mxu0
    %v1649 = vadd.f32 0.0, %v1648
    %v1650 = vpop.f32.mrb[0].mxu0
    %1651 = vmatprep.mubr.bf16.mxu0 0
    %1652 = vmatmul.mubr.bf16.gmra.mrb[0].mxu0 %v1355
    %v1653 = vpop.f32.mrb[0].mxu0
    %v1654 = vadd.f32 0.0, %v1653
    %v1655 = vpop.f32.mrb[0].mxu0
    %v1656 = vpop.f32.mrb[0].mxu0
    %v1657 = vadd.f32 0.0, %v1656
    %v1658 = vpop.f32.mrb[0].mxu0
    %1659 = vmatprep.mubr.bf16.mxu0 0
    %1660 = vmatmul.mubr.bf16.gmra.mrb[0].mxu0 %v1356
    %v1661 = vpop.f32.mrb[0].mxu0
    %v1662 = vadd.f32 0.0, %v1661
    %v1663 = vpop.f32.mrb[0].mxu0
    %v1664 = vpop.f32.mrb[0].mxu0
    %v1665 = vadd.f32 0.0, %v1664
    %v1666 = vpop.f32.mrb[0].mxu0
    %1667 = vmatprep.mubr.bf16.mxu0 0
    %1668 = vmatmul.mubr.bf16.gmra.mrb[0].mxu0 %v1357
    %v1669 = vpop.f32.mrb[0].mxu0
    %v1670 = vadd.f32 0.0, %v1669
    %v1671 = vpop.f32.mrb[0].mxu0
    %v1672 = vpop.f32.mrb[0].mxu0
    %v1673 = vadd.f32 0.0, %v1672
    %v1674 = vpop.f32.mrb[0].mxu0
    %1675 = vmatprep.mubr.bf16.mxu0 0
    %1676 = vmatmul.mubr.bf16.gmra.mrb[0].mxu0 %v1358
    %v1677 = vpop.f32.mrb[0].mxu0
    %v1678 = vadd.f32 0.0, %v1677
    %v1679 = vpop.f32.mrb[0].mxu0
    %v1680 = vpop.f32.mrb[0].mxu0
    %v1681 = vadd.f32 0.0, %v1680
    %v1682 = vpop.f32.mrb[0].mxu0
    %1683 = vmatprep.mubr.bf16.mxu0 0
    %1684 = vmatmul.mubr.bf16.gmra.mrb[0].mxu0 %v1359
    %v1685 = vpop.f32.mrb[0].mxu0
    %v1686 = vadd.f32 0.0, %v1685
    %v1687 = vpop.f32.mrb[0].mxu0
    %v1688 = vpop.f32.mrb[0].mxu0
    %v1689 = vadd.f32 0.0, %v1688
    %v1690 = vpop.f32.mrb[0].mxu0
    %1691 = vmatprep.mubr.bf16.mxu0 0
    %1692 = vmatmul.mubr.bf16.gmra.mrb[0].mxu0 %v1360
    %v1693 = vpop.f32.mrb[0].mxu0
    %v1694 = vadd.f32 0.0, %v1693
    %v1695 = vpop.f32.mrb[0].mxu0
    %v1696 = vpop.f32.mrb[0].mxu0
    %v1697 = vadd.f32 0.0, %v1696
    %v1698 = vpop.f32.mrb[0].mxu0
    %1699 = vmatprep.mubr.bf16.mxu0 0
    %1700 = vmatmul.mubr.bf16.gmra.mrb[0].mxu0 %v1361
    %v1701 = vpop.f32.mrb[0].mxu0
    %v1702 = vadd.f32 0.0, %v1701
    %v1703 = vpop.f32.mrb[0].mxu0
    %v1704 = vpop.f32.mrb[0].mxu0
    %v1705 = vadd.f32 0.0, %v1704
    %v1706 = vpop.f32.mrb[0].mxu0
    %1707 = vmatprep.mubr.bf16.mxu0 0
    %1708 = vmatmul.mubr.bf16.gmra.mrb[0].mxu0 %v1362
    %v1709 = vpop.f32.mrb[0].mxu0
    %v1710 = vadd.f32 0.0, %v1709
    %v1711 = vpop.f32.mrb[0].mxu0
    %v1712 = vpop.f32.mrb[0].mxu0
    %v1713 = vadd.f32 0.0, %v1712
    %v1714 = vpop.f32.mrb[0].mxu0
    %1715 = vdwg.mxu0
    %v1716 = vpack.c.bf16 %v1465, %v1462
    %v1717 = vpack.c.bf16 %v1473, %v1470
    %v1718 = vpack.c.bf16 %v1481, %v1478
    %v1719 = vpack.c.bf16 %v1489, %v1486
    %v1720 = vpack.c.bf16 %v1497, %v1494
    %v1721 = vpack.c.bf16 %v1505, %v1502
    %v1722 = vpack.c.bf16 %v1513, %v1510
    %v1723 = vpack.c.bf16 %v1521, %v1518
    %v1724 = vpack.c.bf16 %v1529, %v1526
    %v1725 = vpack.c.bf16 %v1537, %v1534
    %v1726 = vpack.c.bf16 %v1545, %v1542
    %v1727 = vpack.c.bf16 %v1553, %v1550
    %v1728 = vpack.c.bf16 %v1561, %v1558
    %v1729 = vpack.c.bf16 %v1569, %v1566
    %v1730 = vpack.c.bf16 %v1577, %v1574
    %v1731 = vpack.c.bf16 %v1585, %v1582
    %v1732 = vpack.c.bf16 %v1593, %v1590
    %v1733 = vpack.c.bf16 %v1601, %v1598
    %v1734 = vpack.c.bf16 %v1609, %v1606
    %v1735 = vpack.c.bf16 %v1617, %v1614
    %v1736 = vpack.c.bf16 %v1625, %v1622
    %v1737 = vpack.c.bf16 %v1633, %v1630
    %v1738 = vpack.c.bf16 %v1641, %v1638
    %v1739 = vpack.c.bf16 %v1649, %v1646
    %v1740 = vpack.c.bf16 %v1657, %v1654
    %v1741 = vpack.c.bf16 %v1665, %v1662
    %v1742 = vpack.c.bf16 %v1673, %v1670
    %v1743 = vpack.c.bf16 %v1681, %v1678
    %v1744 = vpack.c.bf16 %v1689, %v1686
    %v1745 = vpack.c.bf16 %v1697, %v1694
    %v1746 = vpack.c.bf16 %v1705, %v1702
    %v1747 = vpack.c.bf16 %v1713, %v1710
    %v1748 = vld [vmem:[%s6] sm:$0x1]
    %v1750 = vpack.i.b16 %v1748, %v1748
    %v1752 = vlaneseq
    %v1753 = vshrl.u32 %v1752, 7
    %v1754 = vsub.s32 0, %v1753
    %v1755 = vrot.slane %v1750, %v1754
    %v1756 = vadd.bf16 %v1716, %v1755
    %v1757 = vadd.bf16 %v1717, %v1755
    %v1758 = vadd.bf16 %v1718, %v1755
    %v1759 = vadd.bf16 %v1719, %v1755
    %v1760 = vadd.bf16 %v1720, %v1755
    %v1761 = vadd.bf16 %v1721, %v1755
    %v1762 = vadd.bf16 %v1722, %v1755
    %v1763 = vadd.bf16 %v1723, %v1755
    %v1764 = vadd.bf16 %v1724, %v1755
    %v1765 = vadd.bf16 %v1725, %v1755
    %v1766 = vadd.bf16 %v1726, %v1755
    %v1767 = vadd.bf16 %v1727, %v1755
    %v1768 = vadd.bf16 %v1728, %v1755
    %v1769 = vadd.bf16 %v1729, %v1755
    %v1770 = vadd.bf16 %v1730, %v1755
    %v1771 = vadd.bf16 %v1731, %v1755
    %v1772 = vadd.bf16 %v1732, %v1755
    %v1773 = vadd.bf16 %v1733, %v1755
    %v1774 = vadd.bf16 %v1734, %v1755
    %v1775 = vadd.bf16 %v1735, %v1755
    %v1776 = vadd.bf16 %v1736, %v1755
    %v1777 = vadd.bf16 %v1737, %v1755
    %v1778 = vadd.bf16 %v1738, %v1755
    %v1779 = vadd.bf16 %v1739, %v1755
    %v1780 = vadd.bf16 %v1740, %v1755
    %v1781 = vadd.bf16 %v1741, %v1755
    %v1782 = vadd.bf16 %v1742, %v1755
    %v1783 = vadd.bf16 %v1743, %v1755
    %v1784 = vadd.bf16 %v1744, %v1755
    %v1785 = vadd.bf16 %v1745, %v1755
    %v1786 = vadd.bf16 %v1746, %v1755
    %v1787 = vadd.bf16 %v1747, %v1755
    %v1788 = vmax.bf16 %v1756, 0
    %v1789 = vmax.bf16 %v1757, 0
    %v1790 = vmax.bf16 %v1758, 0
    %v1791 = vmax.bf16 %v1759, 0
    %v1792 = vmax.bf16 %v1760, 0
    %v1793 = vmax.bf16 %v1761, 0
    %v1794 = vmax.bf16 %v1762, 0
    %v1795 = vmax.bf16 %v1763, 0
    %v1796 = vmax.bf16 %v1764, 0
    %v1797 = vmax.bf16 %v1765, 0
    %v1798 = vmax.bf16 %v1766, 0
    %v1799 = vmax.bf16 %v1767, 0
    %v1800 = vmax.bf16 %v1768, 0
    %v1801 = vmax.bf16 %v1769, 0
    %v1802 = vmax.bf16 %v1770, 0
    %v1803 = vmax.bf16 %v1771, 0
    %v1804 = vmax.bf16 %v1772, 0
    %v1805 = vmax.bf16 %v1773, 0
    %v1806 = vmax.bf16 %v1774, 0
    %v1807 = vmax.bf16 %v1775, 0
    %v1808 = vmax.bf16 %v1776, 0
    %v1809 = vmax.bf16 %v1777, 0
    %v1810 = vmax.bf16 %v1778, 0
    %v1811 = vmax.bf16 %v1779, 0
    %v1812 = vmax.bf16 %v1780, 0
    %v1813 = vmax.bf16 %v1781, 0
    %v1814 = vmax.bf16 %v1782, 0
    %v1815 = vmax.bf16 %v1783, 0
    %v1816 = vmax.bf16 %v1784, 0
    %v1817 = vmax.bf16 %v1785, 0
    %v1818 = vmax.bf16 %v1786, 0
    %v1819 = vmax.bf16 %v1787, 0
    %v1820 = vld [vmem:[%s7] sm:$0xf]
    %v1821 = vld [vmem:[%s7 + $0x4] sm:$0xf]
    %v1822 = vld [vmem:[%s7 + $0x8] sm:$0xf]
    %v1823 = vld [vmem:[%s7 + $0xc] sm:$0xf]
    %v1824 = vld [vmem:[%s7 + $0x10] sm:$0xf]
    %v1825 = vld [vmem:[%s7 + $0x14] sm:$0xf]
    %v1826 = vld [vmem:[%s7 + $0x18] sm:$0xf]
    %v1827 = vld [vmem:[%s7 + $0x1c] sm:$0xf]
    %v1836 = vunpack.c.l.b16 %v1820
    %v1837 = vunpack.c.l.b16 %v1821
    %v1838 = vunpack.c.l.b16 %v1822
    %v1839 = vunpack.c.l.b16 %v1823
    %v1840 = vunpack.c.l.b16 %v1824
    %v1841 = vunpack.c.l.b16 %v1825
    %v1842 = vunpack.c.l.b16 %v1826
    %v1843 = vunpack.c.l.b16 %v1827
    %v1844 = vpack.c.b16 %v1837, %v1836
    %v1845 = vpack.c.b16 %v1839, %v1838
    %v1846 = vpack.c.b16 %v1841, %v1840
    %v1847 = vpack.c.b16 %v1843, %v1842
    %vm1852 = vcmask 523264
    %v1854 = vsel %vm1852, %v1788, 0
    %v1857 = vsel %vm1852, %v1789, 0
    %v1860 = vsel %vm1852, %v1790, 0
    %v1863 = vsel %vm1852, %v1791, 0
    %v1866 = vsel %vm1852, %v1792, 0
    %v1869 = vsel %vm1852, %v1793, 0
    %v1872 = vsel %vm1852, %v1794, 0
    %v1875 = vsel %vm1852, %v1795, 0
    %v1878 = vsel %vm1852, %v1796, 0
    %v1881 = vsel %vm1852, %v1797, 0
    %v1884 = vsel %vm1852, %v1798, 0
    %v1887 = vsel %vm1852, %v1799, 0
    %v1890 = vsel %vm1852, %v1800, 0
    %v1893 = vsel %vm1852, %v1801, 0
    %v1896 = vsel %vm1852, %v1802, 0
    %v1899 = vsel %vm1852, %v1803, 0
    %v1902 = vsel %vm1852, %v1804, 0
    %v1905 = vsel %vm1852, %v1805, 0
    %v1908 = vsel %vm1852, %v1806, 0
    %v1911 = vsel %vm1852, %v1807, 0
    %v1914 = vsel %vm1852, %v1808, 0
    %v1917 = vsel %vm1852, %v1809, 0
    %v1920 = vsel %vm1852, %v1810, 0
    %v1923 = vsel %vm1852, %v1811, 0
    %v1926 = vsel %vm1852, %v1812, 0
    %v1929 = vsel %vm1852, %v1813, 0
    %v1932 = vsel %vm1852, %v1814, 0
    %v1935 = vsel %vm1852, %v1815, 0
    %v1938 = vsel %vm1852, %v1816, 0
    %v1941 = vsel %vm1852, %v1817, 0
    %v1944 = vsel %vm1852, %v1818, 0
    %v1947 = vsel %vm1852, %v1819, 0
    %1949 = vmatprep.subr.bf16.mxu0 0
    %1950 = vmatpush1.bf16.msra.mxu0 %v1844
    %1951 = vmatprep.subr.bf16.mxu0 0
    %1952 = vmatpush1.bf16.msra.mxu0 %v1845
    %1953 = vmatprep.subr.bf16.mxu0 0
    %1954 = vmatpush1.bf16.msra.mxu0 %v1846
    %1955 = vmatprep.subr.bf16.mxu0 0
    %1956 = vmatpush1.bf16.msra.mxu0 %v1847
    %1957 = vmatprep.subr.bf16.mxu0 0
    %1958 = vmatpush1.bf16.msra.mxu0 0
    %1959 = vmatprep.subr.bf16.mxu0 0
    %1960 = vmatpush1.bf16.msra.mxu0 0
    %1961 = vmatprep.subr.bf16.mxu0 0
    %1962 = vmatpush1.bf16.msra.mxu0 0
    %1963 = vmatprep.subr.bf16.mxu0 0
    %1964 = vmatpush1.bf16.msra.mxu0 0
    %1965 = vmatprep.subr.bf16.mxu0 0
    %1966 = vmatpush1.bf16.msra.mxu0 0
    %1967 = vmatprep.subr.bf16.mxu0 0
    %1968 = vmatpush1.bf16.msra.mxu0 0
    %1969 = vmatprep.subr.bf16.mxu0 0
    %1970 = vmatpush1.bf16.msra.mxu0 0
    %1971 = vmatprep.subr.bf16.mxu0 0
    %1972 = vmatpush1.bf16.msra.mxu0 0
    %1973 = vmatprep.subr.bf16.mxu0 0
    %1974 = vmatpush1.bf16.msra.mxu0 0
    %1975 = vmatprep.subr.bf16.mxu0 0
    %1976 = vmatpush1.bf16.msra.mxu0 0
    %1977 = vmatprep.subr.bf16.mxu0 0
    %1978 = vmatpush1.bf16.msra.mxu0 0
    %1979 = vmatprep.subr.bf16.mxu0 0
    %1980 = vmatpush1.bf16.msra.mxu0 0
    %1981 = vmatprep.mubr.bf16.mxu0 0
    %1982 = vmatmul.mubr.bf16.gmra.mrb[0].mxu0 %v1854
    %v1983 = vpop.f32.mrb[0].mxu0
    %v1984 = vadd.f32 0.0, %v1983
    %v1985 = vpop.f32.mrb[0].mxu0
    %v1986 = vpop.f32.mrb[0].mxu0
    %v1987 = vadd.f32 0.0, %v1986
    %v1988 = vpop.f32.mrb[0].mxu0
    %1989 = vmatprep.mubr.bf16.mxu0 0
    %1990 = vmatmul.mubr.bf16.gmra.mrb[0].mxu0 %v1857
    %v1991 = vpop.f32.mrb[0].mxu0
    %v1992 = vadd.f32 0.0, %v1991
    %v1993 = vpop.f32.mrb[0].mxu0
    %v1994 = vpop.f32.mrb[0].mxu0
    %v1995 = vadd.f32 0.0, %v1994
    %v1996 = vpop.f32.mrb[0].mxu0
    %1997 = vmatprep.mubr.bf16.mxu0 0
    %1998 = vmatmul.mubr.bf16.gmra.mrb[0].mxu0 %v1860
    %v1999 = vpop.f32.mrb[0].mxu0
    %v2000 = vadd.f32 0.0, %v1999
    %v2001 = vpop.f32.mrb[0].mxu0
    %v2002 = vpop.f32.mrb[0].mxu0
    %v2003 = vadd.f32 0.0, %v2002
    %v2004 = vpop.f32.mrb[0].mxu0
    %2005 = vmatprep.mubr.bf16.mxu0 0
    %2006 = vmatmul.mubr.bf16.gmra.mrb[0].mxu0 %v1863
    %v2007 = vpop.f32.mrb[0].mxu0
    %v2008 = vadd.f32 0.0, %v2007
    %v2009 = vpop.f32.mrb[0].mxu0
    %v2010 = vpop.f32.mrb[0].mxu0
    %v2011 = vadd.f32 0.0, %v2010
    %v2012 = vpop.f32.mrb[0].mxu0
    %2013 = vmatprep.mubr.bf16.mxu0 0
    %2014 = vmatmul.mubr.bf16.gmra.mrb[0].mxu0 %v1866
    %v2015 = vpop.f32.mrb[0].mxu0
    %v2016 = vadd.f32 0.0, %v2015
    %v2017 = vpop.f32.mrb[0].mxu0
    %v2018 = vpop.f32.mrb[0].mxu0
    %v2019 = vadd.f32 0.0, %v2018
    %v2020 = vpop.f32.mrb[0].mxu0
    %2021 = vmatprep.mubr.bf16.mxu0 0
    %2022 = vmatmul.mubr.bf16.gmra.mrb[0].mxu0 %v1869
    %v2023 = vpop.f32.mrb[0].mxu0
    %v2024 = vadd.f32 0.0, %v2023
    %v2025 = vpop.f32.mrb[0].mxu0
    %v2026 = vpop.f32.mrb[0].mxu0
    %v2027 = vadd.f32 0.0, %v2026
    %v2028 = vpop.f32.mrb[0].mxu0
    %2029 = vmatprep.mubr.bf16.mxu0 0
    %2030 = vmatmul.mubr.bf16.gmra.mrb[0].mxu0 %v1872
    %v2031 = vpop.f32.mrb[0].mxu0
    %v2032 = vadd.f32 0.0, %v2031
    %v2033 = vpop.f32.mrb[0].mxu0
    %v2034 = vpop.f32.mrb[0].mxu0
    %v2035 = vadd.f32 0.0, %v2034
    %v2036 = vpop.f32.mrb[0].mxu0
    %2037 = vmatprep.mubr.bf16.mxu0 0
    %2038 = vmatmul.mubr.bf16.gmra.mrb[0].mxu0 %v1875
    %v2039 = vpop.f32.mrb[0].mxu0
    %v2040 = vadd.f32 0.0, %v2039
    %v2041 = vpop.f32.mrb[0].mxu0
    %v2042 = vpop.f32.mrb[0].mxu0
    %v2043 = vadd.f32 0.0, %v2042
    %v2044 = vpop.f32.mrb[0].mxu0
    %2045 = vmatprep.mubr.bf16.mxu0 0
    %2046 = vmatmul.mubr.bf16.gmra.mrb[0].mxu0 %v1878
    %v2047 = vpop.f32.mrb[0].mxu0
    %v2048 = vadd.f32 0.0, %v2047
    %v2049 = vpop.f32.mrb[0].mxu0
    %v2050 = vpop.f32.mrb[0].mxu0
    %v2051 = vadd.f32 0.0, %v2050
    %v2052 = vpop.f32.mrb[0].mxu0
    %2053 = vmatprep.mubr.bf16.mxu0 0
    %2054 = vmatmul.mubr.bf16.gmra.mrb[0].mxu0 %v1881
    %v2055 = vpop.f32.mrb[0].mxu0
    %v2056 = vadd.f32 0.0, %v2055
    %v2057 = vpop.f32.mrb[0].mxu0
    %v2058 = vpop.f32.mrb[0].mxu0
    %v2059 = vadd.f32 0.0, %v2058
    %v2060 = vpop.f32.mrb[0].mxu0
    %2061 = vmatprep.mubr.bf16.mxu0 0
    %2062 = vmatmul.mubr.bf16.gmra.mrb[0].mxu0 %v1884
    %v2063 = vpop.f32.mrb[0].mxu0
    %v2064 = vadd.f32 0.0, %v2063
    %v2065 = vpop.f32.mrb[0].mxu0
    %v2066 = vpop.f32.mrb[0].mxu0
    %v2067 = vadd.f32 0.0, %v2066
    %v2068 = vpop.f32.mrb[0].mxu0
    %2069 = vmatprep.mubr.bf16.mxu0 0
    %2070 = vmatmul.mubr.bf16.gmra.mrb[0].mxu0 %v1887
    %v2071 = vpop.f32.mrb[0].mxu0
    %v2072 = vadd.f32 0.0, %v2071
    %v2073 = vpop.f32.mrb[0].mxu0
    %v2074 = vpop.f32.mrb[0].mxu0
    %v2075 = vadd.f32 0.0, %v2074
    %v2076 = vpop.f32.mrb[0].mxu0
    %2077 = vmatprep.mubr.bf16.mxu0 0
    %2078 = vmatmul.mubr.bf16.gmra.mrb[0].mxu0 %v1890
    %v2079 = vpop.f32.mrb[0].mxu0
    %v2080 = vadd.f32 0.0, %v2079
    %v2081 = vpop.f32.mrb[0].mxu0
    %v2082 = vpop.f32.mrb[0].mxu0
    %v2083 = vadd.f32 0.0, %v2082
    %v2084 = vpop.f32.mrb[0].mxu0
    %2085 = vmatprep.mubr.bf16.mxu0 0
    %2086 = vmatmul.mubr.bf16.gmra.mrb[0].mxu0 %v1893
    %v2087 = vpop.f32.mrb[0].mxu0
    %v2088 = vadd.f32 0.0, %v2087
    %v2089 = vpop.f32.mrb[0].mxu0
    %v2090 = vpop.f32.mrb[0].mxu0
    %v2091 = vadd.f32 0.0, %v2090
    %v2092 = vpop.f32.mrb[0].mxu0
    %2093 = vmatprep.mubr.bf16.mxu0 0
    %2094 = vmatmul.mubr.bf16.gmra.mrb[0].mxu0 %v1896
    %v2095 = vpop.f32.mrb[0].mxu0
    %v2096 = vadd.f32 0.0, %v2095
    %v2097 = vpop.f32.mrb[0].mxu0
    %v2098 = vpop.f32.mrb[0].mxu0
    %v2099 = vadd.f32 0.0, %v2098
    %v2100 = vpop.f32.mrb[0].mxu0
    %2101 = vmatprep.mubr.bf16.mxu0 0
    %2102 = vmatmul.mubr.bf16.gmra.mrb[0].mxu0 %v1899
    %v2103 = vpop.f32.mrb[0].mxu0
    %v2104 = vadd.f32 0.0, %v2103
    %v2105 = vpop.f32.mrb[0].mxu0
    %v2106 = vpop.f32.mrb[0].mxu0
    %v2107 = vadd.f32 0.0, %v2106
    %v2108 = vpop.f32.mrb[0].mxu0
    %2109 = vmatprep.mubr.bf16.mxu0 0
    %2110 = vmatmul.mubr.bf16.gmra.mrb[0].mxu0 %v1902
    %v2111 = vpop.f32.mrb[0].mxu0
    %v2112 = vadd.f32 0.0, %v2111
    %v2113 = vpop.f32.mrb[0].mxu0
    %v2114 = vpop.f32.mrb[0].mxu0
    %v2115 = vadd.f32 0.0, %v2114
    %v2116 = vpop.f32.mrb[0].mxu0
    %2117 = vmatprep.mubr.bf16.mxu0 0
    %2118 = vmatmul.mubr.bf16.gmra.mrb[0].mxu0 %v1905
    %v2119 = vpop.f32.mrb[0].mxu0
    %v2120 = vadd.f32 0.0, %v2119
    %v2121 = vpop.f32.mrb[0].mxu0
    %v2122 = vpop.f32.mrb[0].mxu0
    %v2123 = vadd.f32 0.0, %v2122
    %v2124 = vpop.f32.mrb[0].mxu0
    %2125 = vmatprep.mubr.bf16.mxu0 0
    %2126 = vmatmul.mubr.bf16.gmra.mrb[0].mxu0 %v1908
    %v2127 = vpop.f32.mrb[0].mxu0
    %v2128 = vadd.f32 0.0, %v2127
    %v2129 = vpop.f32.mrb[0].mxu0
    %v2130 = vpop.f32.mrb[0].mxu0
    %v2131 = vadd.f32 0.0, %v2130
    %v2132 = vpop.f32.mrb[0].mxu0
    %2133 = vmatprep.mubr.bf16.mxu0 0
    %2134 = vmatmul.mubr.bf16.gmra.mrb[0].mxu0 %v1911
    %v2135 = vpop.f32.mrb[0].mxu0
    %v2136 = vadd.f32 0.0, %v2135
    %v2137 = vpop.f32.mrb[0].mxu0
    %v2138 = vpop.f32.mrb[0].mxu0
    %v2139 = vadd.f32 0.0, %v2138
    %v2140 = vpop.f32.mrb[0].mxu0
    %2141 = vmatprep.mubr.bf16.mxu0 0
    %2142 = vmatmul.mubr.bf16.gmra.mrb[0].mxu0 %v1914
    %v2143 = vpop.f32.mrb[0].mxu0
    %v2144 = vadd.f32 0.0, %v2143
    %v2145 = vpop.f32.mrb[0].mxu0
    %v2146 = vpop.f32.mrb[0].mxu0
    %v2147 = vadd.f32 0.0, %v2146
    %v2148 = vpop.f32.mrb[0].mxu0
    %2149 = vmatprep.mubr.bf16.mxu0 0
    %2150 = vmatmul.mubr.bf16.gmra.mrb[0].mxu0 %v1917
    %v2151 = vpop.f32.mrb[0].mxu0
    %v2152 = vadd.f32 0.0, %v2151
    %v2153 = vpop.f32.mrb[0].mxu0
    %v2154 = vpop.f32.mrb[0].mxu0
    %v2155 = vadd.f32 0.0, %v2154
    %v2156 = vpop.f32.mrb[0].mxu0
    %2157 = vmatprep.mubr.bf16.mxu0 0
    %2158 = vmatmul.mubr.bf16.gmra.mrb[0].mxu0 %v1920
    %v2159 = vpop.f32.mrb[0].mxu0
    %v2160 = vadd.f32 0.0, %v2159
    %v2161 = vpop.f32.mrb[0].mxu0
    %v2162 = vpop.f32.mrb[0].mxu0
    %v2163 = vadd.f32 0.0, %v2162
    %v2164 = vpop.f32.mrb[0].mxu0
    %2165 = vmatprep.mubr.bf16.mxu0 0
    %2166 = vmatmul.mubr.bf16.gmra.mrb[0].mxu0 %v1923
    %v2167 = vpop.f32.mrb[0].mxu0
    %v2168 = vadd.f32 0.0, %v2167
    %v2169 = vpop.f32.mrb[0].mxu0
    %v2170 = vpop.f32.mrb[0].mxu0
    %v2171 = vadd.f32 0.0, %v2170
    %v2172 = vpop.f32.mrb[0].mxu0
    %2173 = vmatprep.mubr.bf16.mxu0 0
    %2174 = vmatmul.mubr.bf16.gmra.mrb[0].mxu0 %v1926
    %v2175 = vpop.f32.mrb[0].mxu0
    %v2176 = vadd.f32 0.0, %v2175
    %v2177 = vpop.f32.mrb[0].mxu0
    %v2178 = vpop.f32.mrb[0].mxu0
    %v2179 = vadd.f32 0.0, %v2178
    %v2180 = vpop.f32.mrb[0].mxu0
    %2181 = vmatprep.mubr.bf16.mxu0 0
    %2182 = vmatmul.mubr.bf16.gmra.mrb[0].mxu0 %v1929
    %v2183 = vpop.f32.mrb[0].mxu0
    %v2184 = vadd.f32 0.0, %v2183
    %v2185 = vpop.f32.mrb[0].mxu0
    %v2186 = vpop.f32.mrb[0].mxu0
    %v2187 = vadd.f32 0.0, %v2186
    %v2188 = vpop.f32.mrb[0].mxu0
    %2189 = vmatprep.mubr.bf16.mxu0 0
    %2190 = vmatmul.mubr.bf16.gmra.mrb[0].mxu0 %v1932
    %v2191 = vpop.f32.mrb[0].mxu0
    %v2192 = vadd.f32 0.0, %v2191
    %v2193 = vpop.f32.mrb[0].mxu0
    %v2194 = vpop.f32.mrb[0].mxu0
    %v2195 = vadd.f32 0.0, %v2194
    %v2196 = vpop.f32.mrb[0].mxu0
    %2197 = vmatprep.mubr.bf16.mxu0 0
    %2198 = vmatmul.mubr.bf16.gmra.mrb[0].mxu0 %v1935
    %v2199 = vpop.f32.mrb[0].mxu0
    %v2200 = vadd.f32 0.0, %v2199
    %v2201 = vpop.f32.mrb[0].mxu0
    %v2202 = vpop.f32.mrb[0].mxu0
    %v2203 = vadd.f32 0.0, %v2202
    %v2204 = vpop.f32.mrb[0].mxu0
    %2205 = vmatprep.mubr.bf16.mxu0 0
    %2206 = vmatmul.mubr.bf16.gmra.mrb[0].mxu0 %v1938
    %v2207 = vpop.f32.mrb[0].mxu0
    %v2208 = vadd.f32 0.0, %v2207
    %v2209 = vpop.f32.mrb[0].mxu0
    %v2210 = vpop.f32.mrb[0].mxu0
    %v2211 = vadd.f32 0.0, %v2210
    %v2212 = vpop.f32.mrb[0].mxu0
    %2213 = vmatprep.mubr.bf16.mxu0 0
    %2214 = vmatmul.mubr.bf16.gmra.mrb[0].mxu0 %v1941
    %v2215 = vpop.f32.mrb[0].mxu0
    %v2216 = vadd.f32 0.0, %v2215
    %v2217 = vpop.f32.mrb[0].mxu0
    %v2218 = vpop.f32.mrb[0].mxu0
    %v2219 = vadd.f32 0.0, %v2218
    %v2220 = vpop.f32.mrb[0].mxu0
    %2221 = vmatprep.mubr.bf16.mxu0 0
    %2222 = vmatmul.mubr.bf16.gmra.mrb[0].mxu0 %v1944
    %v2223 = vpop.f32.mrb[0].mxu0
    %v2224 = vadd.f32 0.0, %v2223
    %v2225 = vpop.f32.mrb[0].mxu0
    %v2226 = vpop.f32.mrb[0].mxu0
    %v2227 = vadd.f32 0.0, %v2226
    %v2228 = vpop.f32.mrb[0].mxu0
    %2229 = vmatprep.mubr.bf16.mxu0 0
    %2230 = vmatmul.mubr.bf16.gmra.mrb[0].mxu0 %v1947
    %v2231 = vpop.f32.mrb[0].mxu0
    %v2232 = vadd.f32 0.0, %v2231
    %v2233 = vpop.f32.mrb[0].mxu0
    %v2234 = vpop.f32.mrb[0].mxu0
    %v2235 = vadd.f32 0.0, %v2234
    %v2236 = vpop.f32.mrb[0].mxu0
    %2237 = vdwg.mxu0
    %v2238 = vpack.c.bf16 %v1987, %v1984
    %v2239 = vpack.c.bf16 %v1995, %v1992
    %v2240 = vpack.c.bf16 %v2003, %v2000
    %v2241 = vpack.c.bf16 %v2011, %v2008
    %v2242 = vpack.c.bf16 %v2019, %v2016
    %v2243 = vpack.c.bf16 %v2027, %v2024
    %v2244 = vpack.c.bf16 %v2035, %v2032
    %v2245 = vpack.c.bf16 %v2043, %v2040
    %v2246 = vpack.c.bf16 %v2051, %v2048
    %v2247 = vpack.c.bf16 %v2059, %v2056
    %v2248 = vpack.c.bf16 %v2067, %v2064
    %v2249 = vpack.c.bf16 %v2075, %v2072
    %v2250 = vpack.c.bf16 %v2083, %v2080
    %v2251 = vpack.c.bf16 %v2091, %v2088
    %v2252 = vpack.c.bf16 %v2099, %v2096
    %v2253 = vpack.c.bf16 %v2107, %v2104
    %v2254 = vpack.c.bf16 %v2115, %v2112
    %v2255 = vpack.c.bf16 %v2123, %v2120
    %v2256 = vpack.c.bf16 %v2131, %v2128
    %v2257 = vpack.c.bf16 %v2139, %v2136
    %v2258 = vpack.c.bf16 %v2147, %v2144
    %v2259 = vpack.c.bf16 %v2155, %v2152
    %v2260 = vpack.c.bf16 %v2163, %v2160
    %v2261 = vpack.c.bf16 %v2171, %v2168
    %v2262 = vpack.c.bf16 %v2179, %v2176
    %v2263 = vpack.c.bf16 %v2187, %v2184
    %v2264 = vpack.c.bf16 %v2195, %v2192
    %v2265 = vpack.c.bf16 %v2203, %v2200
    %v2266 = vpack.c.bf16 %v2211, %v2208
    %v2267 = vpack.c.bf16 %v2219, %v2216
    %v2268 = vpack.c.bf16 %v2227, %v2224
    %v2269 = vpack.c.bf16 %v2235, %v2232
    %v2270 = vld [vmem:[%s8] sm:$0x1]
    %v2272 = vpack.i.b16 %v2270, %v2270
    %v2274 = vlaneseq
    %v2275 = vshrl.u32 %v2274, 7
    %v2276 = vsub.s32 0, %v2275
    %v2277 = vrot.slane %v2272, %v2276
    %v2278 = vadd.bf16 %v2238, %v2277
    %v2279 = vadd.bf16 %v2239, %v2277
    %v2280 = vadd.bf16 %v2240, %v2277
    %v2281 = vadd.bf16 %v2241, %v2277
    %v2282 = vadd.bf16 %v2242, %v2277
    %v2283 = vadd.bf16 %v2243, %v2277
    %v2284 = vadd.bf16 %v2244, %v2277
    %v2285 = vadd.bf16 %v2245, %v2277
    %v2286 = vadd.bf16 %v2246, %v2277
    %v2287 = vadd.bf16 %v2247, %v2277
    %v2288 = vadd.bf16 %v2248, %v2277
    %v2289 = vadd.bf16 %v2249, %v2277
    %v2290 = vadd.bf16 %v2250, %v2277
    %v2291 = vadd.bf16 %v2251, %v2277
    %v2292 = vadd.bf16 %v2252, %v2277
    %v2293 = vadd.bf16 %v2253, %v2277
    %v2294 = vadd.bf16 %v2254, %v2277
    %v2295 = vadd.bf16 %v2255, %v2277
    %v2296 = vadd.bf16 %v2256, %v2277
    %v2297 = vadd.bf16 %v2257, %v2277
    %v2298 = vadd.bf16 %v2258, %v2277
    %v2299 = vadd.bf16 %v2259, %v2277
    %v2300 = vadd.bf16 %v2260, %v2277
    %v2301 = vadd.bf16 %v2261, %v2277
    %v2302 = vadd.bf16 %v2262, %v2277
    %v2303 = vadd.bf16 %v2263, %v2277
    %v2304 = vadd.bf16 %v2264, %v2277
    %v2305 = vadd.bf16 %v2265, %v2277
    %v2306 = vadd.bf16 %v2266, %v2277
    %v2307 = vadd.bf16 %v2267, %v2277
    %v2308 = vadd.bf16 %v2268, %v2277
    %v2309 = vadd.bf16 %v2269, %v2277
    %v2310 = vmax.bf16 %v2278, 0
    %v2311 = vmax.bf16 %v2279, 0
    %v2312 = vmax.bf16 %v2280, 0
    %v2313 = vmax.bf16 %v2281, 0
    %v2314 = vmax.bf16 %v2282, 0
    %v2315 = vmax.bf16 %v2283, 0
    %v2316 = vmax.bf16 %v2284, 0
    %v2317 = vmax.bf16 %v2285, 0
    %v2318 = vmax.bf16 %v2286, 0
    %v2319 = vmax.bf16 %v2287, 0
    %v2320 = vmax.bf16 %v2288, 0
    %v2321 = vmax.bf16 %v2289, 0
    %v2322 = vmax.bf16 %v2290, 0
    %v2323 = vmax.bf16 %v2291, 0
    %v2324 = vmax.bf16 %v2292, 0
    %v2325 = vmax.bf16 %v2293, 0
    %v2326 = vmax.bf16 %v2294, 0
    %v2327 = vmax.bf16 %v2295, 0
    %v2328 = vmax.bf16 %v2296, 0
    %v2329 = vmax.bf16 %v2297, 0
    %v2330 = vmax.bf16 %v2298, 0
    %v2331 = vmax.bf16 %v2299, 0
    %v2332 = vmax.bf16 %v2300, 0
    %v2333 = vmax.bf16 %v2301, 0
    %v2334 = vmax.bf16 %v2302, 0
    %v2335 = vmax.bf16 %v2303, 0
    %v2336 = vmax.bf16 %v2304, 0
    %v2337 = vmax.bf16 %v2305, 0
    %v2338 = vmax.bf16 %v2306, 0
    %v2339 = vmax.bf16 %v2307, 0
    %v2340 = vmax.bf16 %v2308, 0
    %v2341 = vmax.bf16 %v2309, 0
    %v2342 = vunpack.c.l.bf16 %v2310
    %v2343 = vunpack.c.h.bf16 %v2310
    %v2344 = vunpack.c.l.bf16 %v2311
    %v2345 = vunpack.c.h.bf16 %v2311
    %v2346 = vunpack.c.l.bf16 %v2312
    %v2347 = vunpack.c.h.bf16 %v2312
    %v2348 = vunpack.c.l.bf16 %v2313
    %v2349 = vunpack.c.h.bf16 %v2313
    %v2350 = vunpack.c.l.bf16 %v2314
    %v2351 = vunpack.c.h.bf16 %v2314
    %v2352 = vunpack.c.l.bf16 %v2315
    %v2353 = vunpack.c.h.bf16 %v2315
    %v2354 = vunpack.c.l.bf16 %v2316
    %v2355 = vunpack.c.h.bf16 %v2316
    %v2356 = vunpack.c.l.bf16 %v2317
    %v2357 = vunpack.c.h.bf16 %v2317
    %v2358 = vunpack.c.l.bf16 %v2318
    %v2359 = vunpack.c.h.bf16 %v2318
    %v2360 = vunpack.c.l.bf16 %v2319
    %v2361 = vunpack.c.h.bf16 %v2319
    %v2362 = vunpack.c.l.bf16 %v2320
    %v2363 = vunpack.c.h.bf16 %v2320
    %v2364 = vunpack.c.l.bf16 %v2321
    %v2365 = vunpack.c.h.bf16 %v2321
    %v2366 = vunpack.c.l.bf16 %v2322
    %v2367 = vunpack.c.h.bf16 %v2322
    %v2368 = vunpack.c.l.bf16 %v2323
    %v2369 = vunpack.c.h.bf16 %v2323
    %v2370 = vunpack.c.l.bf16 %v2324
    %v2371 = vunpack.c.h.bf16 %v2324
    %v2372 = vunpack.c.l.bf16 %v2325
    %v2373 = vunpack.c.h.bf16 %v2325
    %v2374 = vunpack.c.l.bf16 %v2326
    %v2375 = vunpack.c.h.bf16 %v2326
    %v2376 = vunpack.c.l.bf16 %v2327
    %v2377 = vunpack.c.h.bf16 %v2327
    %v2378 = vunpack.c.l.bf16 %v2328
    %v2379 = vunpack.c.h.bf16 %v2328
    %v2380 = vunpack.c.l.bf16 %v2329
    %v2381 = vunpack.c.h.bf16 %v2329
    %v2382 = vunpack.c.l.bf16 %v2330
    %v2383 = vunpack.c.h.bf16 %v2330
    %v2384 = vunpack.c.l.bf16 %v2331
    %v2385 = vunpack.c.h.bf16 %v2331
    %v2386 = vunpack.c.l.bf16 %v2332
    %v2387 = vunpack.c.h.bf16 %v2332
    %v2388 = vunpack.c.l.bf16 %v2333
    %v2389 = vunpack.c.h.bf16 %v2333
    %v2390 = vunpack.c.l.bf16 %v2334
    %v2391 = vunpack.c.h.bf16 %v2334
    %v2392 = vunpack.c.l.bf16 %v2335
    %v2393 = vunpack.c.h.bf16 %v2335
    %v2394 = vunpack.c.l.bf16 %v2336
    %v2395 = vunpack.c.h.bf16 %v2336
    %v2396 = vunpack.c.l.bf16 %v2337
    %v2397 = vunpack.c.h.bf16 %v2337
    %v2398 = vunpack.c.l.bf16 %v2338
    %v2399 = vunpack.c.h.bf16 %v2338
    %v2400 = vunpack.c.l.bf16 %v2339
    %v2401 = vunpack.c.h.bf16 %v2339
    %v2402 = vunpack.c.l.bf16 %v2340
    %v2403 = vunpack.c.h.bf16 %v2340
    %v2404 = vunpack.c.l.bf16 %v2341
    %v2405 = vunpack.c.h.bf16 %v2341
    %v2406 = vld [vmem:[%s9] sm:$0x1]
    %v2408 = vlaneseq
    %v2409 = vshrl.u32 %v2408, 7
    %v2410 = vsub.s32 0, %v2409
    %v2411 = vrot.slane %v2406, %v2410
    %v2413 = vmul.f32 %v2342, %v2411
    %v2414 = vmul.f32 %v2343, %v2411
    %v2415 = vmul.f32 %v2344, %v2411
    %v2416 = vmul.f32 %v2345, %v2411
    %v2417 = vmul.f32 %v2346, %v2411
    %v2418 = vmul.f32 %v2347, %v2411
    %v2419 = vmul.f32 %v2348, %v2411
    %v2420 = vmul.f32 %v2349, %v2411
    %v2421 = vmul.f32 %v2350, %v2411
    %v2422 = vmul.f32 %v2351, %v2411
    %v2423 = vmul.f32 %v2352, %v2411
    %v2424 = vmul.f32 %v2353, %v2411
    %v2425 = vmul.f32 %v2354, %v2411
    %v2426 = vmul.f32 %v2355, %v2411
    %v2427 = vmul.f32 %v2356, %v2411
    %v2428 = vmul.f32 %v2357, %v2411
    %v2429 = vmul.f32 %v2358, %v2411
    %v2430 = vmul.f32 %v2359, %v2411
    %v2431 = vmul.f32 %v2360, %v2411
    %v2432 = vmul.f32 %v2361, %v2411
    %v2433 = vmul.f32 %v2362, %v2411
    %v2434 = vmul.f32 %v2363, %v2411
    %v2435 = vmul.f32 %v2364, %v2411
    %v2436 = vmul.f32 %v2365, %v2411
    %v2437 = vmul.f32 %v2366, %v2411
    %v2438 = vmul.f32 %v2367, %v2411
    %v2439 = vmul.f32 %v2368, %v2411
    %v2440 = vmul.f32 %v2369, %v2411
    %v2441 = vmul.f32 %v2370, %v2411
    %v2442 = vmul.f32 %v2371, %v2411
    %v2443 = vmul.f32 %v2372, %v2411
    %v2444 = vmul.f32 %v2373, %v2411
    %v2445 = vmul.f32 %v2374, %v2411
    %v2446 = vmul.f32 %v2375, %v2411
    %v2447 = vmul.f32 %v2376, %v2411
    %v2448 = vmul.f32 %v2377, %v2411
    %v2449 = vmul.f32 %v2378, %v2411
    %v2450 = vmul.f32 %v2379, %v2411
    %v2451 = vmul.f32 %v2380, %v2411
    %v2452 = vmul.f32 %v2381, %v2411
    %v2453 = vmul.f32 %v2382, %v2411
    %v2454 = vmul.f32 %v2383, %v2411
    %v2455 = vmul.f32 %v2384, %v2411
    %v2456 = vmul.f32 %v2385, %v2411
    %v2457 = vmul.f32 %v2386, %v2411
    %v2458 = vmul.f32 %v2387, %v2411
    %v2459 = vmul.f32 %v2388, %v2411
    %v2460 = vmul.f32 %v2389, %v2411
    %v2461 = vmul.f32 %v2390, %v2411
    %v2462 = vmul.f32 %v2391, %v2411
    %v2463 = vmul.f32 %v2392, %v2411
    %v2464 = vmul.f32 %v2393, %v2411
    %v2465 = vmul.f32 %v2394, %v2411
    %v2466 = vmul.f32 %v2395, %v2411
    %v2467 = vmul.f32 %v2396, %v2411
    %v2468 = vmul.f32 %v2397, %v2411
    %v2469 = vmul.f32 %v2398, %v2411
    %v2470 = vmul.f32 %v2399, %v2411
    %v2471 = vmul.f32 %v2400, %v2411
    %v2472 = vmul.f32 %v2401, %v2411
    %v2473 = vmul.f32 %v2402, %v2411
    %v2474 = vmul.f32 %v2403, %v2411
    %v2475 = vmul.f32 %v2404, %v2411
    %v2476 = vmul.f32 %v2405, %v2411
    %v2477 = vsel %vm162, %v2413, 0.0
    %2478 = vadd.xlane.f32.xlu0 %v2477
    %v2479 = vpop.xlane.xlu0 %2478
    %v2480 = vsel %vm162, %v2414, 0.0
    %2481 = vadd.xlane.f32.xlu0 %v2480
    %v2482 = vpop.xlane.xlu0 %2481
    %v2483 = vsel %vm162, %v2415, 0.0
    %2484 = vadd.xlane.f32.xlu0 %v2483
    %v2485 = vpop.xlane.xlu0 %2484
    %v2486 = vsel %vm162, %v2416, 0.0
    %2487 = vadd.xlane.f32.xlu0 %v2486
    %v2488 = vpop.xlane.xlu0 %2487
    %v2489 = vsel %vm162, %v2417, 0.0
    %2490 = vadd.xlane.f32.xlu0 %v2489
    %v2491 = vpop.xlane.xlu0 %2490
    %v2492 = vsel %vm162, %v2418, 0.0
    %2493 = vadd.xlane.f32.xlu0 %v2492
    %v2494 = vpop.xlane.xlu0 %2493
    %v2495 = vsel %vm162, %v2419, 0.0
    %2496 = vadd.xlane.f32.xlu0 %v2495
    %v2497 = vpop.xlane.xlu0 %2496
    %v2498 = vsel %vm162, %v2420, 0.0
    %2499 = vadd.xlane.f32.xlu0 %v2498
    %v2500 = vpop.xlane.xlu0 %2499
    %v2501 = vsel %vm162, %v2421, 0.0
    %2502 = vadd.xlane.f32.xlu0 %v2501
    %v2503 = vpop.xlane.xlu0 %2502
    %v2504 = vsel %vm162, %v2422, 0.0
    %2505 = vadd.xlane.f32.xlu0 %v2504
    %v2506 = vpop.xlane.xlu0 %2505
    %v2507 = vsel %vm162, %v2423, 0.0
    %2508 = vadd.xlane.f32.xlu0 %v2507
    %v2509 = vpop.xlane.xlu0 %2508
    %v2510 = vsel %vm162, %v2424, 0.0
    %2511 = vadd.xlane.f32.xlu0 %v2510
    %v2512 = vpop.xlane.xlu0 %2511
    %v2513 = vsel %vm162, %v2425, 0.0
    %2514 = vadd.xlane.f32.xlu0 %v2513
    %v2515 = vpop.xlane.xlu0 %2514
    %v2516 = vsel %vm162, %v2426, 0.0
    %2517 = vadd.xlane.f32.xlu0 %v2516
    %v2518 = vpop.xlane.xlu0 %2517
    %v2519 = vsel %vm162, %v2427, 0.0
    %2520 = vadd.xlane.f32.xlu0 %v2519
    %v2521 = vpop.xlane.xlu0 %2520
    %v2522 = vsel %vm162, %v2428, 0.0
    %2523 = vadd.xlane.f32.xlu0 %v2522
    %v2524 = vpop.xlane.xlu0 %2523
    %v2525 = vsel %vm162, %v2429, 0.0
    %2526 = vadd.xlane.f32.xlu0 %v2525
    %v2527 = vpop.xlane.xlu0 %2526
    %v2528 = vsel %vm162, %v2430, 0.0
    %2529 = vadd.xlane.f32.xlu0 %v2528
    %v2530 = vpop.xlane.xlu0 %2529
    %v2531 = vsel %vm162, %v2431, 0.0
    %2532 = vadd.xlane.f32.xlu0 %v2531
    %v2533 = vpop.xlane.xlu0 %2532
    %v2534 = vsel %vm162, %v2432, 0.0
    %2535 = vadd.xlane.f32.xlu0 %v2534
    %v2536 = vpop.xlane.xlu0 %2535
    %v2537 = vsel %vm162, %v2433, 0.0
    %2538 = vadd.xlane.f32.xlu0 %v2537
    %v2539 = vpop.xlane.xlu0 %2538
    %v2540 = vsel %vm162, %v2434, 0.0
    %2541 = vadd.xlane.f32.xlu0 %v2540
    %v2542 = vpop.xlane.xlu0 %2541
    %v2543 = vsel %vm162, %v2435, 0.0
    %2544 = vadd.xlane.f32.xlu0 %v2543
    %v2545 = vpop.xlane.xlu0 %2544
    %v2546 = vsel %vm162, %v2436, 0.0
    %2547 = vadd.xlane.f32.xlu0 %v2546
    %v2548 = vpop.xlane.xlu0 %2547
    %v2549 = vsel %vm162, %v2437, 0.0
    %2550 = vadd.xlane.f32.xlu0 %v2549
    %v2551 = vpop.xlane.xlu0 %2550
    %v2552 = vsel %vm162, %v2438, 0.0
    %2553 = vadd.xlane.f32.xlu0 %v2552
    %v2554 = vpop.xlane.xlu0 %2553
    %v2555 = vsel %vm162, %v2439, 0.0
    %2556 = vadd.xlane.f32.xlu0 %v2555
    %v2557 = vpop.xlane.xlu0 %2556
    %v2558 = vsel %vm162, %v2440, 0.0
    %2559 = vadd.xlane.f32.xlu0 %v2558
    %v2560 = vpop.xlane.xlu0 %2559
    %v2561 = vsel %vm162, %v2441, 0.0
    %2562 = vadd.xlane.f32.xlu0 %v2561
    %v2563 = vpop.xlane.xlu0 %2562
    %v2564 = vsel %vm162, %v2442, 0.0
    %2565 = vadd.xlane.f32.xlu0 %v2564
    %v2566 = vpop.xlane.xlu0 %2565
    %v2567 = vsel %vm162, %v2443, 0.0
    %2568 = vadd.xlane.f32.xlu0 %v2567
    %v2569 = vpop.xlane.xlu0 %2568
    %v2570 = vsel %vm162, %v2444, 0.0
    %2571 = vadd.xlane.f32.xlu0 %v2570
    %v2572 = vpop.xlane.xlu0 %2571
    %v2573 = vsel %vm162, %v2445, 0.0
    %2574 = vadd.xlane.f32.xlu0 %v2573
    %v2575 = vpop.xlane.xlu0 %2574
    %v2576 = vsel %vm162, %v2446, 0.0
    %2577 = vadd.xlane.f32.xlu0 %v2576
    %v2578 = vpop.xlane.xlu0 %2577
    %v2579 = vsel %vm162, %v2447, 0.0
    %2580 = vadd.xlane.f32.xlu0 %v2579
    %v2581 = vpop.xlane.xlu0 %2580
    %v2582 = vsel %vm162, %v2448, 0.0
    %2583 = vadd.xlane.f32.xlu0 %v2582
    %v2584 = vpop.xlane.xlu0 %2583
    %v2585 = vsel %vm162, %v2449, 0.0
    %2586 = vadd.xlane.f32.xlu0 %v2585
    %v2587 = vpop.xlane.xlu0 %2586
    %v2588 = vsel %vm162, %v2450, 0.0
    %2589 = vadd.xlane.f32.xlu0 %v2588
    %v2590 = vpop.xlane.xlu0 %2589
    %v2591 = vsel %vm162, %v2451, 0.0
    %2592 = vadd.xlane.f32.xlu0 %v2591
    %v2593 = vpop.xlane.xlu0 %2592
    %v2594 = vsel %vm162, %v2452, 0.0
    %2595 = vadd.xlane.f32.xlu0 %v2594
    %v2596 = vpop.xlane.xlu0 %2595
    %v2597 = vsel %vm162, %v2453, 0.0
    %2598 = vadd.xlane.f32.xlu0 %v2597
    %v2599 = vpop.xlane.xlu0 %2598
    %v2600 = vsel %vm162, %v2454, 0.0
    %2601 = vadd.xlane.f32.xlu0 %v2600
    %v2602 = vpop.xlane.xlu0 %2601
    %v2603 = vsel %vm162, %v2455, 0.0
    %2604 = vadd.xlane.f32.xlu0 %v2603
    %v2605 = vpop.xlane.xlu0 %2604
    %v2606 = vsel %vm162, %v2456, 0.0
    %2607 = vadd.xlane.f32.xlu0 %v2606
    %v2608 = vpop.xlane.xlu0 %2607
    %v2609 = vsel %vm162, %v2457, 0.0
    %2610 = vadd.xlane.f32.xlu0 %v2609
    %v2611 = vpop.xlane.xlu0 %2610
    %v2612 = vsel %vm162, %v2458, 0.0
    %2613 = vadd.xlane.f32.xlu0 %v2612
    %v2614 = vpop.xlane.xlu0 %2613
    %v2615 = vsel %vm162, %v2459, 0.0
    %2616 = vadd.xlane.f32.xlu0 %v2615
    %v2617 = vpop.xlane.xlu0 %2616
    %v2618 = vsel %vm162, %v2460, 0.0
    %2619 = vadd.xlane.f32.xlu0 %v2618
    %v2620 = vpop.xlane.xlu0 %2619
    %v2621 = vsel %vm162, %v2461, 0.0
    %2622 = vadd.xlane.f32.xlu0 %v2621
    %v2623 = vpop.xlane.xlu0 %2622
    %v2624 = vsel %vm162, %v2462, 0.0
    %2625 = vadd.xlane.f32.xlu0 %v2624
    %v2626 = vpop.xlane.xlu0 %2625
    %v2627 = vsel %vm162, %v2463, 0.0
    %2628 = vadd.xlane.f32.xlu0 %v2627
    %v2629 = vpop.xlane.xlu0 %2628
    %v2630 = vsel %vm162, %v2464, 0.0
    %2631 = vadd.xlane.f32.xlu0 %v2630
    %v2632 = vpop.xlane.xlu0 %2631
    %v2633 = vsel %vm162, %v2465, 0.0
    %2634 = vadd.xlane.f32.xlu0 %v2633
    %v2635 = vpop.xlane.xlu0 %2634
    %v2636 = vsel %vm162, %v2466, 0.0
    %2637 = vadd.xlane.f32.xlu0 %v2636
    %v2638 = vpop.xlane.xlu0 %2637
    %v2639 = vsel %vm162, %v2467, 0.0
    %2640 = vadd.xlane.f32.xlu0 %v2639
    %v2641 = vpop.xlane.xlu0 %2640
    %v2642 = vsel %vm162, %v2468, 0.0
    %2643 = vadd.xlane.f32.xlu0 %v2642
    %v2644 = vpop.xlane.xlu0 %2643
    %v2645 = vsel %vm162, %v2469, 0.0
    %2646 = vadd.xlane.f32.xlu0 %v2645
    %v2647 = vpop.xlane.xlu0 %2646
    %v2648 = vsel %vm162, %v2470, 0.0
    %2649 = vadd.xlane.f32.xlu0 %v2648
    %v2650 = vpop.xlane.xlu0 %2649
    %v2651 = vsel %vm162, %v2471, 0.0
    %2652 = vadd.xlane.f32.xlu0 %v2651
    %v2653 = vpop.xlane.xlu0 %2652
    %v2654 = vsel %vm162, %v2472, 0.0
    %2655 = vadd.xlane.f32.xlu0 %v2654
    %v2656 = vpop.xlane.xlu0 %2655
    %v2657 = vsel %vm162, %v2473, 0.0
    %2658 = vadd.xlane.f32.xlu0 %v2657
    %v2659 = vpop.xlane.xlu0 %2658
    %v2660 = vsel %vm162, %v2474, 0.0
    %2661 = vadd.xlane.f32.xlu0 %v2660
    %v2662 = vpop.xlane.xlu0 %2661
    %v2663 = vsel %vm162, %v2475, 0.0
    %2664 = vadd.xlane.f32.xlu0 %v2663
    %v2665 = vpop.xlane.xlu0 %2664
    %v2666 = vsel %vm162, %v2476, 0.0
    %2667 = vadd.xlane.f32.xlu0 %v2666
    %v2668 = vpop.xlane.xlu0 %2667
    %v2669 = vld [vmem:[#allocation2] sm:$0x1]
    %v2671 = vlaneseq
    %v2672 = vshrl.u32 %v2671, 7
    %v2673 = vsub.s32 0, %v2672
    %v2674 = vrot.slane %v2669, %v2673
    %v2676 = vadd.f32 %v2479, %v2674
    %v2677 = vadd.f32 %v2482, %v2674
    %v2678 = vadd.f32 %v2485, %v2674
    %v2679 = vadd.f32 %v2488, %v2674
    %v2680 = vadd.f32 %v2491, %v2674
    %v2681 = vadd.f32 %v2494, %v2674
    %v2682 = vadd.f32 %v2497, %v2674
    %v2683 = vadd.f32 %v2500, %v2674
    %v2684 = vadd.f32 %v2503, %v2674
    %v2685 = vadd.f32 %v2506, %v2674
    %v2686 = vadd.f32 %v2509, %v2674
    %v2687 = vadd.f32 %v2512, %v2674
    %v2688 = vadd.f32 %v2515, %v2674
    %v2689 = vadd.f32 %v2518, %v2674
    %v2690 = vadd.f32 %v2521, %v2674
    %v2691 = vadd.f32 %v2524, %v2674
    %v2692 = vadd.f32 %v2527, %v2674
    %v2693 = vadd.f32 %v2530, %v2674
    %v2694 = vadd.f32 %v2533, %v2674
    %v2695 = vadd.f32 %v2536, %v2674
    %v2696 = vadd.f32 %v2539, %v2674
    %v2697 = vadd.f32 %v2542, %v2674
    %v2698 = vadd.f32 %v2545, %v2674
    %v2699 = vadd.f32 %v2548, %v2674
    %v2700 = vadd.f32 %v2551, %v2674
    %v2701 = vadd.f32 %v2554, %v2674
    %v2702 = vadd.f32 %v2557, %v2674
    %v2703 = vadd.f32 %v2560, %v2674
    %v2704 = vadd.f32 %v2563, %v2674
    %v2705 = vadd.f32 %v2566, %v2674
    %v2706 = vadd.f32 %v2569, %v2674
    %v2707 = vadd.f32 %v2572, %v2674
    %v2708 = vadd.f32 %v2575, %v2674
    %v2709 = vadd.f32 %v2578, %v2674
    %v2710 = vadd.f32 %v2581, %v2674
    %v2711 = vadd.f32 %v2584, %v2674
    %v2712 = vadd.f32 %v2587, %v2674
    %v2713 = vadd.f32 %v2590, %v2674
    %v2714 = vadd.f32 %v2593, %v2674
    %v2715 = vadd.f32 %v2596, %v2674
    %v2716 = vadd.f32 %v2599, %v2674
    %v2717 = vadd.f32 %v2602, %v2674
    %v2718 = vadd.f32 %v2605, %v2674
    %v2719 = vadd.f32 %v2608, %v2674
    %v2720 = vadd.f32 %v2611, %v2674
    %v2721 = vadd.f32 %v2614, %v2674
    %v2722 = vadd.f32 %v2617, %v2674
    %v2723 = vadd.f32 %v2620, %v2674
    %v2724 = vadd.f32 %v2623, %v2674
    %v2725 = vadd.f32 %v2626, %v2674
    %v2726 = vadd.f32 %v2629, %v2674
    %v2727 = vadd.f32 %v2632, %v2674
    %v2728 = vadd.f32 %v2635, %v2674
    %v2729 = vadd.f32 %v2638, %v2674
    %v2730 = vadd.f32 %v2641, %v2674
    %v2731 = vadd.f32 %v2644, %v2674
    %v2732 = vadd.f32 %v2647, %v2674
    %v2733 = vadd.f32 %v2650, %v2674
    %v2734 = vadd.f32 %v2653, %v2674
    %v2735 = vadd.f32 %v2656, %v2674
    %v2736 = vadd.f32 %v2659, %v2674
    %v2737 = vadd.f32 %v2662, %v2674
    %v2738 = vadd.f32 %v2665, %v2674
    %v2739 = vadd.f32 %v2668, %v2674
    %2804 = vset.pattern.permute.xlu0 0
    %2805 = vperm.xlu0 %2804, %v2676
    %v2806 = vpop.permute.xlu0 %2805
    %2807 = vset.pattern.permute.xlu0 0
    %2808 = vperm.xlu0 %2807, %v2677
    %v2809 = vpop.permute.xlu0 %2808
    %2810 = vset.pattern.permute.xlu0 0
    %2811 = vperm.xlu0 %2810, %v2678
    %v2812 = vpop.permute.xlu0 %2811
    %2813 = vset.pattern.permute.xlu0 0
    %2814 = vperm.xlu0 %2813, %v2679
    %v2815 = vpop.permute.xlu0 %2814
    %2816 = vset.pattern.permute.xlu0 0
    %2817 = vperm.xlu0 %2816, %v2680
    %v2818 = vpop.permute.xlu0 %2817
    %2819 = vset.pattern.permute.xlu0 0
    %2820 = vperm.xlu0 %2819, %v2681
    %v2821 = vpop.permute.xlu0 %2820
    %2822 = vset.pattern.permute.xlu0 0
    %2823 = vperm.xlu0 %2822, %v2682
    %v2824 = vpop.permute.xlu0 %2823
    %2825 = vset.pattern.permute.xlu0 0
    %2826 = vperm.xlu0 %2825, %v2683
    %v2827 = vpop.permute.xlu0 %2826
    %2828 = vset.pattern.permute.xlu0 0
    %2829 = vperm.xlu0 %2828, %v2684
    %v2830 = vpop.permute.xlu0 %2829
    %2831 = vset.pattern.permute.xlu0 0
    %2832 = vperm.xlu0 %2831, %v2685
    %v2833 = vpop.permute.xlu0 %2832
    %2834 = vset.pattern.permute.xlu0 0
    %2835 = vperm.xlu0 %2834, %v2686
    %v2836 = vpop.permute.xlu0 %2835
    %2837 = vset.pattern.permute.xlu0 0
    %2838 = vperm.xlu0 %2837, %v2687
    %v2839 = vpop.permute.xlu0 %2838
    %2840 = vset.pattern.permute.xlu0 0
    %2841 = vperm.xlu0 %2840, %v2688
    %v2842 = vpop.permute.xlu0 %2841
    %2843 = vset.pattern.permute.xlu0 0
    %2844 = vperm.xlu0 %2843, %v2689
    %v2845 = vpop.permute.xlu0 %2844
    %2846 = vset.pattern.permute.xlu0 0
    %2847 = vperm.xlu0 %2846, %v2690
    %v2848 = vpop.permute.xlu0 %2847
    %2849 = vset.pattern.permute.xlu0 0
    %2850 = vperm.xlu0 %2849, %v2691
    %v2851 = vpop.permute.xlu0 %2850
    %2852 = vset.pattern.permute.xlu0 0
    %2853 = vperm.xlu0 %2852, %v2692
    %v2854 = vpop.permute.xlu0 %2853
    %2855 = vset.pattern.permute.xlu0 0
    %2856 = vperm.xlu0 %2855, %v2693
    %v2857 = vpop.permute.xlu0 %2856
    %2858 = vset.pattern.permute.xlu0 0
    %2859 = vperm.xlu0 %2858, %v2694
    %v2860 = vpop.permute.xlu0 %2859
    %2861 = vset.pattern.permute.xlu0 0
    %2862 = vperm.xlu0 %2861, %v2695
    %v2863 = vpop.permute.xlu0 %2862
    %2864 = vset.pattern.permute.xlu0 0
    %2865 = vperm.xlu0 %2864, %v2696
    %v2866 = vpop.permute.xlu0 %2865
    %2867 = vset.pattern.permute.xlu0 0
    %2868 = vperm.xlu0 %2867, %v2697
    %v2869 = vpop.permute.xlu0 %2868
    %2870 = vset.pattern.permute.xlu0 0
    %2871 = vperm.xlu0 %2870, %v2698
    %v2872 = vpop.permute.xlu0 %2871
    %2873 = vset.pattern.permute.xlu0 0
    %2874 = vperm.xlu0 %2873, %v2699
    %v2875 = vpop.permute.xlu0 %2874
    %2876 = vset.pattern.permute.xlu0 0
    %2877 = vperm.xlu0 %2876, %v2700
    %v2878 = vpop.permute.xlu0 %2877
    %2879 = vset.pattern.permute.xlu0 0
    %2880 = vperm.xlu0 %2879, %v2701
    %v2881 = vpop.permute.xlu0 %2880
    %2882 = vset.pattern.permute.xlu0 0
    %2883 = vperm.xlu0 %2882, %v2702
    %v2884 = vpop.permute.xlu0 %2883
    %2885 = vset.pattern.permute.xlu0 0
    %2886 = vperm.xlu0 %2885, %v2703
    %v2887 = vpop.permute.xlu0 %2886
    %2888 = vset.pattern.permute.xlu0 0
    %2889 = vperm.xlu0 %2888, %v2704
    %v2890 = vpop.permute.xlu0 %2889
    %2891 = vset.pattern.permute.xlu0 0
    %2892 = vperm.xlu0 %2891, %v2705
    %v2893 = vpop.permute.xlu0 %2892
    %2894 = vset.pattern.permute.xlu0 0
    %2895 = vperm.xlu0 %2894, %v2706
    %v2896 = vpop.permute.xlu0 %2895
    %2897 = vset.pattern.permute.xlu0 0
    %2898 = vperm.xlu0 %2897, %v2707
    %v2899 = vpop.permute.xlu0 %2898
    %2900 = vset.pattern.permute.xlu0 0
    %2901 = vperm.xlu0 %2900, %v2708
    %v2902 = vpop.permute.xlu0 %2901
    %2903 = vset.pattern.permute.xlu0 0
    %2904 = vperm.xlu0 %2903, %v2709
    %v2905 = vpop.permute.xlu0 %2904
    %2906 = vset.pattern.permute.xlu0 0
    %2907 = vperm.xlu0 %2906, %v2710
    %v2908 = vpop.permute.xlu0 %2907
    %2909 = vset.pattern.permute.xlu0 0
    %2910 = vperm.xlu0 %2909, %v2711
    %v2911 = vpop.permute.xlu0 %2910
    %2912 = vset.pattern.permute.xlu0 0
    %2913 = vperm.xlu0 %2912, %v2712
    %v2914 = vpop.permute.xlu0 %2913
    %2915 = vset.pattern.permute.xlu0 0
    %2916 = vperm.xlu0 %2915, %v2713
    %v2917 = vpop.permute.xlu0 %2916
    %2918 = vset.pattern.permute.xlu0 0
    %2919 = vperm.xlu0 %2918, %v2714
    %v2920 = vpop.permute.xlu0 %2919
    %2921 = vset.pattern.permute.xlu0 0
    %2922 = vperm.xlu0 %2921, %v2715
    %v2923 = vpop.permute.xlu0 %2922
    %2924 = vset.pattern.permute.xlu0 0
    %2925 = vperm.xlu0 %2924, %v2716
    %v2926 = vpop.permute.xlu0 %2925
    %2927 = vset.pattern.permute.xlu0 0
    %2928 = vperm.xlu0 %2927, %v2717
    %v2929 = vpop.permute.xlu0 %2928
    %2930 = vset.pattern.permute.xlu0 0
    %2931 = vperm.xlu0 %2930, %v2718
    %v2932 = vpop.permute.xlu0 %2931
    %2933 = vset.pattern.permute.xlu0 0
    %2934 = vperm.xlu0 %2933, %v2719
    %v2935 = vpop.permute.xlu0 %2934
    %2936 = vset.pattern.permute.xlu0 0
    %2937 = vperm.xlu0 %2936, %v2720
    %v2938 = vpop.permute.xlu0 %2937
    %2939 = vset.pattern.permute.xlu0 0
    %2940 = vperm.xlu0 %2939, %v2721
    %v2941 = vpop.permute.xlu0 %2940
    %2942 = vset.pattern.permute.xlu0 0
    %2943 = vperm.xlu0 %2942, %v2722
    %v2944 = vpop.permute.xlu0 %2943
    %2945 = vset.pattern.permute.xlu0 0
    %2946 = vperm.xlu0 %2945, %v2723
    %v2947 = vpop.permute.xlu0 %2946
    %2948 = vset.pattern.permute.xlu0 0
    %2949 = vperm.xlu0 %2948, %v2724
    %v2950 = vpop.permute.xlu0 %2949
    %2951 = vset.pattern.permute.xlu0 0
    %2952 = vperm.xlu0 %2951, %v2725
    %v2953 = vpop.permute.xlu0 %2952
    %2954 = vset.pattern.permute.xlu0 0
    %2955 = vperm.xlu0 %2954, %v2726
    %v2956 = vpop.permute.xlu0 %2955
    %2957 = vset.pattern.permute.xlu0 0
    %2958 = vperm.xlu0 %2957, %v2727
    %v2959 = vpop.permute.xlu0 %2958
    %2960 = vset.pattern.permute.xlu0 0
    %2961 = vperm.xlu0 %2960, %v2728
    %v2962 = vpop.permute.xlu0 %2961
    %2963 = vset.pattern.permute.xlu0 0
    %2964 = vperm.xlu0 %2963, %v2729
    %v2965 = vpop.permute.xlu0 %2964
    %2966 = vset.pattern.permute.xlu0 0
    %2967 = vperm.xlu0 %2966, %v2730
    %v2968 = vpop.permute.xlu0 %2967
    %2969 = vset.pattern.permute.xlu0 0
    %2970 = vperm.xlu0 %2969, %v2731
    %v2971 = vpop.permute.xlu0 %2970
    %2972 = vset.pattern.permute.xlu0 0
    %2973 = vperm.xlu0 %2972, %v2732
    %v2974 = vpop.permute.xlu0 %2973
    %2975 = vset.pattern.permute.xlu0 0
    %2976 = vperm.xlu0 %2975, %v2733
    %v2977 = vpop.permute.xlu0 %2976
    %2978 = vset.pattern.permute.xlu0 0
    %2979 = vperm.xlu0 %2978, %v2734
    %v2980 = vpop.permute.xlu0 %2979
    %2981 = vset.pattern.permute.xlu0 0
    %2982 = vperm.xlu0 %2981, %v2735
    %v2983 = vpop.permute.xlu0 %2982
    %2984 = vset.pattern.permute.xlu0 0
    %2985 = vperm.xlu0 %2984, %v2736
    %v2986 = vpop.permute.xlu0 %2985
    %2987 = vset.pattern.permute.xlu0 0
    %2988 = vperm.xlu0 %2987, %v2737
    %v2989 = vpop.permute.xlu0 %2988
    %2990 = vset.pattern.permute.xlu0 0
    %2991 = vperm.xlu0 %2990, %v2738
    %v2992 = vpop.permute.xlu0 %2991
    %2993 = vset.pattern.permute.xlu0 0
    %2994 = vperm.xlu0 %2993, %v2739
    %v2995 = vpop.permute.xlu0 %2994
    %v2996 = vlaneseq
    %v2997 = vand.u32 %v2996, 127
    %v2998 = vlaneseq
    %v2999 = vshrl.u32 %v2998, 7
    %v3000 = vsub.s32 %v2997, %v2999
    %v3001 = vrot.slane %v2806, %v3000
    %v3002 = vadd.s32 %v2997, 4294967288
    %v3003 = vlaneseq
    %v3004 = vshrl.u32 %v3003, 7
    %v3005 = vsub.s32 %v3002, %v3004
    %v3006 = vrot.slane %v2809, %v3005
    %vm3007 = vcmask 130112
    %v3008 = vsel %vm3007, %v3006, %v3001
    %v3009 = vadd.s32 %v2997, 4294967280
    %v3010 = vlaneseq
    %v3011 = vshrl.u32 %v3010, 7
    %v3012 = vsub.s32 %v3009, %v3011
    %v3013 = vrot.slane %v2812, %v3012
    %vm3014 = vcmask 195712
    %v3015 = vsel %vm3014, %v3013, %v3008
    %v3016 = vadd.s32 %v2997, 4294967272
    %v3017 = vlaneseq
    %v3018 = vshrl.u32 %v3017, 7
    %v3019 = vsub.s32 %v3016, %v3018
    %v3020 = vrot.slane %v2815, %v3019
    %vm3021 = vcmask 261312
    %v3022 = vsel %vm3021, %v3020, %v3015
    %v3023 = vadd.s32 %v2997, 4294967264
    %v3024 = vlaneseq
    %v3025 = vshrl.u32 %v3024, 7
    %v3026 = vsub.s32 %v3023, %v3025
    %v3027 = vrot.slane %v2818, %v3026
    %vm3028 = vcmask 326912
    %v3029 = vsel %vm3028, %v3027, %v3022
    %v3030 = vadd.s32 %v2997, 4294967256
    %v3031 = vlaneseq
    %v3032 = vshrl.u32 %v3031, 7
    %v3033 = vsub.s32 %v3030, %v3032
    %v3034 = vrot.slane %v2821, %v3033
    %vm3035 = vcmask 392512
    %v3036 = vsel %vm3035, %v3034, %v3029
    %v3037 = vadd.s32 %v2997, 4294967248
    %v3038 = vlaneseq
    %v3039 = vshrl.u32 %v3038, 7
    %v3040 = vsub.s32 %v3037, %v3039
    %v3041 = vrot.slane %v2824, %v3040
    %vm3042 = vcmask 458112
    %v3043 = vsel %vm3042, %v3041, %v3036
    %v3044 = vadd.s32 %v2997, 4294967240
    %v3045 = vlaneseq
    %v3046 = vshrl.u32 %v3045, 7
    %v3047 = vsub.s32 %v3044, %v3046
    %v3048 = vrot.slane %v2827, %v3047
    %vm3049 = vcmask 523712
    %v3050 = vsel %vm3049, %v3048, %v3043
    %v3051 = vadd.s32 %v2997, 4294967232
    %v3052 = vlaneseq
    %v3053 = vshrl.u32 %v3052, 7
    %v3054 = vsub.s32 %v3051, %v3053
    %v3055 = vrot.slane %v2830, %v3054
    %vm3056 = vcmask 589312
    %v3057 = vsel %vm3056, %v3055, %v3050
    %v3058 = vadd.s32 %v2997, 4294967224
    %v3059 = vlaneseq
    %v3060 = vshrl.u32 %v3059, 7
    %v3061 = vsub.s32 %v3058, %v3060
    %v3062 = vrot.slane %v2833, %v3061
    %vm3063 = vcmask 654912
    %v3064 = vsel %vm3063, %v3062, %v3057
    %v3065 = vadd.s32 %v2997, 4294967216
    %v3066 = vlaneseq
    %v3067 = vshrl.u32 %v3066, 7
    %v3068 = vsub.s32 %v3065, %v3067
    %v3069 = vrot.slane %v2836, %v3068
    %vm3070 = vcmask 720512
    %v3071 = vsel %vm3070, %v3069, %v3064
    %v3072 = vadd.s32 %v2997, 4294967208
    %v3073 = vlaneseq
    %v3074 = vshrl.u32 %v3073, 7
    %v3075 = vsub.s32 %v3072, %v3074
    %v3076 = vrot.slane %v2839, %v3075
    %vm3077 = vcmask 786112
    %v3078 = vsel %vm3077, %v3076, %v3071
    %v3079 = vadd.s32 %v2997, 4294967200
    %v3080 = vlaneseq
    %v3081 = vshrl.u32 %v3080, 7
    %v3082 = vsub.s32 %v3079, %v3081
    %v3083 = vrot.slane %v2842, %v3082
    %vm3084 = vcmask 851712
    %v3085 = vsel %vm3084, %v3083, %v3078
    %v3086 = vadd.s32 %v2997, 4294967192
    %v3087 = vlaneseq
    %v3088 = vshrl.u32 %v3087, 7
    %v3089 = vsub.s32 %v3086, %v3088
    %v3090 = vrot.slane %v2845, %v3089
    %vm3091 = vcmask 917312
    %v3092 = vsel %vm3091, %v3090, %v3085
    %v3093 = vadd.s32 %v2997, 4294967184
    %v3094 = vlaneseq
    %v3095 = vshrl.u32 %v3094, 7
    %v3096 = vsub.s32 %v3093, %v3095
    %v3097 = vrot.slane %v2848, %v3096
    %vm3098 = vcmask 982912
    %v3099 = vsel %vm3098, %v3097, %v3092
    %v3100 = vadd.s32 %v2997, 4294967176
    %v3101 = vlaneseq
    %v3102 = vshrl.u32 %v3101, 7
    %v3103 = vsub.s32 %v3100, %v3102
    %v3104 = vrot.slane %v2851, %v3103
    %vm3105 = vcmask 1048512
    %v3106 = vsel %vm3105, %v3104, %v3099
    %v3107 = vlaneseq
    %v3108 = vshrl.u32 %v3107, 7
    %v3109 = vsub.s32 %v2997, %v3108
    %v3110 = vrot.slane %v2854, %v3109
    %v3111 = vlaneseq
    %v3112 = vshrl.u32 %v3111, 7
    %v3113 = vsub.s32 %v3002, %v3112
    %v3114 = vrot.slane %v2857, %v3113
    %v3115 = vsel %vm3007, %v3114, %v3110
    %v3116 = vlaneseq
    %v3117 = vshrl.u32 %v3116, 7
    %v3118 = vsub.s32 %v3009, %v3117
    %v3119 = vrot.slane %v2860, %v3118
    %v3120 = vsel %vm3014, %v3119, %v3115
    %v3121 = vlaneseq
    %v3122 = vshrl.u32 %v3121, 7
    %v3123 = vsub.s32 %v3016, %v3122
    %v3124 = vrot.slane %v2863, %v3123
    %v3125 = vsel %vm3021, %v3124, %v3120
    %v3126 = vlaneseq
    %v3127 = vshrl.u32 %v3126, 7
    %v3128 = vsub.s32 %v3023, %v3127
    %v3129 = vrot.slane %v2866, %v3128
    %v3130 = vsel %vm3028, %v3129, %v3125
    %v3131 = vlaneseq
    %v3132 = vshrl.u32 %v3131, 7
    %v3133 = vsub.s32 %v3030, %v3132
    %v3134 = vrot.slane %v2869, %v3133
    %v3135 = vsel %vm3035, %v3134, %v3130
    %v3136 = vlaneseq
    %v3137 = vshrl.u32 %v3136, 7
    %v3138 = vsub.s32 %v3037, %v3137
    %v3139 = vrot.slane %v2872, %v3138
    %v3140 = vsel %vm3042, %v3139, %v3135
    %v3141 = vlaneseq
    %v3142 = vshrl.u32 %v3141, 7
    %v3143 = vsub.s32 %v3044, %v3142
    %v3144 = vrot.slane %v2875, %v3143
    %v3145 = vsel %vm3049, %v3144, %v3140
    %v3146 = vlaneseq
    %v3147 = vshrl.u32 %v3146, 7
    %v3148 = vsub.s32 %v3051, %v3147
    %v3149 = vrot.slane %v2878, %v3148
    %v3150 = vsel %vm3056, %v3149, %v3145
    %v3151 = vlaneseq
    %v3152 = vshrl.u32 %v3151, 7
    %v3153 = vsub.s32 %v3058, %v3152
    %v3154 = vrot.slane %v2881, %v3153
    %v3155 = vsel %vm3063, %v3154, %v3150
    %v3156 = vlaneseq
    %v3157 = vshrl.u32 %v3156, 7
    %v3158 = vsub.s32 %v3065, %v3157
    %v3159 = vrot.slane %v2884, %v3158
    %v3160 = vsel %vm3070, %v3159, %v3155
    %v3161 = vlaneseq
    %v3162 = vshrl.u32 %v3161, 7
    %v3163 = vsub.s32 %v3072, %v3162
    %v3164 = vrot.slane %v2887, %v3163
    %v3165 = vsel %vm3077, %v3164, %v3160
    %v3166 = vlaneseq
    %v3167 = vshrl.u32 %v3166, 7
    %v3168 = vsub.s32 %v3079, %v3167
    %v3169 = vrot.slane %v2890, %v3168
    %v3170 = vsel %vm3084, %v3169, %v3165
    %v3171 = vlaneseq
    %v3172 = vshrl.u32 %v3171, 7
    %v3173 = vsub.s32 %v3086, %v3172
    %v3174 = vrot.slane %v2893, %v3173
    %v3175 = vsel %vm3091, %v3174, %v3170
    %v3176 = vlaneseq
    %v3177 = vshrl.u32 %v3176, 7
    %v3178 = vsub.s32 %v3093, %v3177
    %v3179 = vrot.slane %v2896, %v3178
    %v3180 = vsel %vm3098, %v3179, %v3175
    %v3181 = vlaneseq
    %v3182 = vshrl.u32 %v3181, 7
    %v3183 = vsub.s32 %v3100, %v3182
    %v3184 = vrot.slane %v2899, %v3183
    %v3185 = vsel %vm3105, %v3184, %v3180
    %v3186 = vlaneseq
    %v3187 = vshrl.u32 %v3186, 7
    %v3188 = vsub.s32 %v2997, %v3187
    %v3189 = vrot.slane %v2902, %v3188
    %v3190 = vlaneseq
    %v3191 = vshrl.u32 %v3190, 7
    %v3192 = vsub.s32 %v3002, %v3191
    %v3193 = vrot.slane %v2905, %v3192
    %v3194 = vsel %vm3007, %v3193, %v3189
    %v3195 = vlaneseq
    %v3196 = vshrl.u32 %v3195, 7
    %v3197 = vsub.s32 %v3009, %v3196
    %v3198 = vrot.slane %v2908, %v3197
    %v3199 = vsel %vm3014, %v3198, %v3194
    %v3200 = vlaneseq
    %v3201 = vshrl.u32 %v3200, 7
    %v3202 = vsub.s32 %v3016, %v3201
    %v3203 = vrot.slane %v2911, %v3202
    %v3204 = vsel %vm3021, %v3203, %v3199
    %v3205 = vlaneseq
    %v3206 = vshrl.u32 %v3205, 7
    %v3207 = vsub.s32 %v3023, %v3206
    %v3208 = vrot.slane %v2914, %v3207
    %v3209 = vsel %vm3028, %v3208, %v3204
    %v3210 = vlaneseq
    %v3211 = vshrl.u32 %v3210, 7
    %v3212 = vsub.s32 %v3030, %v3211
    %v3213 = vrot.slane %v2917, %v3212
    %v3214 = vsel %vm3035, %v3213, %v3209
    %v3215 = vlaneseq
    %v3216 = vshrl.u32 %v3215, 7
    %v3217 = vsub.s32 %v3037, %v3216
    %v3218 = vrot.slane %v2920, %v3217
    %v3219 = vsel %vm3042, %v3218, %v3214
    %v3220 = vlaneseq
    %v3221 = vshrl.u32 %v3220, 7
    %v3222 = vsub.s32 %v3044, %v3221
    %v3223 = vrot.slane %v2923, %v3222
    %v3224 = vsel %vm3049, %v3223, %v3219
    %v3225 = vlaneseq
    %v3226 = vshrl.u32 %v3225, 7
    %v3227 = vsub.s32 %v3051, %v3226
    %v3228 = vrot.slane %v2926, %v3227
    %v3229 = vsel %vm3056, %v3228, %v3224
    %v3230 = vlaneseq
    %v3231 = vshrl.u32 %v3230, 7
    %v3232 = vsub.s32 %v3058, %v3231
    %v3233 = vrot.slane %v2929, %v3232
    %v3234 = vsel %vm3063, %v3233, %v3229
    %v3235 = vlaneseq
    %v3236 = vshrl.u32 %v3235, 7
    %v3237 = vsub.s32 %v3065, %v3236
    %v3238 = vrot.slane %v2932, %v3237
    %v3239 = vsel %vm3070, %v3238, %v3234
    %v3240 = vlaneseq
    %v3241 = vshrl.u32 %v3240, 7
    %v3242 = vsub.s32 %v3072, %v3241
    %v3243 = vrot.slane %v2935, %v3242
    %v3244 = vsel %vm3077, %v3243, %v3239
    %v3245 = vlaneseq
    %v3246 = vshrl.u32 %v3245, 7
    %v3247 = vsub.s32 %v3079, %v3246
    %v3248 = vrot.slane %v2938, %v3247
    %v3249 = vsel %vm3084, %v3248, %v3244
    %v3250 = vlaneseq
    %v3251 = vshrl.u32 %v3250, 7
    %v3252 = vsub.s32 %v3086, %v3251
    %v3253 = vrot.slane %v2941, %v3252
    %v3254 = vsel %vm3091, %v3253, %v3249
    %v3255 = vlaneseq
    %v3256 = vshrl.u32 %v3255, 7
    %v3257 = vsub.s32 %v3093, %v3256
    %v3258 = vrot.slane %v2944, %v3257
    %v3259 = vsel %vm3098, %v3258, %v3254
    %v3260 = vlaneseq
    %v3261 = vshrl.u32 %v3260, 7
    %v3262 = vsub.s32 %v3100, %v3261
    %v3263 = vrot.slane %v2947, %v3262
    %v3264 = vsel %vm3105, %v3263, %v3259
    %v3265 = vlaneseq
    %v3266 = vshrl.u32 %v3265, 7
    %v3267 = vsub.s32 %v2997, %v3266
    %v3268 = vrot.slane %v2950, %v3267
    %v3269 = vlaneseq
    %v3270 = vshrl.u32 %v3269, 7
    %v3271 = vsub.s32 %v3002, %v3270
    %v3272 = vrot.slane %v2953, %v3271
    %v3273 = vsel %vm3007, %v3272, %v3268
    %v3274 = vlaneseq
    %v3275 = vshrl.u32 %v3274, 7
    %v3276 = vsub.s32 %v3009, %v3275
    %v3277 = vrot.slane %v2956, %v3276
    %v3278 = vsel %vm3014, %v3277, %v3273
    %v3279 = vlaneseq
    %v3280 = vshrl.u32 %v3279, 7
    %v3281 = vsub.s32 %v3016, %v3280
    %v3282 = vrot.slane %v2959, %v3281
    %v3283 = vsel %vm3021, %v3282, %v3278
    %v3284 = vlaneseq
    %v3285 = vshrl.u32 %v3284, 7
    %v3286 = vsub.s32 %v3023, %v3285
    %v3287 = vrot.slane %v2962, %v3286
    %v3288 = vsel %vm3028, %v3287, %v3283
    %v3289 = vlaneseq
    %v3290 = vshrl.u32 %v3289, 7
    %v3291 = vsub.s32 %v3030, %v3290
    %v3292 = vrot.slane %v2965, %v3291
    %v3293 = vsel %vm3035, %v3292, %v3288
    %v3294 = vlaneseq
    %v3295 = vshrl.u32 %v3294, 7
    %v3296 = vsub.s32 %v3037, %v3295
    %v3297 = vrot.slane %v2968, %v3296
    %v3298 = vsel %vm3042, %v3297, %v3293
    %v3299 = vlaneseq
    %v3300 = vshrl.u32 %v3299, 7
    %v3301 = vsub.s32 %v3044, %v3300
    %v3302 = vrot.slane %v2971, %v3301
    %v3303 = vsel %vm3049, %v3302, %v3298
    %v3304 = vlaneseq
    %v3305 = vshrl.u32 %v3304, 7
    %v3306 = vsub.s32 %v3051, %v3305
    %v3307 = vrot.slane %v2974, %v3306
    %v3308 = vsel %vm3056, %v3307, %v3303
    %v3309 = vlaneseq
    %v3310 = vshrl.u32 %v3309, 7
    %v3311 = vsub.s32 %v3058, %v3310
    %v3312 = vrot.slane %v2977, %v3311
    %v3313 = vsel %vm3063, %v3312, %v3308
    %v3314 = vlaneseq
    %v3315 = vshrl.u32 %v3314, 7
    %v3316 = vsub.s32 %v3065, %v3315
    %v3317 = vrot.slane %v2980, %v3316
    %v3318 = vsel %vm3070, %v3317, %v3313
    %v3319 = vlaneseq
    %v3320 = vshrl.u32 %v3319, 7
    %v3321 = vsub.s32 %v3072, %v3320
    %v3322 = vrot.slane %v2983, %v3321
    %v3323 = vsel %vm3077, %v3322, %v3318
    %v3324 = vlaneseq
    %v3325 = vshrl.u32 %v3324, 7
    %v3326 = vsub.s32 %v3079, %v3325
    %v3327 = vrot.slane %v2986, %v3326
    %v3328 = vsel %vm3084, %v3327, %v3323
    %v3329 = vlaneseq
    %v3330 = vshrl.u32 %v3329, 7
    %v3331 = vsub.s32 %v3086, %v3330
    %v3332 = vrot.slane %v2989, %v3331
    %v3333 = vsel %vm3091, %v3332, %v3328
    %v3334 = vlaneseq
    %v3335 = vshrl.u32 %v3334, 7
    %v3336 = vsub.s32 %v3093, %v3335
    %v3337 = vrot.slane %v2992, %v3336
    %v3338 = vsel %vm3098, %v3337, %v3333
    %v3339 = vlaneseq
    %v3340 = vshrl.u32 %v3339, 7
    %v3341 = vsub.s32 %v3100, %v3340
    %v3342 = vrot.slane %v2995, %v3341
    %v3343 = vsel %vm3105, %v3342, %v3338
    %vm3344 = vcmask 1041409
    %v3345 = vsel %vm3344, %v3185, %v3106
    %vm3346 = vcmask 1042434
    %v3347 = vsel %vm3346, %v3264, %v3345
    %vm3348 = vcmask 1043459
    %v3349 = vsel %vm3348, %v3343, %v3347
    %3351 = vst [vmem:[#allocation3] sm:$0xf] %v3349
    // Predicated region
    $region46: #{tpu_custom_call.1} parent=1 // pred_check
      _
    $region47: #{tpu_custom_call.1} parent=1 // pred_check_branch
      %3353 = sbr.rel (0) target = $region49
    $region48: #{tpu_custom_call.1} parent=1 // pred_region
      %s3355 = ssub.s32 64, 64
      %3356 = vsyncadd [#allocation4], %s3355
      %s3358 = sshll.u32 [#allocation3], 4
      %s3359 = int_to_ptr.vmem [resolvable:$true] %s3358
      %3361 = dma.vmem_to_hbm [thread:$0]  %s3359, 64, %s11, [#allocation4]
    $region49: #{tpu_custom_call.1} parent=1 // pred_fallthru
      _
    // Predicated region
    $region50: #{tpu_custom_call.1} parent=1 // pred_check
      _
    $region51: #{tpu_custom_call.1} parent=1 // pred_check_branch
      %3363 = sbr.rel (0) target = $region53
    $region52: #{tpu_custom_call.1} parent=1 // pred_region
      %3364 = dma.done [#allocation4], 64
    $region53: #{tpu_custom_call.1} parent=1 // pred_fallthru
      _
    %3365 = vsyncpa [#allocation4], 1

// kernel: tpu_custom_call.1
$region0: #{tpu_custom_call.1}
  #allocation0 [shape = 'u32[]', space=smem, size = 0x4, offset = 0x4, fixed_abs, tag = 'smem constant byte address 0x4 - core index']
  #allocation1 [shape = 'u32[144,128]{1,0:T(1,128)}', space=vmem, size = 0x12000, scoped, tag = 'internal scratch']
  #allocation2 [shape = 'f32[1,1]{1,0:T(1,128)S(1)}', space=vmem, size = 0x200, scoped, tag = 'scoped memory for tpu_custom_call.1']
  %s0 = inlined_call_operand.vmem [shape: f32[512,32], index: 0, kind: input, shape index: {}]
  %s1 = inlined_call_operand.vmem [shape: bf16[32,256], index: 1, kind: input, shape index: {}]
  %s2 = inlined_call_operand.vmem [shape: bf16[1,256], index: 2, kind: input, shape index: {}]
  %s3 = inlined_call_operand.vmem [shape: bf16[256,128], index: 3, kind: input, shape index: {}]
  %s4 = inlined_call_operand.vmem [shape: bf16[1,128], index: 4, kind: input, shape index: {}]
  %s5 = inlined_call_operand.vmem [shape: bf16[128,64], index: 5, kind: input, shape index: {}]
  %s6 = inlined_call_operand.vmem [shape: bf16[1,64], index: 6, kind: input, shape index: {}]
  %s7 = inlined_call_operand.vmem [shape: bf16[64,32], index: 7, kind: input, shape index: {}]
  %s8 = inlined_call_operand.vmem [shape: bf16[1,32], index: 8, kind: input, shape index: {}]
  %s9 = inlined_call_operand.vmem [shape: f32[1,32], index: 9, kind: input, shape index: {}]
  %s10 = inlined_call_operand.<no memory space> [shape: f32[1,1], index: 10, kind: input, shape index: {}]
  %s11 = inlined_call_operand.vmem [shape: f32[512,1], index: 11, kind: output, shape index: {}]
  %s12 = sld [smem:[#allocation0]]
  $region54: #{tpu_custom_call.1} parent=0
    _
  %s14 = ssub.s32 1, %s12
  %s15 = scalar_select 0, %s14, %s12
  %v16 = vstv %s10
  %17 = vst [vmem:[#allocation2] sm:$0x1] %v16
  // Predicated region
  $region2: #{tpu_custom_call.1} parent=0 // pred_check
    _
  $region3: #{tpu_custom_call.1} parent=0 // pred_check_branch
    %19 = sbr.rel (0) target = $region5
  $region4: #{tpu_custom_call.1} parent=0 // pred_region
    _
  $region5: #{tpu_custom_call.1} parent=0 // pred_fallthru
    _
  // Predicated region
  $region6: #{tpu_custom_call.1} parent=0 // pred_check
    _
  $region7: #{tpu_custom_call.1} parent=0 // pred_check_branch
    %21 = sbr.rel (0) target = $region9
  $region8: #{tpu_custom_call.1} parent=0 // pred_region
    _
  $region9: #{tpu_custom_call.1} parent=0 // pred_fallthru
    _
  // Predicated region
  $region10: #{tpu_custom_call.1} parent=0 // pred_check
    _
  $region11: #{tpu_custom_call.1} parent=0 // pred_check_branch
    %23 = sbr.rel (0) target = $region13
  $region12: #{tpu_custom_call.1} parent=0 // pred_region
    _
  $region13: #{tpu_custom_call.1} parent=0 // pred_fallthru
    _
  // Predicated region
  $region14: #{tpu_custom_call.1} parent=0 // pred_check
    _
  $region15: #{tpu_custom_call.1} parent=0 // pred_check_branch
    %25 = sbr.rel (0) target = $region17
  $region16: #{tpu_custom_call.1} parent=0 // pred_region
    _
  $region17: #{tpu_custom_call.1} parent=0 // pred_fallthru
    _
  // Predicated region
  $region18: #{tpu_custom_call.1} parent=0 // pred_check
    _
  $region19: #{tpu_custom_call.1} parent=0 // pred_check_branch
    %27 = sbr.rel (0) target = $region21
  $region20: #{tpu_custom_call.1} parent=0 // pred_region
    _
  $region21: #{tpu_custom_call.1} parent=0 // pred_fallthru
    _
  // Predicated region
  $region22: #{tpu_custom_call.1} parent=0 // pred_check
    _
  $region23: #{tpu_custom_call.1} parent=0 // pred_check_branch
    %29 = sbr.rel (0) target = $region25
  $region24: #{tpu_custom_call.1} parent=0 // pred_region
    _
  $region25: #{tpu_custom_call.1} parent=0 // pred_fallthru
    _
  // Predicated region
  $region26: #{tpu_custom_call.1} parent=0 // pred_check
    _
  $region27: #{tpu_custom_call.1} parent=0 // pred_check_branch
    %31 = sbr.rel (0) target = $region29
  $region28: #{tpu_custom_call.1} parent=0 // pred_region
    _
  $region29: #{tpu_custom_call.1} parent=0 // pred_fallthru
    _
  // Predicated region
  $region30: #{tpu_custom_call.1} parent=0 // pred_check
    _
  $region31: #{tpu_custom_call.1} parent=0 // pred_check_branch
    %33 = sbr.rel (0) target = $region33
  $region32: #{tpu_custom_call.1} parent=0 // pred_region
    _
  $region33: #{tpu_custom_call.1} parent=0 // pred_fallthru
    _
  // Predicated region
  $region34: #{tpu_custom_call.1} parent=0 // pred_check
    _
  $region35: #{tpu_custom_call.1} parent=0 // pred_check_branch
    %35 = sbr.rel (0) target = $region37
  $region36: #{tpu_custom_call.1} parent=0 // pred_region
    _
  $region37: #{tpu_custom_call.1} parent=0 // pred_fallthru
    _
  // Predicated region
  $region38: #{tpu_custom_call.1} parent=0 // pred_check
    _
  $region39: #{tpu_custom_call.1} parent=0 // pred_check_branch
    %37 = sbr.rel (0) target = $region41
  $region40: #{tpu_custom_call.1} parent=0 // pred_region
    _
  $region41: #{tpu_custom_call.1} parent=0 // pred_fallthru
    _
  // Predicated region
  $region42: #{tpu_custom_call.1} parent=0 // pred_check
    _
  $region43: #{tpu_custom_call.1} parent=0 // pred_check_branch
    %39 = sbr.rel (0) target = $region45
  $region44: #{tpu_custom_call.1} parent=0 // pred_region
    _
  $region45: #{tpu_custom_call.1} parent=0 // pred_fallthru
    _
  %v41 = vld [vmem:[%s0] sm:$0xff]
  %v42 = vld [vmem:[%s0 + $0x8] sm:$0xff]
  %v43 = vld [vmem:[%s0 + $0x10] sm:$0xff]
  %v44 = vld [vmem:[%s0 + $0x18] sm:$0xff]
  %v45 = vld [vmem:[%s0 + $0x20] sm:$0xff]
  %v46 = vld [vmem:[%s0 + $0x28] sm:$0xff]
  %v47 = vld [vmem:[%s0 + $0x30] sm:$0xff]
  %v48 = vld [vmem:[%s0 + $0x38] sm:$0xff]
  %v49 = vld [vmem:[%s0 + $0x40] sm:$0xff]
  %v50 = vld [vmem:[%s0 + $0x48] sm:$0xff]
  %v51 = vld [vmem:[%s0 + $0x50] sm:$0xff]
  %v52 = vld [vmem:[%s0 + $0x58] sm:$0xff]
  %v53 = vld [vmem:[%s0 + $0x60] sm:$0xff]
  %v54 = vld [vmem:[%s0 + $0x68] sm:$0xff]
  %v55 = vld [vmem:[%s0 + $0x70] sm:$0xff]
  %v56 = vld [vmem:[%s0 + $0x78] sm:$0xff]
  %v57 = vld [vmem:[%s0 + $0x80] sm:$0xff]
  %v58 = vld [vmem:[%s0 + $0x88] sm:$0xff]
  %v59 = vld [vmem:[%s0 + $0x90] sm:$0xff]
  %v60 = vld [vmem:[%s0 + $0x98] sm:$0xff]
  %v61 = vld [vmem:[%s0 + $0xa0] sm:$0xff]
  %v62 = vld [vmem:[%s0 + $0xa8] sm:$0xff]
  %v63 = vld [vmem:[%s0 + $0xb0] sm:$0xff]
  %v64 = vld [vmem:[%s0 + $0xb8] sm:$0xff]
  %v65 = vld [vmem:[%s0 + $0xc0] sm:$0xff]
  %v66 = vld [vmem:[%s0 + $0xc8] sm:$0xff]
  %v67 = vld [vmem:[%s0 + $0xd0] sm:$0xff]
  %v68 = vld [vmem:[%s0 + $0xd8] sm:$0xff]
  %v69 = vld [vmem:[%s0 + $0xe0] sm:$0xff]
  %v70 = vld [vmem:[%s0 + $0xe8] sm:$0xff]
  %v71 = vld [vmem:[%s0 + $0xf0] sm:$0xff]
  %v72 = vld [vmem:[%s0 + $0xf8] sm:$0xff]
  %v73 = vld [vmem:[%s0 + $0x100] sm:$0xff]
  %v74 = vld [vmem:[%s0 + $0x108] sm:$0xff]
  %v75 = vld [vmem:[%s0 + $0x110] sm:$0xff]
  %v76 = vld [vmem:[%s0 + $0x118] sm:$0xff]
  %v77 = vld [vmem:[%s0 + $0x120] sm:$0xff]
  %v78 = vld [vmem:[%s0 + $0x128] sm:$0xff]
  %v79 = vld [vmem:[%s0 + $0x130] sm:$0xff]
  %v80 = vld [vmem:[%s0 + $0x138] sm:$0xff]
  %v81 = vld [vmem:[%s0 + $0x140] sm:$0xff]
  %v82 = vld [vmem:[%s0 + $0x148] sm:$0xff]
  %v83 = vld [vmem:[%s0 + $0x150] sm:$0xff]
  %v84 = vld [vmem:[%s0 + $0x158] sm:$0xff]
  %v85 = vld [vmem:[%s0 + $0x160] sm:$0xff]
  %v86 = vld [vmem:[%s0 + $0x168] sm:$0xff]
  %v87 = vld [vmem:[%s0 + $0x170] sm:$0xff]
  %v88 = vld [vmem:[%s0 + $0x178] sm:$0xff]
  %v89 = vld [vmem:[%s0 + $0x180] sm:$0xff]
  %v90 = vld [vmem:[%s0 + $0x188] sm:$0xff]
  %v91 = vld [vmem:[%s0 + $0x190] sm:$0xff]
  %v92 = vld [vmem:[%s0 + $0x198] sm:$0xff]
  %v93 = vld [vmem:[%s0 + $0x1a0] sm:$0xff]
  %v94 = vld [vmem:[%s0 + $0x1a8] sm:$0xff]
  %v95 = vld [vmem:[%s0 + $0x1b0] sm:$0xff]
  %v96 = vld [vmem:[%s0 + $0x1b8] sm:$0xff]
  %v97 = vld [vmem:[%s0 + $0x1c0] sm:$0xff]
  %v98 = vld [vmem:[%s0 + $0x1c8] sm:$0xff]
  %v99 = vld [vmem:[%s0 + $0x1d0] sm:$0xff]
  %v100 = vld [vmem:[%s0 + $0x1d8] sm:$0xff]
  %v101 = vld [vmem:[%s0 + $0x1e0] sm:$0xff]
  %v102 = vld [vmem:[%s0 + $0x1e8] sm:$0xff]
  %v103 = vld [vmem:[%s0 + $0x1f0] sm:$0xff]
  %v104 = vld [vmem:[%s0 + $0x1f8] sm:$0xff]
  %v105 = vpack.c.bf16 %v42, %v41
  %v106 = vpack.c.bf16 %v44, %v43
  %v107 = vpack.c.bf16 %v46, %v45
  %v108 = vpack.c.bf16 %v48, %v47
  %v109 = vpack.c.bf16 %v50, %v49
  %v110 = vpack.c.bf16 %v52, %v51
  %v111 = vpack.c.bf16 %v54, %v53
  %v112 = vpack.c.bf16 %v56, %v55
  %v113 = vpack.c.bf16 %v58, %v57
  %v114 = vpack.c.bf16 %v60, %v59
  %v115 = vpack.c.bf16 %v62, %v61
  %v116 = vpack.c.bf16 %v64, %v63
  %v117 = vpack.c.bf16 %v66, %v65
  %v118 = vpack.c.bf16 %v68, %v67
  %v119 = vpack.c.bf16 %v70, %v69
  %v120 = vpack.c.bf16 %v72, %v71
  %v121 = vpack.c.bf16 %v74, %v73
  %v122 = vpack.c.bf16 %v76, %v75
  %v123 = vpack.c.bf16 %v78, %v77
  %v124 = vpack.c.bf16 %v80, %v79
  %v125 = vpack.c.bf16 %v82, %v81
  %v126 = vpack.c.bf16 %v84, %v83
  %v127 = vpack.c.bf16 %v86, %v85
  %v128 = vpack.c.bf16 %v88, %v87
  %v129 = vpack.c.bf16 %v90, %v89
  %v130 = vpack.c.bf16 %v92, %v91
  %v131 = vpack.c.bf16 %v94, %v93
  %v132 = vpack.c.bf16 %v96, %v95
  %v133 = vpack.c.bf16 %v98, %v97
  %v134 = vpack.c.bf16 %v100, %v99
  %v135 = vpack.c.bf16 %v102, %v101
  %v136 = vpack.c.bf16 %v104, %v103
  %v137 = vld [vmem:[%s1] sm:$0xff]
  %v138 = vld [vmem:[%s1 + $0x8] sm:$0xff]
  %v139 = vld [vmem:[%s1 + $0x10] sm:$0xff]
  %v140 = vld [vmem:[%s1 + $0x18] sm:$0xff]
  %v145 = vunpack.c.l.b16 %v137
  %v146 = vunpack.c.h.b16 %v137
  %v147 = vunpack.c.l.b16 %v138
  %v148 = vunpack.c.h.b16 %v138
  %v149 = vunpack.c.l.b16 %v139
  %v150 = vunpack.c.h.b16 %v139
  %v151 = vunpack.c.l.b16 %v140
  %v152 = vunpack.c.h.b16 %v140
  %v153 = vpack.c.b16 %v147, %v145
  %v154 = vpack.c.b16 %v148, %v146
  %v155 = vpack.c.b16 %v151, %v149
  %v156 = vpack.c.b16 %v152, %v150
  %vm161 = vcmask 261120
  %v163 = vsel %vm161, %v105, 0
  %v166 = vsel %vm161, %v106, 0
  %v169 = vsel %vm161, %v107, 0
  %v172 = vsel %vm161, %v108, 0
  %v175 = vsel %vm161, %v109, 0
  %v178 = vsel %vm161, %v110, 0
  %v181 = vsel %vm161, %v111, 0
  %v184 = vsel %vm161, %v112, 0
  %v187 = vsel %vm161, %v113, 0
  %v190 = vsel %vm161, %v114, 0
  %v193 = vsel %vm161, %v115, 0
  %v196 = vsel %vm161, %v116, 0
  %v199 = vsel %vm161, %v117, 0
  %v202 = vsel %vm161, %v118, 0
  %v205 = vsel %vm161, %v119, 0
  %v208 = vsel %vm161, %v120, 0
  %v211 = vsel %vm161, %v121, 0
  %v214 = vsel %vm161, %v122, 0
  %v217 = vsel %vm161, %v123, 0
  %v220 = vsel %vm161, %v124, 0
  %v223 = vsel %vm161, %v125, 0
  %v226 = vsel %vm161, %v126, 0
  %v229 = vsel %vm161, %v127, 0
  %v232 = vsel %vm161, %v128, 0
  %v235 = vsel %vm161, %v129, 0
  %v238 = vsel %vm161, %v130, 0
  %v241 = vsel %vm161, %v131, 0
  %v244 = vsel %vm161, %v132, 0
  %v247 = vsel %vm161, %v133, 0
  %v250 = vsel %vm161, %v134, 0
  %v253 = vsel %vm161, %v135, 0
  %v256 = vsel %vm161, %v136, 0
  %258 = vmatprep.subr.bf16.mxu0 %v154
  %259 = vmatpush1.bf16.msra.mxu0 %v153
  %260 = vmatprep.subr.bf16.mxu0 %v156
  %261 = vmatpush1.bf16.msra.mxu0 %v155
  %262 = vmatprep.subr.bf16.mxu0 0
  %263 = vmatpush1.bf16.msra.mxu0 0
  %264 = vmatprep.subr.bf16.mxu0 0
  %265 = vmatpush1.bf16.msra.mxu0 0
  %266 = vmatprep.subr.bf16.mxu0 0
  %267 = vmatpush1.bf16.msra.mxu0 0
  %268 = vmatprep.subr.bf16.mxu0 0
  %269 = vmatpush1.bf16.msra.mxu0 0
  %270 = vmatprep.subr.bf16.mxu0 0
  %271 = vmatpush1.bf16.msra.mxu0 0
  %272 = vmatprep.subr.bf16.mxu0 0
  %273 = vmatpush1.bf16.msra.mxu0 0
  %274 = vmatprep.subr.bf16.mxu0 0
  %275 = vmatpush1.bf16.msra.mxu0 0
  %276 = vmatprep.subr.bf16.mxu0 0
  %277 = vmatpush1.bf16.msra.mxu0 0
  %278 = vmatprep.subr.bf16.mxu0 0
  %279 = vmatpush1.bf16.msra.mxu0 0
  %280 = vmatprep.subr.bf16.mxu0 0
  %281 = vmatpush1.bf16.msra.mxu0 0
  %282 = vmatprep.subr.bf16.mxu0 0
  %283 = vmatpush1.bf16.msra.mxu0 0
  %284 = vmatprep.subr.bf16.mxu0 0
  %285 = vmatpush1.bf16.msra.mxu0 0
  %286 = vmatprep.subr.bf16.mxu0 0
  %287 = vmatpush1.bf16.msra.mxu0 0
  %288 = vmatprep.subr.bf16.mxu0 0
  %289 = vmatpush1.bf16.msra.mxu0 0
  %290 = vmatprep.mubr.bf16.mxu0 0
  %291 = vmatmul.mubr.bf16.gmra.mrb[0].mxu0 %v163
  %v292 = vpop.f32.mrb[0].mxu0
  %v293 = vadd.f32 0.0, %v292
  %v294 = vpop.f32.mrb[0].mxu0
  %v295 = vadd.f32 0.0, %v294
  %v296 = vpop.f32.mrb[0].mxu0
  %v297 = vadd.f32 0.0, %v296
  %v298 = vpop.f32.mrb[0].mxu0
  %v299 = vadd.f32 0.0, %v298
  %300 = vmatprep.mubr.bf16.mxu0 0
  %301 = vmatmul.mubr.bf16.gmra.mrb[0].mxu0 %v166
  %v302 = vpop.f32.mrb[0].mxu0
  %v303 = vadd.f32 0.0, %v302
  %v304 = vpop.f32.mrb[0].mxu0
  %v305 = vadd.f32 0.0, %v304
  %v306 = vpop.f32.mrb[0].mxu0
  %v307 = vadd.f32 0.0, %v306
  %v308 = vpop.f32.mrb[0].mxu0
  %v309 = vadd.f32 0.0, %v308
  %310 = vmatprep.mubr.bf16.mxu0 0
  %311 = vmatmul.mubr.bf16.gmra.mrb[0].mxu0 %v169
  %v312 = vpop.f32.mrb[0].mxu0
  %v313 = vadd.f32 0.0, %v312
  %v314 = vpop.f32.mrb[0].mxu0
  %v315 = vadd.f32 0.0, %v314
  %v316 = vpop.f32.mrb[0].mxu0
  %v317 = vadd.f32 0.0, %v316
  %v318 = vpop.f32.mrb[0].mxu0
  %v319 = vadd.f32 0.0, %v318
  %320 = vmatprep.mubr.bf16.mxu0 0
  %321 = vmatmul.mubr.bf16.gmra.mrb[0].mxu0 %v172
  %v322 = vpop.f32.mrb[0].mxu0
  %v323 = vadd.f32 0.0, %v322
  %v324 = vpop.f32.mrb[0].mxu0
  %v325 = vadd.f32 0.0, %v324
  %v326 = vpop.f32.mrb[0].mxu0
  %v327 = vadd.f32 0.0, %v326
  %v328 = vpop.f32.mrb[0].mxu0
  %v329 = vadd.f32 0.0, %v328
  %330 = vmatprep.mubr.bf16.mxu0 0
  %331 = vmatmul.mubr.bf16.gmra.mrb[0].mxu0 %v175
  %v332 = vpop.f32.mrb[0].mxu0
  %v333 = vadd.f32 0.0, %v332
  %v334 = vpop.f32.mrb[0].mxu0
  %v335 = vadd.f32 0.0, %v334
  %v336 = vpop.f32.mrb[0].mxu0
  %v337 = vadd.f32 0.0, %v336
  %v338 = vpop.f32.mrb[0].mxu0
  %v339 = vadd.f32 0.0, %v338
  %340 = vmatprep.mubr.bf16.mxu0 0
  %341 = vmatmul.mubr.bf16.gmra.mrb[0].mxu0 %v178
  %v342 = vpop.f32.mrb[0].mxu0
  %v343 = vadd.f32 0.0, %v342
  %v344 = vpop.f32.mrb[0].mxu0
  %v345 = vadd.f32 0.0, %v344
  %v346 = vpop.f32.mrb[0].mxu0
  %v347 = vadd.f32 0.0, %v346
  %v348 = vpop.f32.mrb[0].mxu0
  %v349 = vadd.f32 0.0, %v348
  %350 = vmatprep.mubr.bf16.mxu0 0
  %351 = vmatmul.mubr.bf16.gmra.mrb[0].mxu0 %v181
  %v352 = vpop.f32.mrb[0].mxu0
  %v353 = vadd.f32 0.0, %v352
  %v354 = vpop.f32.mrb[0].mxu0
  %v355 = vadd.f32 0.0, %v354
  %v356 = vpop.f32.mrb[0].mxu0
  %v357 = vadd.f32 0.0, %v356
  %v358 = vpop.f32.mrb[0].mxu0
  %v359 = vadd.f32 0.0, %v358
  %360 = vmatprep.mubr.bf16.mxu0 0
  %361 = vmatmul.mubr.bf16.gmra.mrb[0].mxu0 %v184
  %v362 = vpop.f32.mrb[0].mxu0
  %v363 = vadd.f32 0.0, %v362
  %v364 = vpop.f32.mrb[0].mxu0
  %v365 = vadd.f32 0.0, %v364
  %v366 = vpop.f32.mrb[0].mxu0
  %v367 = vadd.f32 0.0, %v366
  %v368 = vpop.f32.mrb[0].mxu0
  %v369 = vadd.f32 0.0, %v368
  %370 = vmatprep.mubr.bf16.mxu0 0
  %371 = vmatmul.mubr.bf16.gmra.mrb[0].mxu0 %v187
  %v372 = vpop.f32.mrb[0].mxu0
  %v373 = vadd.f32 0.0, %v372
  %v374 = vpop.f32.mrb[0].mxu0
  %v375 = vadd.f32 0.0, %v374
  %v376 = vpop.f32.mrb[0].mxu0
  %v377 = vadd.f32 0.0, %v376
  %v378 = vpop.f32.mrb[0].mxu0
  %v379 = vadd.f32 0.0, %v378
  %380 = vmatprep.mubr.bf16.mxu0 0
  %381 = vmatmul.mubr.bf16.gmra.mrb[0].mxu0 %v190
  %v382 = vpop.f32.mrb[0].mxu0
  %v383 = vadd.f32 0.0, %v382
  %v384 = vpop.f32.mrb[0].mxu0
  %v385 = vadd.f32 0.0, %v384
  %v386 = vpop.f32.mrb[0].mxu0
  %v387 = vadd.f32 0.0, %v386
  %v388 = vpop.f32.mrb[0].mxu0
  %v389 = vadd.f32 0.0, %v388
  %390 = vmatprep.mubr.bf16.mxu0 0
  %391 = vmatmul.mubr.bf16.gmra.mrb[0].mxu0 %v193
  %v392 = vpop.f32.mrb[0].mxu0
  %v393 = vadd.f32 0.0, %v392
  %v394 = vpop.f32.mrb[0].mxu0
  %v395 = vadd.f32 0.0, %v394
  %v396 = vpop.f32.mrb[0].mxu0
  %v397 = vadd.f32 0.0, %v396
  %v398 = vpop.f32.mrb[0].mxu0
  %v399 = vadd.f32 0.0, %v398
  %400 = vmatprep.mubr.bf16.mxu0 0
  %401 = vmatmul.mubr.bf16.gmra.mrb[0].mxu0 %v196
  %v402 = vpop.f32.mrb[0].mxu0
  %v403 = vadd.f32 0.0, %v402
  %v404 = vpop.f32.mrb[0].mxu0
  %v405 = vadd.f32 0.0, %v404
  %v406 = vpop.f32.mrb[0].mxu0
  %v407 = vadd.f32 0.0, %v406
  %v408 = vpop.f32.mrb[0].mxu0
  %v409 = vadd.f32 0.0, %v408
  %410 = vmatprep.mubr.bf16.mxu0 0
  %411 = vmatmul.mubr.bf16.gmra.mrb[0].mxu0 %v199
  %v412 = vpop.f32.mrb[0].mxu0
  %v413 = vadd.f32 0.0, %v412
  %v414 = vpop.f32.mrb[0].mxu0
  %v415 = vadd.f32 0.0, %v414
  %v416 = vpop.f32.mrb[0].mxu0
  %v417 = vadd.f32 0.0, %v416
  %v418 = vpop.f32.mrb[0].mxu0
  %v419 = vadd.f32 0.0, %v418
  %420 = vmatprep.mubr.bf16.mxu0 0
  %421 = vmatmul.mubr.bf16.gmra.mrb[0].mxu0 %v202
  %v422 = vpop.f32.mrb[0].mxu0
  %v423 = vadd.f32 0.0, %v422
  %v424 = vpop.f32.mrb[0].mxu0
  %v425 = vadd.f32 0.0, %v424
  %v426 = vpop.f32.mrb[0].mxu0
  %v427 = vadd.f32 0.0, %v426
  %v428 = vpop.f32.mrb[0].mxu0
  %v429 = vadd.f32 0.0, %v428
  %430 = vmatprep.mubr.bf16.mxu0 0
  %431 = vmatmul.mubr.bf16.gmra.mrb[0].mxu0 %v205
  %v432 = vpop.f32.mrb[0].mxu0
  %v433 = vadd.f32 0.0, %v432
  %v434 = vpop.f32.mrb[0].mxu0
  %v435 = vadd.f32 0.0, %v434
  %v436 = vpop.f32.mrb[0].mxu0
  %v437 = vadd.f32 0.0, %v436
  %v438 = vpop.f32.mrb[0].mxu0
  %v439 = vadd.f32 0.0, %v438
  %440 = vmatprep.mubr.bf16.mxu0 0
  %441 = vmatmul.mubr.bf16.gmra.mrb[0].mxu0 %v208
  %v442 = vpop.f32.mrb[0].mxu0
  %v443 = vadd.f32 0.0, %v442
  %v444 = vpop.f32.mrb[0].mxu0
  %v445 = vadd.f32 0.0, %v444
  %v446 = vpop.f32.mrb[0].mxu0
  %v447 = vadd.f32 0.0, %v446
  %v448 = vpop.f32.mrb[0].mxu0
  %v449 = vadd.f32 0.0, %v448
  %450 = vmatprep.mubr.bf16.mxu0 0
  %451 = vmatmul.mubr.bf16.gmra.mrb[0].mxu0 %v211
  %v452 = vpop.f32.mrb[0].mxu0
  %v453 = vadd.f32 0.0, %v452
  %v454 = vpop.f32.mrb[0].mxu0
  %v455 = vadd.f32 0.0, %v454
  %v456 = vpop.f32.mrb[0].mxu0
  %v457 = vadd.f32 0.0, %v456
  %v458 = vpop.f32.mrb[0].mxu0
  %v459 = vadd.f32 0.0, %v458
  %460 = vmatprep.mubr.bf16.mxu0 0
  %461 = vmatmul.mubr.bf16.gmra.mrb[0].mxu0 %v214
  %v462 = vpop.f32.mrb[0].mxu0
  %v463 = vadd.f32 0.0, %v462
  %v464 = vpop.f32.mrb[0].mxu0
  %v465 = vadd.f32 0.0, %v464
  %v466 = vpop.f32.mrb[0].mxu0
  %v467 = vadd.f32 0.0, %v466
  %v468 = vpop.f32.mrb[0].mxu0
  %v469 = vadd.f32 0.0, %v468
  %470 = vmatprep.mubr.bf16.mxu0 0
  %471 = vmatmul.mubr.bf16.gmra.mrb[0].mxu0 %v217
  %v472 = vpop.f32.mrb[0].mxu0
  %v473 = vadd.f32 0.0, %v472
  %v474 = vpop.f32.mrb[0].mxu0
  %v475 = vadd.f32 0.0, %v474
  %v476 = vpop.f32.mrb[0].mxu0
  %v477 = vadd.f32 0.0, %v476
  %v478 = vpop.f32.mrb[0].mxu0
  %v479 = vadd.f32 0.0, %v478
  %480 = vmatprep.mubr.bf16.mxu0 0
  %481 = vmatmul.mubr.bf16.gmra.mrb[0].mxu0 %v220
  %v482 = vpop.f32.mrb[0].mxu0
  %v483 = vadd.f32 0.0, %v482
  %v484 = vpop.f32.mrb[0].mxu0
  %v485 = vadd.f32 0.0, %v484
  %v486 = vpop.f32.mrb[0].mxu0
  %v487 = vadd.f32 0.0, %v486
  %v488 = vpop.f32.mrb[0].mxu0
  %v489 = vadd.f32 0.0, %v488
  %490 = vmatprep.mubr.bf16.mxu0 0
  %491 = vmatmul.mubr.bf16.gmra.mrb[0].mxu0 %v223
  %v492 = vpop.f32.mrb[0].mxu0
  %v493 = vadd.f32 0.0, %v492
  %v494 = vpop.f32.mrb[0].mxu0
  %v495 = vadd.f32 0.0, %v494
  %v496 = vpop.f32.mrb[0].mxu0
  %v497 = vadd.f32 0.0, %v496
  %v498 = vpop.f32.mrb[0].mxu0
  %v499 = vadd.f32 0.0, %v498
  %500 = vmatprep.mubr.bf16.mxu0 0
  %501 = vmatmul.mubr.bf16.gmra.mrb[0].mxu0 %v226
  %v502 = vpop.f32.mrb[0].mxu0
  %v503 = vadd.f32 0.0, %v502
  %v504 = vpop.f32.mrb[0].mxu0
  %v505 = vadd.f32 0.0, %v504
  %v506 = vpop.f32.mrb[0].mxu0
  %v507 = vadd.f32 0.0, %v506
  %v508 = vpop.f32.mrb[0].mxu0
  %v509 = vadd.f32 0.0, %v508
  %510 = vmatprep.mubr.bf16.mxu0 0
  %511 = vmatmul.mubr.bf16.gmra.mrb[0].mxu0 %v229
  %v512 = vpop.f32.mrb[0].mxu0
  %v513 = vadd.f32 0.0, %v512
  %v514 = vpop.f32.mrb[0].mxu0
  %v515 = vadd.f32 0.0, %v514
  %v516 = vpop.f32.mrb[0].mxu0
  %v517 = vadd.f32 0.0, %v516
  %v518 = vpop.f32.mrb[0].mxu0
  %v519 = vadd.f32 0.0, %v518
  %520 = vmatprep.mubr.bf16.mxu0 0
  %521 = vmatmul.mubr.bf16.gmra.mrb[0].mxu0 %v232
  %v522 = vpop.f32.mrb[0].mxu0
  %v523 = vadd.f32 0.0, %v522
  %v524 = vpop.f32.mrb[0].mxu0
  %v525 = vadd.f32 0.0, %v524
  %v526 = vpop.f32.mrb[0].mxu0
  %v527 = vadd.f32 0.0, %v526
  %v528 = vpop.f32.mrb[0].mxu0
  %v529 = vadd.f32 0.0, %v528
  %530 = vmatprep.mubr.bf16.mxu0 0
  %531 = vmatmul.mubr.bf16.gmra.mrb[0].mxu0 %v235
  %v532 = vpop.f32.mrb[0].mxu0
  %v533 = vadd.f32 0.0, %v532
  %v534 = vpop.f32.mrb[0].mxu0
  %v535 = vadd.f32 0.0, %v534
  %v536 = vpop.f32.mrb[0].mxu0
  %v537 = vadd.f32 0.0, %v536
  %v538 = vpop.f32.mrb[0].mxu0
  %v539 = vadd.f32 0.0, %v538
  %540 = vmatprep.mubr.bf16.mxu0 0
  %541 = vmatmul.mubr.bf16.gmra.mrb[0].mxu0 %v238
  %v542 = vpop.f32.mrb[0].mxu0
  %v543 = vadd.f32 0.0, %v542
  %v544 = vpop.f32.mrb[0].mxu0
  %v545 = vadd.f32 0.0, %v544
  %v546 = vpop.f32.mrb[0].mxu0
  %v547 = vadd.f32 0.0, %v546
  %v548 = vpop.f32.mrb[0].mxu0
  %v549 = vadd.f32 0.0, %v548
  %550 = vmatprep.mubr.bf16.mxu0 0
  %551 = vmatmul.mubr.bf16.gmra.mrb[0].mxu0 %v241
  %v552 = vpop.f32.mrb[0].mxu0
  %v553 = vadd.f32 0.0, %v552
  %v554 = vpop.f32.mrb[0].mxu0
  %v555 = vadd.f32 0.0, %v554
  %v556 = vpop.f32.mrb[0].mxu0
  %v557 = vadd.f32 0.0, %v556
  %v558 = vpop.f32.mrb[0].mxu0
  %v559 = vadd.f32 0.0, %v558
  %560 = vmatprep.mubr.bf16.mxu0 0
  %561 = vmatmul.mubr.bf16.gmra.mrb[0].mxu0 %v244
  %v562 = vpop.f32.mrb[0].mxu0
  %v563 = vadd.f32 0.0, %v562
  %v564 = vpop.f32.mrb[0].mxu0
  %v565 = vadd.f32 0.0, %v564
  %v566 = vpop.f32.mrb[0].mxu0
  %v567 = vadd.f32 0.0, %v566
  %v568 = vpop.f32.mrb[0].mxu0
  %v569 = vadd.f32 0.0, %v568
  %570 = vmatprep.mubr.bf16.mxu0 0
  %571 = vmatmul.mubr.bf16.gmra.mrb[0].mxu0 %v247
  %v572 = vpop.f32.mrb[0].mxu0
  %v573 = vadd.f32 0.0, %v572
  %v574 = vpop.f32.mrb[0].mxu0
  %v575 = vadd.f32 0.0, %v574
  %v576 = vpop.f32.mrb[0].mxu0
  %v577 = vadd.f32 0.0, %v576
  %v578 = vpop.f32.mrb[0].mxu0
  %v579 = vadd.f32 0.0, %v578
  %580 = vmatprep.mubr.bf16.mxu0 0
  %581 = vmatmul.mubr.bf16.gmra.mrb[0].mxu0 %v250
  %v582 = vpop.f32.mrb[0].mxu0
  %v583 = vadd.f32 0.0, %v582
  %v584 = vpop.f32.mrb[0].mxu0
  %v585 = vadd.f32 0.0, %v584
  %v586 = vpop.f32.mrb[0].mxu0
  %v587 = vadd.f32 0.0, %v586
  %v588 = vpop.f32.mrb[0].mxu0
  %v589 = vadd.f32 0.0, %v588
  %590 = vmatprep.mubr.bf16.mxu0 0
  %591 = vmatmul.mubr.bf16.gmra.mrb[0].mxu0 %v253
  %v592 = vpop.f32.mrb[0].mxu0
  %v593 = vadd.f32 0.0, %v592
  %v594 = vpop.f32.mrb[0].mxu0
  %v595 = vadd.f32 0.0, %v594
  %v596 = vpop.f32.mrb[0].mxu0
  %v597 = vadd.f32 0.0, %v596
  %v598 = vpop.f32.mrb[0].mxu0
  %v599 = vadd.f32 0.0, %v598
  %600 = vmatprep.mubr.bf16.mxu0 0
  %601 = vmatmul.mubr.bf16.gmra.mrb[0].mxu0 %v256
  %v602 = vpop.f32.mrb[0].mxu0
  %v603 = vadd.f32 0.0, %v602
  %v604 = vpop.f32.mrb[0].mxu0
  %v605 = vadd.f32 0.0, %v604
  %v606 = vpop.f32.mrb[0].mxu0
  %v607 = vadd.f32 0.0, %v606
  %v608 = vpop.f32.mrb[0].mxu0
  %v609 = vadd.f32 0.0, %v608
  %610 = vdwg.mxu0
  %v611 = vpack.c.bf16 %v297, %v293
  %v612 = vpack.c.bf16 %v299, %v295
  %v613 = vpack.c.bf16 %v307, %v303
  %v614 = vpack.c.bf16 %v309, %v305
  %v615 = vpack.c.bf16 %v317, %v313
  %v616 = vpack.c.bf16 %v319, %v315
  %v617 = vpack.c.bf16 %v327, %v323
  %v618 = vpack.c.bf16 %v329, %v325
  %v619 = vpack.c.bf16 %v337, %v333
  %v620 = vpack.c.bf16 %v339, %v335
  %v621 = vpack.c.bf16 %v347, %v343
  %v622 = vpack.c.bf16 %v349, %v345
  %v623 = vpack.c.bf16 %v357, %v353
  %v624 = vpack.c.bf16 %v359, %v355
  %v625 = vpack.c.bf16 %v367, %v363
  %v626 = vpack.c.bf16 %v369, %v365
  %v627 = vpack.c.bf16 %v377, %v373
  %v628 = vpack.c.bf16 %v379, %v375
  %v629 = vpack.c.bf16 %v387, %v383
  %v630 = vpack.c.bf16 %v389, %v385
  %v631 = vpack.c.bf16 %v397, %v393
  %v632 = vpack.c.bf16 %v399, %v395
  %v633 = vpack.c.bf16 %v407, %v403
  %v634 = vpack.c.bf16 %v409, %v405
  %v635 = vpack.c.bf16 %v417, %v413
  %v636 = vpack.c.bf16 %v419, %v415
  %v637 = vpack.c.bf16 %v427, %v423
  %v638 = vpack.c.bf16 %v429, %v425
  %v639 = vpack.c.bf16 %v437, %v433
  %v640 = vpack.c.bf16 %v439, %v435
  %v641 = vpack.c.bf16 %v447, %v443
  %v642 = vpack.c.bf16 %v449, %v445
  %v643 = vpack.c.bf16 %v457, %v453
  %v644 = vpack.c.bf16 %v459, %v455
  %v645 = vpack.c.bf16 %v467, %v463
  %v646 = vpack.c.bf16 %v469, %v465
  %v647 = vpack.c.bf16 %v477, %v473
  %v648 = vpack.c.bf16 %v479, %v475
  %v649 = vpack.c.bf16 %v487, %v483
  %v650 = vpack.c.bf16 %v489, %v485
  %v651 = vpack.c.bf16 %v497, %v493
  %v652 = vpack.c.bf16 %v499, %v495
  %v653 = vpack.c.bf16 %v507, %v503
  %v654 = vpack.c.bf16 %v509, %v505
  %v655 = vpack.c.bf16 %v517, %v513
  %v656 = vpack.c.bf16 %v519, %v515
  %v657 = vpack.c.bf16 %v527, %v523
  %v658 = vpack.c.bf16 %v529, %v525
  %v659 = vpack.c.bf16 %v537, %v533
  %v660 = vpack.c.bf16 %v539, %v535
  %v661 = vpack.c.bf16 %v547, %v543
  %v662 = vpack.c.bf16 %v549, %v545
  %v663 = vpack.c.bf16 %v557, %v553
  %v664 = vpack.c.bf16 %v559, %v555
  %v665 = vpack.c.bf16 %v567, %v563
  %v666 = vpack.c.bf16 %v569, %v565
  %v667 = vpack.c.bf16 %v577, %v573
  %v668 = vpack.c.bf16 %v579, %v575
  %v669 = vpack.c.bf16 %v587, %v583
  %v670 = vpack.c.bf16 %v589, %v585
  %v671 = vpack.c.bf16 %v597, %v593
  %v672 = vpack.c.bf16 %v599, %v595
  %v673 = vpack.c.bf16 %v607, %v603
  %v674 = vpack.c.bf16 %v609, %v605
  %v675 = vld [vmem:[%s2] sm:$0x3]
  %v678 = vunpack.c.l.s4 1966171168
  %v679 = vunpack.c.0.s8 %v678
  %v680 = vlaneseq
  %v681 = vshrl.u32 %v680, 7
  %v682 = vsub.s32 %v679, %v681
  %v683 = vrot.slane %v675, %v682
  %v684 = vcombine.high %v683, %v683
  %v686 = vunpack.c.l.s4 1966171168
  %v687 = vunpack.c.0.s8 %v686
  %v688 = vlaneseq
  %v689 = vshrl.u32 %v688, 7
  %v690 = vsub.s32 %v687, %v689
  %v691 = vrot.slane %v683, %v690
  %v693 = vunpack.c.l.s4 1966171168
  %v694 = vunpack.c.0.s8 %v693
  %v695 = vlaneseq
  %v696 = vshrl.u32 %v695, 7
  %v697 = vsub.s32 %v694, %v696
  %v698 = vrot.slane %v684, %v697
  %v700 = vpack.i.b16 %v691, %v691
  %v702 = vlaneseq
  %v703 = vshrl.u32 %v702, 7
  %v704 = vsub.s32 0, %v703
  %v705 = vrot.slane %v700, %v704
  %v707 = vpack.i.b16 %v698, %v698
  %v709 = vlaneseq
  %v710 = vshrl.u32 %v709, 7
  %v711 = vsub.s32 0, %v710
  %v712 = vrot.slane %v707, %v711
  %v713 = vadd.bf16 %v611, %v705
  %v714 = vadd.bf16 %v612, %v712
  %v715 = vadd.bf16 %v613, %v705
  %v716 = vadd.bf16 %v614, %v712
  %v717 = vadd.bf16 %v615, %v705
  %v718 = vadd.bf16 %v616, %v712
  %v719 = vadd.bf16 %v617, %v705
  %v720 = vadd.bf16 %v618, %v712
  %v721 = vadd.bf16 %v619, %v705
  %v722 = vadd.bf16 %v620, %v712
  %v723 = vadd.bf16 %v621, %v705
  %v724 = vadd.bf16 %v622, %v712
  %v725 = vadd.bf16 %v623, %v705
  %v726 = vadd.bf16 %v624, %v712
  %v727 = vadd.bf16 %v625, %v705
  %v728 = vadd.bf16 %v626, %v712
  %v729 = vadd.bf16 %v627, %v705
  %v730 = vadd.bf16 %v628, %v712
  %v731 = vadd.bf16 %v629, %v705
  %v732 = vadd.bf16 %v630, %v712
  %v733 = vadd.bf16 %v631, %v705
  %v734 = vadd.bf16 %v632, %v712
  %v735 = vadd.bf16 %v633, %v705
  %v736 = vadd.bf16 %v634, %v712
  %v737 = vadd.bf16 %v635, %v705
  %v738 = vadd.bf16 %v636, %v712
  %v739 = vadd.bf16 %v637, %v705
  %v740 = vadd.bf16 %v638, %v712
  %v741 = vadd.bf16 %v639, %v705
  %v742 = vadd.bf16 %v640, %v712
  %v743 = vadd.bf16 %v641, %v705
  %v744 = vadd.bf16 %v642, %v712
  %v745 = vadd.bf16 %v643, %v705
  %v746 = vadd.bf16 %v644, %v712
  %v747 = vadd.bf16 %v645, %v705
  %v748 = vadd.bf16 %v646, %v712
  %v749 = vadd.bf16 %v647, %v705
  %v750 = vadd.bf16 %v648, %v712
  %v751 = vadd.bf16 %v649, %v705
  %v752 = vadd.bf16 %v650, %v712
  %v753 = vadd.bf16 %v651, %v705
  %v754 = vadd.bf16 %v652, %v712
  %v755 = vadd.bf16 %v653, %v705
  %v756 = vadd.bf16 %v654, %v712
  %v757 = vadd.bf16 %v655, %v705
  %v758 = vadd.bf16 %v656, %v712
  %v759 = vadd.bf16 %v657, %v705
  %v760 = vadd.bf16 %v658, %v712
  %v761 = vadd.bf16 %v659, %v705
  %v762 = vadd.bf16 %v660, %v712
  %v763 = vadd.bf16 %v661, %v705
  %v764 = vadd.bf16 %v662, %v712
  %v765 = vadd.bf16 %v663, %v705
  %v766 = vadd.bf16 %v664, %v712
  %v767 = vadd.bf16 %v665, %v705
  %v768 = vadd.bf16 %v666, %v712
  %v769 = vadd.bf16 %v667, %v705
  %v770 = vadd.bf16 %v668, %v712
  %v771 = vadd.bf16 %v669, %v705
  %v772 = vadd.bf16 %v670, %v712
  %v773 = vadd.bf16 %v671, %v705
  %v774 = vadd.bf16 %v672, %v712
  %v775 = vadd.bf16 %v673, %v705
  %v776 = vadd.bf16 %v674, %v712
  %v777 = vmax.bf16 %v713, 0
  %v778 = vmax.bf16 %v714, 0
  %v779 = vmax.bf16 %v715, 0
  %v780 = vmax.bf16 %v716, 0
  %v781 = vmax.bf16 %v717, 0
  %v782 = vmax.bf16 %v718, 0
  %v783 = vmax.bf16 %v719, 0
  %v784 = vmax.bf16 %v720, 0
  %v785 = vmax.bf16 %v721, 0
  %v786 = vmax.bf16 %v722, 0
  %v787 = vmax.bf16 %v723, 0
  %v788 = vmax.bf16 %v724, 0
  %v789 = vmax.bf16 %v725, 0
  %v790 = vmax.bf16 %v726, 0
  %v791 = vmax.bf16 %v727, 0
  %v792 = vmax.bf16 %v728, 0
  %v793 = vmax.bf16 %v729, 0
  %v794 = vmax.bf16 %v730, 0
  %v795 = vmax.bf16 %v731, 0
  %v796 = vmax.bf16 %v732, 0
  %v797 = vmax.bf16 %v733, 0
  %v798 = vmax.bf16 %v734, 0
  %v799 = vmax.bf16 %v735, 0
  %v800 = vmax.bf16 %v736, 0
  %v801 = vmax.bf16 %v737, 0
  %v802 = vmax.bf16 %v738, 0
  %v803 = vmax.bf16 %v739, 0
  %v804 = vmax.bf16 %v740, 0
  %v805 = vmax.bf16 %v741, 0
  %v806 = vmax.bf16 %v742, 0
  %v807 = vmax.bf16 %v743, 0
  %v808 = vmax.bf16 %v744, 0
  %v809 = vmax.bf16 %v745, 0
  %v810 = vmax.bf16 %v746, 0
  %v811 = vmax.bf16 %v747, 0
  %v812 = vmax.bf16 %v748, 0
  %v813 = vmax.bf16 %v749, 0
  %v814 = vmax.bf16 %v750, 0
  %v815 = vmax.bf16 %v751, 0
  %v816 = vmax.bf16 %v752, 0
  %v817 = vmax.bf16 %v753, 0
  %v818 = vmax.bf16 %v754, 0
  %v819 = vmax.bf16 %v755, 0
  %v820 = vmax.bf16 %v756, 0
  %v821 = vmax.bf16 %v757, 0
  %v822 = vmax.bf16 %v758, 0
  %v823 = vmax.bf16 %v759, 0
  %v824 = vmax.bf16 %v760, 0
  %v825 = vmax.bf16 %v761, 0
  %v826 = vmax.bf16 %v762, 0
  %v827 = vmax.bf16 %v763, 0
  %v828 = vmax.bf16 %v764, 0
  %v829 = vmax.bf16 %v765, 0
  %v830 = vmax.bf16 %v766, 0
  %v831 = vmax.bf16 %v767, 0
  %v832 = vmax.bf16 %v768, 0
  %v833 = vmax.bf16 %v769, 0
  %v834 = vmax.bf16 %v770, 0
  %v835 = vmax.bf16 %v771, 0
  %v836 = vmax.bf16 %v772, 0
  %v837 = vmax.bf16 %v773, 0
  %v838 = vmax.bf16 %v774, 0
  %v839 = vmax.bf16 %v775, 0
  %v840 = vmax.bf16 %v776, 0
  %v841 = vld [vmem:[%s3] sm:$0xf]
  %v842 = vld [vmem:[%s3 + $0x4] sm:$0xf]
  %v843 = vld [vmem:[%s3 + $0x8] sm:$0xf]
  %v844 = vld [vmem:[%s3 + $0xc] sm:$0xf]
  %v845 = vld [vmem:[%s3 + $0x10] sm:$0xf]
  %v846 = vld [vmem:[%s3 + $0x14] sm:$0xf]
  %v847 = vld [vmem:[%s3 + $0x18] sm:$0xf]
  %v848 = vld [vmem:[%s3 + $0x1c] sm:$0xf]
  %v849 = vld [vmem:[%s3 + $0x20] sm:$0xf]
  %v850 = vld [vmem:[%s3 + $0x24] sm:$0xf]
  %v851 = vld [vmem:[%s3 + $0x28] sm:$0xf]
  %v852 = vld [vmem:[%s3 + $0x2c] sm:$0xf]
  %v853 = vld [vmem:[%s3 + $0x30] sm:$0xf]
  %v854 = vld [vmem:[%s3 + $0x34] sm:$0xf]
  %v855 = vld [vmem:[%s3 + $0x38] sm:$0xf]
  %v856 = vld [vmem:[%s3 + $0x3c] sm:$0xf]
  %v857 = vld [vmem:[%s3 + $0x40] sm:$0xf]
  %v858 = vld [vmem:[%s3 + $0x44] sm:$0xf]
  %v859 = vld [vmem:[%s3 + $0x48] sm:$0xf]
  %v860 = vld [vmem:[%s3 + $0x4c] sm:$0xf]
  %v861 = vld [vmem:[%s3 + $0x50] sm:$0xf]
  %v862 = vld [vmem:[%s3 + $0x54] sm:$0xf]
  %v863 = vld [vmem:[%s3 + $0x58] sm:$0xf]
  %v864 = vld [vmem:[%s3 + $0x5c] sm:$0xf]
  %v865 = vld [vmem:[%s3 + $0x60] sm:$0xf]
  %v866 = vld [vmem:[%s3 + $0x64] sm:$0xf]
  %v867 = vld [vmem:[%s3 + $0x68] sm:$0xf]
  %v868 = vld [vmem:[%s3 + $0x6c] sm:$0xf]
  %v869 = vld [vmem:[%s3 + $0x70] sm:$0xf]
  %v870 = vld [vmem:[%s3 + $0x74] sm:$0xf]
  %v871 = vld [vmem:[%s3 + $0x78] sm:$0xf]
  %v872 = vld [vmem:[%s3 + $0x7c] sm:$0xf]
  %v905 = vunpack.c.l.b16 %v841
  %v906 = vunpack.c.l.b16 %v842
  %v907 = vunpack.c.l.b16 %v843
  %v908 = vunpack.c.l.b16 %v844
  %v909 = vunpack.c.l.b16 %v845
  %v910 = vunpack.c.l.b16 %v846
  %v911 = vunpack.c.l.b16 %v847
  %v912 = vunpack.c.l.b16 %v848
  %v913 = vunpack.c.l.b16 %v849
  %v914 = vunpack.c.l.b16 %v850
  %v915 = vunpack.c.l.b16 %v851
  %v916 = vunpack.c.l.b16 %v852
  %v917 = vunpack.c.l.b16 %v853
  %v918 = vunpack.c.l.b16 %v854
  %v919 = vunpack.c.l.b16 %v855
  %v920 = vunpack.c.l.b16 %v856
  %v921 = vunpack.c.l.b16 %v857
  %v922 = vunpack.c.l.b16 %v858
  %v923 = vunpack.c.l.b16 %v859
  %v924 = vunpack.c.l.b16 %v860
  %v925 = vunpack.c.l.b16 %v861
  %v926 = vunpack.c.l.b16 %v862
  %v927 = vunpack.c.l.b16 %v863
  %v928 = vunpack.c.l.b16 %v864
  %v929 = vunpack.c.l.b16 %v865
  %v930 = vunpack.c.l.b16 %v866
  %v931 = vunpack.c.l.b16 %v867
  %v932 = vunpack.c.l.b16 %v868
  %v933 = vunpack.c.l.b16 %v869
  %v934 = vunpack.c.l.b16 %v870
  %v935 = vunpack.c.l.b16 %v871
  %v936 = vunpack.c.l.b16 %v872
  %v937 = vpack.c.b16 %v906, %v905
  %v938 = vpack.c.b16 %v908, %v907
  %v939 = vpack.c.b16 %v910, %v909
  %v940 = vpack.c.b16 %v912, %v911
  %v941 = vpack.c.b16 %v914, %v913
  %v942 = vpack.c.b16 %v916, %v915
  %v943 = vpack.c.b16 %v918, %v917
  %v944 = vpack.c.b16 %v920, %v919
  %v945 = vpack.c.b16 %v922, %v921
  %v946 = vpack.c.b16 %v924, %v923
  %v947 = vpack.c.b16 %v926, %v925
  %v948 = vpack.c.b16 %v928, %v927
  %v949 = vpack.c.b16 %v930, %v929
  %v950 = vpack.c.b16 %v932, %v931
  %v951 = vpack.c.b16 %v934, %v933
  %v952 = vpack.c.b16 %v936, %v935
  %969 = vmatprep.subr.bf16.mxu0 0
  %970 = vmatpush1.bf16.msra.mxu0 %v937
  %971 = vmatprep.subr.bf16.mxu0 0
  %972 = vmatpush1.bf16.msra.mxu0 %v938
  %973 = vmatprep.subr.bf16.mxu0 0
  %974 = vmatpush1.bf16.msra.mxu0 %v939
  %975 = vmatprep.subr.bf16.mxu0 0
  %976 = vmatpush1.bf16.msra.mxu0 %v940
  %977 = vmatprep.subr.bf16.mxu0 0
  %978 = vmatpush1.bf16.msra.mxu0 %v941
  %979 = vmatprep.subr.bf16.mxu0 0
  %980 = vmatpush1.bf16.msra.mxu0 %v942
  %981 = vmatprep.subr.bf16.mxu0 0
  %982 = vmatpush1.bf16.msra.mxu0 %v943
  %983 = vmatprep.subr.bf16.mxu0 0
  %984 = vmatpush1.bf16.msra.mxu0 %v944
  %985 = vmatprep.subr.bf16.mxu0 0
  %986 = vmatpush1.bf16.msra.mxu0 %v945
  %987 = vmatprep.subr.bf16.mxu0 0
  %988 = vmatpush1.bf16.msra.mxu0 %v946
  %989 = vmatprep.subr.bf16.mxu0 0
  %990 = vmatpush1.bf16.msra.mxu0 %v947
  %991 = vmatprep.subr.bf16.mxu0 0
  %992 = vmatpush1.bf16.msra.mxu0 %v948
  %993 = vmatprep.subr.bf16.mxu0 0
  %994 = vmatpush1.bf16.msra.mxu0 %v949
  %995 = vmatprep.subr.bf16.mxu0 0
  %996 = vmatpush1.bf16.msra.mxu0 %v950
  %997 = vmatprep.subr.bf16.mxu0 0
  %998 = vmatpush1.bf16.msra.mxu0 %v951
  %999 = vmatprep.subr.bf16.mxu0 0
  %1000 = vmatpush1.bf16.msra.mxu0 %v952
  %1001 = vmatprep.mubr.bf16.mxu0 %v778
  %1002 = vmatmul.mubr.bf16.gmra.mrb[0].mxu0 %v777
  %v1003 = vpop.f32.mrb[0].mxu0
  %v1004 = vadd.f32 0.0, %v1003
  %v1005 = vpop.f32.mrb[0].mxu0
  %v1006 = vpop.f32.mrb[0].mxu0
  %v1007 = vadd.f32 0.0, %v1006
  %v1008 = vpop.f32.mrb[0].mxu0
  %1009 = vmatprep.mubr.bf16.mxu0 %v780
  %1010 = vmatmul.mubr.bf16.gmra.mrb[0].mxu0 %v779
  %v1011 = vpop.f32.mrb[0].mxu0
  %v1012 = vadd.f32 0.0, %v1011
  %v1013 = vpop.f32.mrb[0].mxu0
  %v1014 = vpop.f32.mrb[0].mxu0
  %v1015 = vadd.f32 0.0, %v1014
  %v1016 = vpop.f32.mrb[0].mxu0
  %1017 = vmatprep.mubr.bf16.mxu0 %v782
  %1018 = vmatmul.mubr.bf16.gmra.mrb[0].mxu0 %v781
  %v1019 = vpop.f32.mrb[0].mxu0
  %v1020 = vadd.f32 0.0, %v1019
  %v1021 = vpop.f32.mrb[0].mxu0
  %v1022 = vpop.f32.mrb[0].mxu0
  %v1023 = vadd.f32 0.0, %v1022
  %v1024 = vpop.f32.mrb[0].mxu0
  %1025 = vmatprep.mubr.bf16.mxu0 %v784
  %1026 = vmatmul.mubr.bf16.gmra.mrb[0].mxu0 %v783
  %v1027 = vpop.f32.mrb[0].mxu0
  %v1028 = vadd.f32 0.0, %v1027
  %v1029 = vpop.f32.mrb[0].mxu0
  %v1030 = vpop.f32.mrb[0].mxu0
  %v1031 = vadd.f32 0.0, %v1030
  %v1032 = vpop.f32.mrb[0].mxu0
  %1033 = vmatprep.mubr.bf16.mxu0 %v786
  %1034 = vmatmul.mubr.bf16.gmra.mrb[0].mxu0 %v785
  %v1035 = vpop.f32.mrb[0].mxu0
  %v1036 = vadd.f32 0.0, %v1035
  %v1037 = vpop.f32.mrb[0].mxu0
  %v1038 = vpop.f32.mrb[0].mxu0
  %v1039 = vadd.f32 0.0, %v1038
  %v1040 = vpop.f32.mrb[0].mxu0
  %1041 = vmatprep.mubr.bf16.mxu0 %v788
  %1042 = vmatmul.mubr.bf16.gmra.mrb[0].mxu0 %v787
  %v1043 = vpop.f32.mrb[0].mxu0
  %v1044 = vadd.f32 0.0, %v1043
  %v1045 = vpop.f32.mrb[0].mxu0
  %v1046 = vpop.f32.mrb[0].mxu0
  %v1047 = vadd.f32 0.0, %v1046
  %v1048 = vpop.f32.mrb[0].mxu0
  %1049 = vmatprep.mubr.bf16.mxu0 %v790
  %1050 = vmatmul.mubr.bf16.gmra.mrb[0].mxu0 %v789
  %v1051 = vpop.f32.mrb[0].mxu0
  %v1052 = vadd.f32 0.0, %v1051
  %v1053 = vpop.f32.mrb[0].mxu0
  %v1054 = vpop.f32.mrb[0].mxu0
  %v1055 = vadd.f32 0.0, %v1054
  %v1056 = vpop.f32.mrb[0].mxu0
  %1057 = vmatprep.mubr.bf16.mxu0 %v792
  %1058 = vmatmul.mubr.bf16.gmra.mrb[0].mxu0 %v791
  %v1059 = vpop.f32.mrb[0].mxu0
  %v1060 = vadd.f32 0.0, %v1059
  %v1061 = vpop.f32.mrb[0].mxu0
  %v1062 = vpop.f32.mrb[0].mxu0
  %v1063 = vadd.f32 0.0, %v1062
  %v1064 = vpop.f32.mrb[0].mxu0
  %1065 = vmatprep.mubr.bf16.mxu0 %v794
  %1066 = vmatmul.mubr.bf16.gmra.mrb[0].mxu0 %v793
  %v1067 = vpop.f32.mrb[0].mxu0
  %v1068 = vadd.f32 0.0, %v1067
  %v1069 = vpop.f32.mrb[0].mxu0
  %v1070 = vpop.f32.mrb[0].mxu0
  %v1071 = vadd.f32 0.0, %v1070
  %v1072 = vpop.f32.mrb[0].mxu0
  %1073 = vmatprep.mubr.bf16.mxu0 %v796
  %1074 = vmatmul.mubr.bf16.gmra.mrb[0].mxu0 %v795
  %v1075 = vpop.f32.mrb[0].mxu0
  %v1076 = vadd.f32 0.0, %v1075
  %v1077 = vpop.f32.mrb[0].mxu0
  %v1078 = vpop.f32.mrb[0].mxu0
  %v1079 = vadd.f32 0.0, %v1078
  %v1080 = vpop.f32.mrb[0].mxu0
  %1081 = vmatprep.mubr.bf16.mxu0 %v798
  %1082 = vmatmul.mubr.bf16.gmra.mrb[0].mxu0 %v797
  %v1083 = vpop.f32.mrb[0].mxu0
  %v1084 = vadd.f32 0.0, %v1083
  %v1085 = vpop.f32.mrb[0].mxu0
  %v1086 = vpop.f32.mrb[0].mxu0
  %v1087 = vadd.f32 0.0, %v1086
  %v1088 = vpop.f32.mrb[0].mxu0
  %1089 = vmatprep.mubr.bf16.mxu0 %v800
  %1090 = vmatmul.mubr.bf16.gmra.mrb[0].mxu0 %v799
  %v1091 = vpop.f32.mrb[0].mxu0
  %v1092 = vadd.f32 0.0, %v1091
  %v1093 = vpop.f32.mrb[0].mxu0
  %v1094 = vpop.f32.mrb[0].mxu0
  %v1095 = vadd.f32 0.0, %v1094
  %v1096 = vpop.f32.mrb[0].mxu0
  %1097 = vmatprep.mubr.bf16.mxu0 %v802
  %1098 = vmatmul.mubr.bf16.gmra.mrb[0].mxu0 %v801
  %v1099 = vpop.f32.mrb[0].mxu0
  %v1100 = vadd.f32 0.0, %v1099
  %v1101 = vpop.f32.mrb[0].mxu0
  %v1102 = vpop.f32.mrb[0].mxu0
  %v1103 = vadd.f32 0.0, %v1102
  %v1104 = vpop.f32.mrb[0].mxu0
  %1105 = vmatprep.mubr.bf16.mxu0 %v804
  %1106 = vmatmul.mubr.bf16.gmra.mrb[0].mxu0 %v803
  %v1107 = vpop.f32.mrb[0].mxu0
  %v1108 = vadd.f32 0.0, %v1107
  %v1109 = vpop.f32.mrb[0].mxu0
  %v1110 = vpop.f32.mrb[0].mxu0
  %v1111 = vadd.f32 0.0, %v1110
  %v1112 = vpop.f32.mrb[0].mxu0
  %1113 = vmatprep.mubr.bf16.mxu0 %v806
  %1114 = vmatmul.mubr.bf16.gmra.mrb[0].mxu0 %v805
  %v1115 = vpop.f32.mrb[0].mxu0
  %v1116 = vadd.f32 0.0, %v1115
  %v1117 = vpop.f32.mrb[0].mxu0
  %v1118 = vpop.f32.mrb[0].mxu0
  %v1119 = vadd.f32 0.0, %v1118
  %v1120 = vpop.f32.mrb[0].mxu0
  %1121 = vmatprep.mubr.bf16.mxu0 %v808
  %1122 = vmatmul.mubr.bf16.gmra.mrb[0].mxu0 %v807
  %v1123 = vpop.f32.mrb[0].mxu0
  %v1124 = vadd.f32 0.0, %v1123
  %v1125 = vpop.f32.mrb[0].mxu0
  %v1126 = vpop.f32.mrb[0].mxu0
  %v1127 = vadd.f32 0.0, %v1126
  %v1128 = vpop.f32.mrb[0].mxu0
  %1129 = vmatprep.mubr.bf16.mxu0 %v810
  %1130 = vmatmul.mubr.bf16.gmra.mrb[0].mxu0 %v809
  %v1131 = vpop.f32.mrb[0].mxu0
  %v1132 = vadd.f32 0.0, %v1131
  %v1133 = vpop.f32.mrb[0].mxu0
  %v1134 = vpop.f32.mrb[0].mxu0
  %v1135 = vadd.f32 0.0, %v1134
  %v1136 = vpop.f32.mrb[0].mxu0
  %1137 = vmatprep.mubr.bf16.mxu0 %v812
  %1138 = vmatmul.mubr.bf16.gmra.mrb[0].mxu0 %v811
  %v1139 = vpop.f32.mrb[0].mxu0
  %v1140 = vadd.f32 0.0, %v1139
  %v1141 = vpop.f32.mrb[0].mxu0
  %v1142 = vpop.f32.mrb[0].mxu0
  %v1143 = vadd.f32 0.0, %v1142
  %v1144 = vpop.f32.mrb[0].mxu0
  %1145 = vmatprep.mubr.bf16.mxu0 %v814
  %1146 = vmatmul.mubr.bf16.gmra.mrb[0].mxu0 %v813
  %v1147 = vpop.f32.mrb[0].mxu0
  %v1148 = vadd.f32 0.0, %v1147
  %v1149 = vpop.f32.mrb[0].mxu0
  %v1150 = vpop.f32.mrb[0].mxu0
  %v1151 = vadd.f32 0.0, %v1150
  %v1152 = vpop.f32.mrb[0].mxu0
  %1153 = vmatprep.mubr.bf16.mxu0 %v816
  %1154 = vmatmul.mubr.bf16.gmra.mrb[0].mxu0 %v815
  %v1155 = vpop.f32.mrb[0].mxu0
  %v1156 = vadd.f32 0.0, %v1155
  %v1157 = vpop.f32.mrb[0].mxu0
  %v1158 = vpop.f32.mrb[0].mxu0
  %v1159 = vadd.f32 0.0, %v1158
  %v1160 = vpop.f32.mrb[0].mxu0
  %1161 = vmatprep.mubr.bf16.mxu0 %v818
  %1162 = vmatmul.mubr.bf16.gmra.mrb[0].mxu0 %v817
  %v1163 = vpop.f32.mrb[0].mxu0
  %v1164 = vadd.f32 0.0, %v1163
  %v1165 = vpop.f32.mrb[0].mxu0
  %v1166 = vpop.f32.mrb[0].mxu0
  %v1167 = vadd.f32 0.0, %v1166
  %v1168 = vpop.f32.mrb[0].mxu0
  %1169 = vmatprep.mubr.bf16.mxu0 %v820
  %1170 = vmatmul.mubr.bf16.gmra.mrb[0].mxu0 %v819
  %v1171 = vpop.f32.mrb[0].mxu0
  %v1172 = vadd.f32 0.0, %v1171
  %v1173 = vpop.f32.mrb[0].mxu0
  %v1174 = vpop.f32.mrb[0].mxu0
  %v1175 = vadd.f32 0.0, %v1174
  %v1176 = vpop.f32.mrb[0].mxu0
  %1177 = vmatprep.mubr.bf16.mxu0 %v822
  %1178 = vmatmul.mubr.bf16.gmra.mrb[0].mxu0 %v821
  %v1179 = vpop.f32.mrb[0].mxu0
  %v1180 = vadd.f32 0.0, %v1179
  %v1181 = vpop.f32.mrb[0].mxu0
  %v1182 = vpop.f32.mrb[0].mxu0
  %v1183 = vadd.f32 0.0, %v1182
  %v1184 = vpop.f32.mrb[0].mxu0
  %1185 = vmatprep.mubr.bf16.mxu0 %v824
  %1186 = vmatmul.mubr.bf16.gmra.mrb[0].mxu0 %v823
  %v1187 = vpop.f32.mrb[0].mxu0
  %v1188 = vadd.f32 0.0, %v1187
  %v1189 = vpop.f32.mrb[0].mxu0
  %v1190 = vpop.f32.mrb[0].mxu0
  %v1191 = vadd.f32 0.0, %v1190
  %v1192 = vpop.f32.mrb[0].mxu0
  %1193 = vmatprep.mubr.bf16.mxu0 %v826
  %1194 = vmatmul.mubr.bf16.gmra.mrb[0].mxu0 %v825
  %v1195 = vpop.f32.mrb[0].mxu0
  %v1196 = vadd.f32 0.0, %v1195
  %v1197 = vpop.f32.mrb[0].mxu0
  %v1198 = vpop.f32.mrb[0].mxu0
  %v1199 = vadd.f32 0.0, %v1198
  %v1200 = vpop.f32.mrb[0].mxu0
  %1201 = vmatprep.mubr.bf16.mxu0 %v828
  %1202 = vmatmul.mubr.bf16.gmra.mrb[0].mxu0 %v827
  %v1203 = vpop.f32.mrb[0].mxu0
  %v1204 = vadd.f32 0.0, %v1203
  %v1205 = vpop.f32.mrb[0].mxu0
  %v1206 = vpop.f32.mrb[0].mxu0
  %v1207 = vadd.f32 0.0, %v1206
  %v1208 = vpop.f32.mrb[0].mxu0
  %1209 = vmatprep.mubr.bf16.mxu0 %v830
  %1210 = vmatmul.mubr.bf16.gmra.mrb[0].mxu0 %v829
  %v1211 = vpop.f32.mrb[0].mxu0
  %v1212 = vadd.f32 0.0, %v1211
  %v1213 = vpop.f32.mrb[0].mxu0
  %v1214 = vpop.f32.mrb[0].mxu0
  %v1215 = vadd.f32 0.0, %v1214
  %v1216 = vpop.f32.mrb[0].mxu0
  %1217 = vmatprep.mubr.bf16.mxu0 %v832
  %1218 = vmatmul.mubr.bf16.gmra.mrb[0].mxu0 %v831
  %v1219 = vpop.f32.mrb[0].mxu0
  %v1220 = vadd.f32 0.0, %v1219
  %v1221 = vpop.f32.mrb[0].mxu0
  %v1222 = vpop.f32.mrb[0].mxu0
  %v1223 = vadd.f32 0.0, %v1222
  %v1224 = vpop.f32.mrb[0].mxu0
  %1225 = vmatprep.mubr.bf16.mxu0 %v834
  %1226 = vmatmul.mubr.bf16.gmra.mrb[0].mxu0 %v833
  %v1227 = vpop.f32.mrb[0].mxu0
  %v1228 = vadd.f32 0.0, %v1227
  %v1229 = vpop.f32.mrb[0].mxu0
  %v1230 = vpop.f32.mrb[0].mxu0
  %v1231 = vadd.f32 0.0, %v1230
  %v1232 = vpop.f32.mrb[0].mxu0
  %1233 = vmatprep.mubr.bf16.mxu0 %v836
  %1234 = vmatmul.mubr.bf16.gmra.mrb[0].mxu0 %v835
  %v1235 = vpop.f32.mrb[0].mxu0
  %v1236 = vadd.f32 0.0, %v1235
  %v1237 = vpop.f32.mrb[0].mxu0
  %v1238 = vpop.f32.mrb[0].mxu0
  %v1239 = vadd.f32 0.0, %v1238
  %v1240 = vpop.f32.mrb[0].mxu0
  %1241 = vmatprep.mubr.bf16.mxu0 %v838
  %1242 = vmatmul.mubr.bf16.gmra.mrb[0].mxu0 %v837
  %v1243 = vpop.f32.mrb[0].mxu0
  %v1244 = vadd.f32 0.0, %v1243
  %v1245 = vpop.f32.mrb[0].mxu0
  %v1246 = vpop.f32.mrb[0].mxu0
  %v1247 = vadd.f32 0.0, %v1246
  %v1248 = vpop.f32.mrb[0].mxu0
  %1249 = vmatprep.mubr.bf16.mxu0 %v840
  %1250 = vmatmul.mubr.bf16.gmra.mrb[0].mxu0 %v839
  %v1251 = vpop.f32.mrb[0].mxu0
  %v1252 = vadd.f32 0.0, %v1251
  %v1253 = vpop.f32.mrb[0].mxu0
  %v1254 = vpop.f32.mrb[0].mxu0
  %v1255 = vadd.f32 0.0, %v1254
  %v1256 = vpop.f32.mrb[0].mxu0
  %1257 = vdwg.mxu0
  %v1258 = vpack.c.bf16 %v1007, %v1004
  %v1259 = vpack.c.bf16 %v1015, %v1012
  %v1260 = vpack.c.bf16 %v1023, %v1020
  %v1261 = vpack.c.bf16 %v1031, %v1028
  %v1262 = vpack.c.bf16 %v1039, %v1036
  %v1263 = vpack.c.bf16 %v1047, %v1044
  %v1264 = vpack.c.bf16 %v1055, %v1052
  %v1265 = vpack.c.bf16 %v1063, %v1060
  %v1266 = vpack.c.bf16 %v1071, %v1068
  %v1267 = vpack.c.bf16 %v1079, %v1076
  %v1268 = vpack.c.bf16 %v1087, %v1084
  %v1269 = vpack.c.bf16 %v1095, %v1092
  %v1270 = vpack.c.bf16 %v1103, %v1100
  %v1271 = vpack.c.bf16 %v1111, %v1108
  %v1272 = vpack.c.bf16 %v1119, %v1116
  %v1273 = vpack.c.bf16 %v1127, %v1124
  %v1274 = vpack.c.bf16 %v1135, %v1132
  %v1275 = vpack.c.bf16 %v1143, %v1140
  %v1276 = vpack.c.bf16 %v1151, %v1148
  %v1277 = vpack.c.bf16 %v1159, %v1156
  %v1278 = vpack.c.bf16 %v1167, %v1164
  %v1279 = vpack.c.bf16 %v1175, %v1172
  %v1280 = vpack.c.bf16 %v1183, %v1180
  %v1281 = vpack.c.bf16 %v1191, %v1188
  %v1282 = vpack.c.bf16 %v1199, %v1196
  %v1283 = vpack.c.bf16 %v1207, %v1204
  %v1284 = vpack.c.bf16 %v1215, %v1212
  %v1285 = vpack.c.bf16 %v1223, %v1220
  %v1286 = vpack.c.bf16 %v1231, %v1228
  %v1287 = vpack.c.bf16 %v1239, %v1236
  %v1288 = vpack.c.bf16 %v1247, %v1244
  %v1289 = vpack.c.bf16 %v1255, %v1252
  %v1290 = vld [vmem:[%s4] sm:$0x1]
  %v1292 = vpack.i.b16 %v1290, %v1290
  %v1294 = vlaneseq
  %v1295 = vshrl.u32 %v1294, 7
  %v1296 = vsub.s32 0, %v1295
  %v1297 = vrot.slane %v1292, %v1296
  %v1298 = vadd.bf16 %v1258, %v1297
  %v1299 = vadd.bf16 %v1259, %v1297
  %v1300 = vadd.bf16 %v1260, %v1297
  %v1301 = vadd.bf16 %v1261, %v1297
  %v1302 = vadd.bf16 %v1262, %v1297
  %v1303 = vadd.bf16 %v1263, %v1297
  %v1304 = vadd.bf16 %v1264, %v1297
  %v1305 = vadd.bf16 %v1265, %v1297
  %v1306 = vadd.bf16 %v1266, %v1297
  %v1307 = vadd.bf16 %v1267, %v1297
  %v1308 = vadd.bf16 %v1268, %v1297
  %v1309 = vadd.bf16 %v1269, %v1297
  %v1310 = vadd.bf16 %v1270, %v1297
  %v1311 = vadd.bf16 %v1271, %v1297
  %v1312 = vadd.bf16 %v1272, %v1297
  %v1313 = vadd.bf16 %v1273, %v1297
  %v1314 = vadd.bf16 %v1274, %v1297
  %v1315 = vadd.bf16 %v1275, %v1297
  %v1316 = vadd.bf16 %v1276, %v1297
  %v1317 = vadd.bf16 %v1277, %v1297
  %v1318 = vadd.bf16 %v1278, %v1297
  %v1319 = vadd.bf16 %v1279, %v1297
  %v1320 = vadd.bf16 %v1280, %v1297
  %v1321 = vadd.bf16 %v1281, %v1297
  %v1322 = vadd.bf16 %v1282, %v1297
  %v1323 = vadd.bf16 %v1283, %v1297
  %v1324 = vadd.bf16 %v1284, %v1297
  %v1325 = vadd.bf16 %v1285, %v1297
  %v1326 = vadd.bf16 %v1286, %v1297
  %v1327 = vadd.bf16 %v1287, %v1297
  %v1328 = vadd.bf16 %v1288, %v1297
  %v1329 = vadd.bf16 %v1289, %v1297
  %v1330 = vmax.bf16 %v1298, 0
  %v1331 = vmax.bf16 %v1299, 0
  %v1332 = vmax.bf16 %v1300, 0
  %v1333 = vmax.bf16 %v1301, 0
  %v1334 = vmax.bf16 %v1302, 0
  %v1335 = vmax.bf16 %v1303, 0
  %v1336 = vmax.bf16 %v1304, 0
  %v1337 = vmax.bf16 %v1305, 0
  %v1338 = vmax.bf16 %v1306, 0
  %v1339 = vmax.bf16 %v1307, 0
  %v1340 = vmax.bf16 %v1308, 0
  %v1341 = vmax.bf16 %v1309, 0
  %v1342 = vmax.bf16 %v1310, 0
  %v1343 = vmax.bf16 %v1311, 0
  %v1344 = vmax.bf16 %v1312, 0
  %v1345 = vmax.bf16 %v1313, 0
  %v1346 = vmax.bf16 %v1314, 0
  %v1347 = vmax.bf16 %v1315, 0
  %v1348 = vmax.bf16 %v1316, 0
  %v1349 = vmax.bf16 %v1317, 0
  %v1350 = vmax.bf16 %v1318, 0
  %v1351 = vmax.bf16 %v1319, 0
  %v1352 = vmax.bf16 %v1320, 0
  %v1353 = vmax.bf16 %v1321, 0
  %v1354 = vmax.bf16 %v1322, 0
  %v1355 = vmax.bf16 %v1323, 0
  %v1356 = vmax.bf16 %v1324, 0
  %v1357 = vmax.bf16 %v1325, 0
  %v1358 = vmax.bf16 %v1326, 0
  %v1359 = vmax.bf16 %v1327, 0
  %v1360 = vmax.bf16 %v1328, 0
  %v1361 = vmax.bf16 %v1329, 0
  %v1362 = vld [vmem:[%s5] sm:$0xf]
  %v1363 = vld [vmem:[%s5 + $0x4] sm:$0xf]
  %v1364 = vld [vmem:[%s5 + $0x8] sm:$0xf]
  %v1365 = vld [vmem:[%s5 + $0xc] sm:$0xf]
  %v1366 = vld [vmem:[%s5 + $0x10] sm:$0xf]
  %v1367 = vld [vmem:[%s5 + $0x14] sm:$0xf]
  %v1368 = vld [vmem:[%s5 + $0x18] sm:$0xf]
  %v1369 = vld [vmem:[%s5 + $0x1c] sm:$0xf]
  %v1370 = vld [vmem:[%s5 + $0x20] sm:$0xf]
  %v1371 = vld [vmem:[%s5 + $0x24] sm:$0xf]
  %v1372 = vld [vmem:[%s5 + $0x28] sm:$0xf]
  %v1373 = vld [vmem:[%s5 + $0x2c] sm:$0xf]
  %v1374 = vld [vmem:[%s5 + $0x30] sm:$0xf]
  %v1375 = vld [vmem:[%s5 + $0x34] sm:$0xf]
  %v1376 = vld [vmem:[%s5 + $0x38] sm:$0xf]
  %v1377 = vld [vmem:[%s5 + $0x3c] sm:$0xf]
  %v1394 = vunpack.c.l.b16 %v1362
  %v1395 = vunpack.c.l.b16 %v1363
  %v1396 = vunpack.c.l.b16 %v1364
  %v1397 = vunpack.c.l.b16 %v1365
  %v1398 = vunpack.c.l.b16 %v1366
  %v1399 = vunpack.c.l.b16 %v1367
  %v1400 = vunpack.c.l.b16 %v1368
  %v1401 = vunpack.c.l.b16 %v1369
  %v1402 = vunpack.c.l.b16 %v1370
  %v1403 = vunpack.c.l.b16 %v1371
  %v1404 = vunpack.c.l.b16 %v1372
  %v1405 = vunpack.c.l.b16 %v1373
  %v1406 = vunpack.c.l.b16 %v1374
  %v1407 = vunpack.c.l.b16 %v1375
  %v1408 = vunpack.c.l.b16 %v1376
  %v1409 = vunpack.c.l.b16 %v1377
  %v1410 = vpack.c.b16 %v1395, %v1394
  %v1411 = vpack.c.b16 %v1397, %v1396
  %v1412 = vpack.c.b16 %v1399, %v1398
  %v1413 = vpack.c.b16 %v1401, %v1400
  %v1414 = vpack.c.b16 %v1403, %v1402
  %v1415 = vpack.c.b16 %v1405, %v1404
  %v1416 = vpack.c.b16 %v1407, %v1406
  %v1417 = vpack.c.b16 %v1409, %v1408
  %1426 = vmatprep.subr.bf16.mxu0 0
  %1427 = vmatpush1.bf16.msra.mxu0 %v1410
  %1428 = vmatprep.subr.bf16.mxu0 0
  %1429 = vmatpush1.bf16.msra.mxu0 %v1411
  %1430 = vmatprep.subr.bf16.mxu0 0
  %1431 = vmatpush1.bf16.msra.mxu0 %v1412
  %1432 = vmatprep.subr.bf16.mxu0 0
  %1433 = vmatpush1.bf16.msra.mxu0 %v1413
  %1434 = vmatprep.subr.bf16.mxu0 0
  %1435 = vmatpush1.bf16.msra.mxu0 %v1414
  %1436 = vmatprep.subr.bf16.mxu0 0
  %1437 = vmatpush1.bf16.msra.mxu0 %v1415
  %1438 = vmatprep.subr.bf16.mxu0 0
  %1439 = vmatpush1.bf16.msra.mxu0 %v1416
  %1440 = vmatprep.subr.bf16.mxu0 0
  %1441 = vmatpush1.bf16.msra.mxu0 %v1417
  %1442 = vmatprep.subr.bf16.mxu0 0
  %1443 = vmatpush1.bf16.msra.mxu0 0
  %1444 = vmatprep.subr.bf16.mxu0 0
  %1445 = vmatpush1.bf16.msra.mxu0 0
  %1446 = vmatprep.subr.bf16.mxu0 0
  %1447 = vmatpush1.bf16.msra.mxu0 0
  %1448 = vmatprep.subr.bf16.mxu0 0
  %1449 = vmatpush1.bf16.msra.mxu0 0
  %1450 = vmatprep.subr.bf16.mxu0 0
  %1451 = vmatpush1.bf16.msra.mxu0 0
  %1452 = vmatprep.subr.bf16.mxu0 0
  %1453 = vmatpush1.bf16.msra.mxu0 0
  %1454 = vmatprep.subr.bf16.mxu0 0
  %1455 = vmatpush1.bf16.msra.mxu0 0
  %1456 = vmatprep.subr.bf16.mxu0 0
  %1457 = vmatpush1.bf16.msra.mxu0 0
  %1458 = vmatprep.mubr.bf16.mxu0 0
  %1459 = vmatmul.mubr.bf16.gmra.mrb[0].mxu0 %v1330
  %v1460 = vpop.f32.mrb[0].mxu0
  %v1461 = vadd.f32 0.0, %v1460
  %v1462 = vpop.f32.mrb[0].mxu0
  %v1463 = vpop.f32.mrb[0].mxu0
  %v1464 = vadd.f32 0.0, %v1463
  %v1465 = vpop.f32.mrb[0].mxu0
  %1466 = vmatprep.mubr.bf16.mxu0 0
  %1467 = vmatmul.mubr.bf16.gmra.mrb[0].mxu0 %v1331
  %v1468 = vpop.f32.mrb[0].mxu0
  %v1469 = vadd.f32 0.0, %v1468
  %v1470 = vpop.f32.mrb[0].mxu0
  %v1471 = vpop.f32.mrb[0].mxu0
  %v1472 = vadd.f32 0.0, %v1471
  %v1473 = vpop.f32.mrb[0].mxu0
  %1474 = vmatprep.mubr.bf16.mxu0 0
  %1475 = vmatmul.mubr.bf16.gmra.mrb[0].mxu0 %v1332
  %v1476 = vpop.f32.mrb[0].mxu0
  %v1477 = vadd.f32 0.0, %v1476
  %v1478 = vpop.f32.mrb[0].mxu0
  %v1479 = vpop.f32.mrb[0].mxu0
  %v1480 = vadd.f32 0.0, %v1479
  %v1481 = vpop.f32.mrb[0].mxu0
  %1482 = vmatprep.mubr.bf16.mxu0 0
  %1483 = vmatmul.mubr.bf16.gmra.mrb[0].mxu0 %v1333
  %v1484 = vpop.f32.mrb[0].mxu0
  %v1485 = vadd.f32 0.0, %v1484
  %v1486 = vpop.f32.mrb[0].mxu0
  %v1487 = vpop.f32.mrb[0].mxu0
  %v1488 = vadd.f32 0.0, %v1487
  %v1489 = vpop.f32.mrb[0].mxu0
  %1490 = vmatprep.mubr.bf16.mxu0 0
  %1491 = vmatmul.mubr.bf16.gmra.mrb[0].mxu0 %v1334
  %v1492 = vpop.f32.mrb[0].mxu0
  %v1493 = vadd.f32 0.0, %v1492
  %v1494 = vpop.f32.mrb[0].mxu0
  %v1495 = vpop.f32.mrb[0].mxu0
  %v1496 = vadd.f32 0.0, %v1495
  %v1497 = vpop.f32.mrb[0].mxu0
  %1498 = vmatprep.mubr.bf16.mxu0 0
  %1499 = vmatmul.mubr.bf16.gmra.mrb[0].mxu0 %v1335
  %v1500 = vpop.f32.mrb[0].mxu0
  %v1501 = vadd.f32 0.0, %v1500
  %v1502 = vpop.f32.mrb[0].mxu0
  %v1503 = vpop.f32.mrb[0].mxu0
  %v1504 = vadd.f32 0.0, %v1503
  %v1505 = vpop.f32.mrb[0].mxu0
  %1506 = vmatprep.mubr.bf16.mxu0 0
  %1507 = vmatmul.mubr.bf16.gmra.mrb[0].mxu0 %v1336
  %v1508 = vpop.f32.mrb[0].mxu0
  %v1509 = vadd.f32 0.0, %v1508
  %v1510 = vpop.f32.mrb[0].mxu0
  %v1511 = vpop.f32.mrb[0].mxu0
  %v1512 = vadd.f32 0.0, %v1511
  %v1513 = vpop.f32.mrb[0].mxu0
  %1514 = vmatprep.mubr.bf16.mxu0 0
  %1515 = vmatmul.mubr.bf16.gmra.mrb[0].mxu0 %v1337
  %v1516 = vpop.f32.mrb[0].mxu0
  %v1517 = vadd.f32 0.0, %v1516
  %v1518 = vpop.f32.mrb[0].mxu0
  %v1519 = vpop.f32.mrb[0].mxu0
  %v1520 = vadd.f32 0.0, %v1519
  %v1521 = vpop.f32.mrb[0].mxu0
  %1522 = vmatprep.mubr.bf16.mxu0 0
  %1523 = vmatmul.mubr.bf16.gmra.mrb[0].mxu0 %v1338
  %v1524 = vpop.f32.mrb[0].mxu0
  %v1525 = vadd.f32 0.0, %v1524
  %v1526 = vpop.f32.mrb[0].mxu0
  %v1527 = vpop.f32.mrb[0].mxu0
  %v1528 = vadd.f32 0.0, %v1527
  %v1529 = vpop.f32.mrb[0].mxu0
  %1530 = vmatprep.mubr.bf16.mxu0 0
  %1531 = vmatmul.mubr.bf16.gmra.mrb[0].mxu0 %v1339
  %v1532 = vpop.f32.mrb[0].mxu0
  %v1533 = vadd.f32 0.0, %v1532
  %v1534 = vpop.f32.mrb[0].mxu0
  %v1535 = vpop.f32.mrb[0].mxu0
  %v1536 = vadd.f32 0.0, %v1535
  %v1537 = vpop.f32.mrb[0].mxu0
  %1538 = vmatprep.mubr.bf16.mxu0 0
  %1539 = vmatmul.mubr.bf16.gmra.mrb[0].mxu0 %v1340
  %v1540 = vpop.f32.mrb[0].mxu0
  %v1541 = vadd.f32 0.0, %v1540
  %v1542 = vpop.f32.mrb[0].mxu0
  %v1543 = vpop.f32.mrb[0].mxu0
  %v1544 = vadd.f32 0.0, %v1543
  %v1545 = vpop.f32.mrb[0].mxu0
  %1546 = vmatprep.mubr.bf16.mxu0 0
  %1547 = vmatmul.mubr.bf16.gmra.mrb[0].mxu0 %v1341
  %v1548 = vpop.f32.mrb[0].mxu0
  %v1549 = vadd.f32 0.0, %v1548
  %v1550 = vpop.f32.mrb[0].mxu0
  %v1551 = vpop.f32.mrb[0].mxu0
  %v1552 = vadd.f32 0.0, %v1551
  %v1553 = vpop.f32.mrb[0].mxu0
  %1554 = vmatprep.mubr.bf16.mxu0 0
  %1555 = vmatmul.mubr.bf16.gmra.mrb[0].mxu0 %v1342
  %v1556 = vpop.f32.mrb[0].mxu0
  %v1557 = vadd.f32 0.0, %v1556
  %v1558 = vpop.f32.mrb[0].mxu0
  %v1559 = vpop.f32.mrb[0].mxu0
  %v1560 = vadd.f32 0.0, %v1559
  %v1561 = vpop.f32.mrb[0].mxu0
  %1562 = vmatprep.mubr.bf16.mxu0 0
  %1563 = vmatmul.mubr.bf16.gmra.mrb[0].mxu0 %v1343
  %v1564 = vpop.f32.mrb[0].mxu0
  %v1565 = vadd.f32 0.0, %v1564
  %v1566 = vpop.f32.mrb[0].mxu0
  %v1567 = vpop.f32.mrb[0].mxu0
  %v1568 = vadd.f32 0.0, %v1567
  %v1569 = vpop.f32.mrb[0].mxu0
  %1570 = vmatprep.mubr.bf16.mxu0 0
  %1571 = vmatmul.mubr.bf16.gmra.mrb[0].mxu0 %v1344
  %v1572 = vpop.f32.mrb[0].mxu0
  %v1573 = vadd.f32 0.0, %v1572
  %v1574 = vpop.f32.mrb[0].mxu0
  %v1575 = vpop.f32.mrb[0].mxu0
  %v1576 = vadd.f32 0.0, %v1575
  %v1577 = vpop.f32.mrb[0].mxu0
  %1578 = vmatprep.mubr.bf16.mxu0 0
  %1579 = vmatmul.mubr.bf16.gmra.mrb[0].mxu0 %v1345
  %v1580 = vpop.f32.mrb[0].mxu0
  %v1581 = vadd.f32 0.0, %v1580
  %v1582 = vpop.f32.mrb[0].mxu0
  %v1583 = vpop.f32.mrb[0].mxu0
  %v1584 = vadd.f32 0.0, %v1583
  %v1585 = vpop.f32.mrb[0].mxu0
  %1586 = vmatprep.mubr.bf16.mxu0 0
  %1587 = vmatmul.mubr.bf16.gmra.mrb[0].mxu0 %v1346
  %v1588 = vpop.f32.mrb[0].mxu0
  %v1589 = vadd.f32 0.0, %v1588
  %v1590 = vpop.f32.mrb[0].mxu0
  %v1591 = vpop.f32.mrb[0].mxu0
  %v1592 = vadd.f32 0.0, %v1591
  %v1593 = vpop.f32.mrb[0].mxu0
  %1594 = vmatprep.mubr.bf16.mxu0 0
  %1595 = vmatmul.mubr.bf16.gmra.mrb[0].mxu0 %v1347
  %v1596 = vpop.f32.mrb[0].mxu0
  %v1597 = vadd.f32 0.0, %v1596
  %v1598 = vpop.f32.mrb[0].mxu0
  %v1599 = vpop.f32.mrb[0].mxu0
  %v1600 = vadd.f32 0.0, %v1599
  %v1601 = vpop.f32.mrb[0].mxu0
  %1602 = vmatprep.mubr.bf16.mxu0 0
  %1603 = vmatmul.mubr.bf16.gmra.mrb[0].mxu0 %v1348
  %v1604 = vpop.f32.mrb[0].mxu0
  %v1605 = vadd.f32 0.0, %v1604
  %v1606 = vpop.f32.mrb[0].mxu0
  %v1607 = vpop.f32.mrb[0].mxu0
  %v1608 = vadd.f32 0.0, %v1607
  %v1609 = vpop.f32.mrb[0].mxu0
  %1610 = vmatprep.mubr.bf16.mxu0 0
  %1611 = vmatmul.mubr.bf16.gmra.mrb[0].mxu0 %v1349
  %v1612 = vpop.f32.mrb[0].mxu0
  %v1613 = vadd.f32 0.0, %v1612
  %v1614 = vpop.f32.mrb[0].mxu0
  %v1615 = vpop.f32.mrb[0].mxu0
  %v1616 = vadd.f32 0.0, %v1615
  %v1617 = vpop.f32.mrb[0].mxu0
  %1618 = vmatprep.mubr.bf16.mxu0 0
  %1619 = vmatmul.mubr.bf16.gmra.mrb[0].mxu0 %v1350
  %v1620 = vpop.f32.mrb[0].mxu0
  %v1621 = vadd.f32 0.0, %v1620
  %v1622 = vpop.f32.mrb[0].mxu0
  %v1623 = vpop.f32.mrb[0].mxu0
  %v1624 = vadd.f32 0.0, %v1623
  %v1625 = vpop.f32.mrb[0].mxu0
  %1626 = vmatprep.mubr.bf16.mxu0 0
  %1627 = vmatmul.mubr.bf16.gmra.mrb[0].mxu0 %v1351
  %v1628 = vpop.f32.mrb[0].mxu0
  %v1629 = vadd.f32 0.0, %v1628
  %v1630 = vpop.f32.mrb[0].mxu0
  %v1631 = vpop.f32.mrb[0].mxu0
  %v1632 = vadd.f32 0.0, %v1631
  %v1633 = vpop.f32.mrb[0].mxu0
  %1634 = vmatprep.mubr.bf16.mxu0 0
  %1635 = vmatmul.mubr.bf16.gmra.mrb[0].mxu0 %v1352
  %v1636 = vpop.f32.mrb[0].mxu0
  %v1637 = vadd.f32 0.0, %v1636
  %v1638 = vpop.f32.mrb[0].mxu0
  %v1639 = vpop.f32.mrb[0].mxu0
  %v1640 = vadd.f32 0.0, %v1639
  %v1641 = vpop.f32.mrb[0].mxu0
  %1642 = vmatprep.mubr.bf16.mxu0 0
  %1643 = vmatmul.mubr.bf16.gmra.mrb[0].mxu0 %v1353
  %v1644 = vpop.f32.mrb[0].mxu0
  %v1645 = vadd.f32 0.0, %v1644
  %v1646 = vpop.f32.mrb[0].mxu0
  %v1647 = vpop.f32.mrb[0].mxu0
  %v1648 = vadd.f32 0.0, %v1647
  %v1649 = vpop.f32.mrb[0].mxu0
  %1650 = vmatprep.mubr.bf16.mxu0 0
  %1651 = vmatmul.mubr.bf16.gmra.mrb[0].mxu0 %v1354
  %v1652 = vpop.f32.mrb[0].mxu0
  %v1653 = vadd.f32 0.0, %v1652
  %v1654 = vpop.f32.mrb[0].mxu0
  %v1655 = vpop.f32.mrb[0].mxu0
  %v1656 = vadd.f32 0.0, %v1655
  %v1657 = vpop.f32.mrb[0].mxu0
  %1658 = vmatprep.mubr.bf16.mxu0 0
  %1659 = vmatmul.mubr.bf16.gmra.mrb[0].mxu0 %v1355
  %v1660 = vpop.f32.mrb[0].mxu0
  %v1661 = vadd.f32 0.0, %v1660
  %v1662 = vpop.f32.mrb[0].mxu0
  %v1663 = vpop.f32.mrb[0].mxu0
  %v1664 = vadd.f32 0.0, %v1663
  %v1665 = vpop.f32.mrb[0].mxu0
  %1666 = vmatprep.mubr.bf16.mxu0 0
  %1667 = vmatmul.mubr.bf16.gmra.mrb[0].mxu0 %v1356
  %v1668 = vpop.f32.mrb[0].mxu0
  %v1669 = vadd.f32 0.0, %v1668
  %v1670 = vpop.f32.mrb[0].mxu0
  %v1671 = vpop.f32.mrb[0].mxu0
  %v1672 = vadd.f32 0.0, %v1671
  %v1673 = vpop.f32.mrb[0].mxu0
  %1674 = vmatprep.mubr.bf16.mxu0 0
  %1675 = vmatmul.mubr.bf16.gmra.mrb[0].mxu0 %v1357
  %v1676 = vpop.f32.mrb[0].mxu0
  %v1677 = vadd.f32 0.0, %v1676
  %v1678 = vpop.f32.mrb[0].mxu0
  %v1679 = vpop.f32.mrb[0].mxu0
  %v1680 = vadd.f32 0.0, %v1679
  %v1681 = vpop.f32.mrb[0].mxu0
  %1682 = vmatprep.mubr.bf16.mxu0 0
  %1683 = vmatmul.mubr.bf16.gmra.mrb[0].mxu0 %v1358
  %v1684 = vpop.f32.mrb[0].mxu0
  %v1685 = vadd.f32 0.0, %v1684
  %v1686 = vpop.f32.mrb[0].mxu0
  %v1687 = vpop.f32.mrb[0].mxu0
  %v1688 = vadd.f32 0.0, %v1687
  %v1689 = vpop.f32.mrb[0].mxu0
  %1690 = vmatprep.mubr.bf16.mxu0 0
  %1691 = vmatmul.mubr.bf16.gmra.mrb[0].mxu0 %v1359
  %v1692 = vpop.f32.mrb[0].mxu0
  %v1693 = vadd.f32 0.0, %v1692
  %v1694 = vpop.f32.mrb[0].mxu0
  %v1695 = vpop.f32.mrb[0].mxu0
  %v1696 = vadd.f32 0.0, %v1695
  %v1697 = vpop.f32.mrb[0].mxu0
  %1698 = vmatprep.mubr.bf16.mxu0 0
  %1699 = vmatmul.mubr.bf16.gmra.mrb[0].mxu0 %v1360
  %v1700 = vpop.f32.mrb[0].mxu0
  %v1701 = vadd.f32 0.0, %v1700
  %v1702 = vpop.f32.mrb[0].mxu0
  %v1703 = vpop.f32.mrb[0].mxu0
  %v1704 = vadd.f32 0.0, %v1703
  %v1705 = vpop.f32.mrb[0].mxu0
  %1706 = vmatprep.mubr.bf16.mxu0 0
  %1707 = vmatmul.mubr.bf16.gmra.mrb[0].mxu0 %v1361
  %v1708 = vpop.f32.mrb[0].mxu0
  %v1709 = vadd.f32 0.0, %v1708
  %v1710 = vpop.f32.mrb[0].mxu0
  %v1711 = vpop.f32.mrb[0].mxu0
  %v1712 = vadd.f32 0.0, %v1711
  %v1713 = vpop.f32.mrb[0].mxu0
  %1714 = vdwg.mxu0
  %v1715 = vpack.c.bf16 %v1464, %v1461
  %v1716 = vpack.c.bf16 %v1472, %v1469
  %v1717 = vpack.c.bf16 %v1480, %v1477
  %v1718 = vpack.c.bf16 %v1488, %v1485
  %v1719 = vpack.c.bf16 %v1496, %v1493
  %v1720 = vpack.c.bf16 %v1504, %v1501
  %v1721 = vpack.c.bf16 %v1512, %v1509
  %v1722 = vpack.c.bf16 %v1520, %v1517
  %v1723 = vpack.c.bf16 %v1528, %v1525
  %v1724 = vpack.c.bf16 %v1536, %v1533
  %v1725 = vpack.c.bf16 %v1544, %v1541
  %v1726 = vpack.c.bf16 %v1552, %v1549
  %v1727 = vpack.c.bf16 %v1560, %v1557
  %v1728 = vpack.c.bf16 %v1568, %v1565
  %v1729 = vpack.c.bf16 %v1576, %v1573
  %v1730 = vpack.c.bf16 %v1584, %v1581
  %v1731 = vpack.c.bf16 %v1592, %v1589
  %v1732 = vpack.c.bf16 %v1600, %v1597
  %v1733 = vpack.c.bf16 %v1608, %v1605
  %v1734 = vpack.c.bf16 %v1616, %v1613
  %v1735 = vpack.c.bf16 %v1624, %v1621
  %v1736 = vpack.c.bf16 %v1632, %v1629
  %v1737 = vpack.c.bf16 %v1640, %v1637
  %v1738 = vpack.c.bf16 %v1648, %v1645
  %v1739 = vpack.c.bf16 %v1656, %v1653
  %v1740 = vpack.c.bf16 %v1664, %v1661
  %v1741 = vpack.c.bf16 %v1672, %v1669
  %v1742 = vpack.c.bf16 %v1680, %v1677
  %v1743 = vpack.c.bf16 %v1688, %v1685
  %v1744 = vpack.c.bf16 %v1696, %v1693
  %v1745 = vpack.c.bf16 %v1704, %v1701
  %v1746 = vpack.c.bf16 %v1712, %v1709
  %v1747 = vld [vmem:[%s6] sm:$0x1]
  %v1749 = vpack.i.b16 %v1747, %v1747
  %v1751 = vlaneseq
  %v1752 = vshrl.u32 %v1751, 7
  %v1753 = vsub.s32 0, %v1752
  %v1754 = vrot.slane %v1749, %v1753
  %v1755 = vadd.bf16 %v1715, %v1754
  %v1756 = vadd.bf16 %v1716, %v1754
  %v1757 = vadd.bf16 %v1717, %v1754
  %v1758 = vadd.bf16 %v1718, %v1754
  %v1759 = vadd.bf16 %v1719, %v1754
  %v1760 = vadd.bf16 %v1720, %v1754
  %v1761 = vadd.bf16 %v1721, %v1754
  %v1762 = vadd.bf16 %v1722, %v1754
  %v1763 = vadd.bf16 %v1723, %v1754
  %v1764 = vadd.bf16 %v1724, %v1754
  %v1765 = vadd.bf16 %v1725, %v1754
  %v1766 = vadd.bf16 %v1726, %v1754
  %v1767 = vadd.bf16 %v1727, %v1754
  %v1768 = vadd.bf16 %v1728, %v1754
  %v1769 = vadd.bf16 %v1729, %v1754
  %v1770 = vadd.bf16 %v1730, %v1754
  %v1771 = vadd.bf16 %v1731, %v1754
  %v1772 = vadd.bf16 %v1732, %v1754
  %v1773 = vadd.bf16 %v1733, %v1754
  %v1774 = vadd.bf16 %v1734, %v1754
  %v1775 = vadd.bf16 %v1735, %v1754
  %v1776 = vadd.bf16 %v1736, %v1754
  %v1777 = vadd.bf16 %v1737, %v1754
  %v1778 = vadd.bf16 %v1738, %v1754
  %v1779 = vadd.bf16 %v1739, %v1754
  %v1780 = vadd.bf16 %v1740, %v1754
  %v1781 = vadd.bf16 %v1741, %v1754
  %v1782 = vadd.bf16 %v1742, %v1754
  %v1783 = vadd.bf16 %v1743, %v1754
  %v1784 = vadd.bf16 %v1744, %v1754
  %v1785 = vadd.bf16 %v1745, %v1754
  %v1786 = vadd.bf16 %v1746, %v1754
  %v1787 = vmax.bf16 %v1755, 0
  %v1788 = vmax.bf16 %v1756, 0
  %v1789 = vmax.bf16 %v1757, 0
  %v1790 = vmax.bf16 %v1758, 0
  %v1791 = vmax.bf16 %v1759, 0
  %v1792 = vmax.bf16 %v1760, 0
  %v1793 = vmax.bf16 %v1761, 0
  %v1794 = vmax.bf16 %v1762, 0
  %v1795 = vmax.bf16 %v1763, 0
  %v1796 = vmax.bf16 %v1764, 0
  %v1797 = vmax.bf16 %v1765, 0
  %v1798 = vmax.bf16 %v1766, 0
  %v1799 = vmax.bf16 %v1767, 0
  %v1800 = vmax.bf16 %v1768, 0
  %v1801 = vmax.bf16 %v1769, 0
  %v1802 = vmax.bf16 %v1770, 0
  %v1803 = vmax.bf16 %v1771, 0
  %v1804 = vmax.bf16 %v1772, 0
  %v1805 = vmax.bf16 %v1773, 0
  %v1806 = vmax.bf16 %v1774, 0
  %v1807 = vmax.bf16 %v1775, 0
  %v1808 = vmax.bf16 %v1776, 0
  %v1809 = vmax.bf16 %v1777, 0
  %v1810 = vmax.bf16 %v1778, 0
  %v1811 = vmax.bf16 %v1779, 0
  %v1812 = vmax.bf16 %v1780, 0
  %v1813 = vmax.bf16 %v1781, 0
  %v1814 = vmax.bf16 %v1782, 0
  %v1815 = vmax.bf16 %v1783, 0
  %v1816 = vmax.bf16 %v1784, 0
  %v1817 = vmax.bf16 %v1785, 0
  %v1818 = vmax.bf16 %v1786, 0
  %v1819 = vld [vmem:[%s7] sm:$0xf]
  %v1820 = vld [vmem:[%s7 + $0x4] sm:$0xf]
  %v1821 = vld [vmem:[%s7 + $0x8] sm:$0xf]
  %v1822 = vld [vmem:[%s7 + $0xc] sm:$0xf]
  %v1823 = vld [vmem:[%s7 + $0x10] sm:$0xf]
  %v1824 = vld [vmem:[%s7 + $0x14] sm:$0xf]
  %v1825 = vld [vmem:[%s7 + $0x18] sm:$0xf]
  %v1826 = vld [vmem:[%s7 + $0x1c] sm:$0xf]
  %v1835 = vunpack.c.l.b16 %v1819
  %v1836 = vunpack.c.l.b16 %v1820
  %v1837 = vunpack.c.l.b16 %v1821
  %v1838 = vunpack.c.l.b16 %v1822
  %v1839 = vunpack.c.l.b16 %v1823
  %v1840 = vunpack.c.l.b16 %v1824
  %v1841 = vunpack.c.l.b16 %v1825
  %v1842 = vunpack.c.l.b16 %v1826
  %v1843 = vpack.c.b16 %v1836, %v1835
  %v1844 = vpack.c.b16 %v1838, %v1837
  %v1845 = vpack.c.b16 %v1840, %v1839
  %v1846 = vpack.c.b16 %v1842, %v1841
  %vm1851 = vcmask 523264
  %v1853 = vsel %vm1851, %v1787, 0
  %v1856 = vsel %vm1851, %v1788, 0
  %v1859 = vsel %vm1851, %v1789, 0
  %v1862 = vsel %vm1851, %v1790, 0
  %v1865 = vsel %vm1851, %v1791, 0
  %v1868 = vsel %vm1851, %v1792, 0
  %v1871 = vsel %vm1851, %v1793, 0
  %v1874 = vsel %vm1851, %v1794, 0
  %v1877 = vsel %vm1851, %v1795, 0
  %v1880 = vsel %vm1851, %v1796, 0
  %v1883 = vsel %vm1851, %v1797, 0
  %v1886 = vsel %vm1851, %v1798, 0
  %v1889 = vsel %vm1851, %v1799, 0
  %v1892 = vsel %vm1851, %v1800, 0
  %v1895 = vsel %vm1851, %v1801, 0
  %v1898 = vsel %vm1851, %v1802, 0
  %v1901 = vsel %vm1851, %v1803, 0
  %v1904 = vsel %vm1851, %v1804, 0
  %v1907 = vsel %vm1851, %v1805, 0
  %v1910 = vsel %vm1851, %v1806, 0
  %v1913 = vsel %vm1851, %v1807, 0
  %v1916 = vsel %vm1851, %v1808, 0
  %v1919 = vsel %vm1851, %v1809, 0
  %v1922 = vsel %vm1851, %v1810, 0
  %v1925 = vsel %vm1851, %v1811, 0
  %v1928 = vsel %vm1851, %v1812, 0
  %v1931 = vsel %vm1851, %v1813, 0
  %v1934 = vsel %vm1851, %v1814, 0
  %v1937 = vsel %vm1851, %v1815, 0
  %v1940 = vsel %vm1851, %v1816, 0
  %v1943 = vsel %vm1851, %v1817, 0
  %v1946 = vsel %vm1851, %v1818, 0
  %1948 = vmatprep.subr.bf16.mxu0 0
  %1949 = vmatpush1.bf16.msra.mxu0 %v1843
  %1950 = vmatprep.subr.bf16.mxu0 0
  %1951 = vmatpush1.bf16.msra.mxu0 %v1844
  %1952 = vmatprep.subr.bf16.mxu0 0
  %1953 = vmatpush1.bf16.msra.mxu0 %v1845
  %1954 = vmatprep.subr.bf16.mxu0 0
  %1955 = vmatpush1.bf16.msra.mxu0 %v1846
  %1956 = vmatprep.subr.bf16.mxu0 0
  %1957 = vmatpush1.bf16.msra.mxu0 0
  %1958 = vmatprep.subr.bf16.mxu0 0
  %1959 = vmatpush1.bf16.msra.mxu0 0
  %1960 = vmatprep.subr.bf16.mxu0 0
  %1961 = vmatpush1.bf16.msra.mxu0 0
  %1962 = vmatprep.subr.bf16.mxu0 0
  %1963 = vmatpush1.bf16.msra.mxu0 0
  %1964 = vmatprep.subr.bf16.mxu0 0
  %1965 = vmatpush1.bf16.msra.mxu0 0
  %1966 = vmatprep.subr.bf16.mxu0 0
  %1967 = vmatpush1.bf16.msra.mxu0 0
  %1968 = vmatprep.subr.bf16.mxu0 0
  %1969 = vmatpush1.bf16.msra.mxu0 0
  %1970 = vmatprep.subr.bf16.mxu0 0
  %1971 = vmatpush1.bf16.msra.mxu0 0
  %1972 = vmatprep.subr.bf16.mxu0 0
  %1973 = vmatpush1.bf16.msra.mxu0 0
  %1974 = vmatprep.subr.bf16.mxu0 0
  %1975 = vmatpush1.bf16.msra.mxu0 0
  %1976 = vmatprep.subr.bf16.mxu0 0
  %1977 = vmatpush1.bf16.msra.mxu0 0
  %1978 = vmatprep.subr.bf16.mxu0 0
  %1979 = vmatpush1.bf16.msra.mxu0 0
  %1980 = vmatprep.mubr.bf16.mxu0 0
  %1981 = vmatmul.mubr.bf16.gmra.mrb[0].mxu0 %v1853
  %v1982 = vpop.f32.mrb[0].mxu0
  %v1983 = vadd.f32 0.0, %v1982
  %v1984 = vpop.f32.mrb[0].mxu0
  %v1985 = vpop.f32.mrb[0].mxu0
  %v1986 = vadd.f32 0.0, %v1985
  %v1987 = vpop.f32.mrb[0].mxu0
  %1988 = vmatprep.mubr.bf16.mxu0 0
  %1989 = vmatmul.mubr.bf16.gmra.mrb[0].mxu0 %v1856
  %v1990 = vpop.f32.mrb[0].mxu0
  %v1991 = vadd.f32 0.0, %v1990
  %v1992 = vpop.f32.mrb[0].mxu0
  %v1993 = vpop.f32.mrb[0].mxu0
  %v1994 = vadd.f32 0.0, %v1993
  %v1995 = vpop.f32.mrb[0].mxu0
  %1996 = vmatprep.mubr.bf16.mxu0 0
  %1997 = vmatmul.mubr.bf16.gmra.mrb[0].mxu0 %v1859
  %v1998 = vpop.f32.mrb[0].mxu0
  %v1999 = vadd.f32 0.0, %v1998
  %v2000 = vpop.f32.mrb[0].mxu0
  %v2001 = vpop.f32.mrb[0].mxu0
  %v2002 = vadd.f32 0.0, %v2001
  %v2003 = vpop.f32.mrb[0].mxu0
  %2004 = vmatprep.mubr.bf16.mxu0 0
  %2005 = vmatmul.mubr.bf16.gmra.mrb[0].mxu0 %v1862
  %v2006 = vpop.f32.mrb[0].mxu0
  %v2007 = vadd.f32 0.0, %v2006
  %v2008 = vpop.f32.mrb[0].mxu0
  %v2009 = vpop.f32.mrb[0].mxu0
  %v2010 = vadd.f32 0.0, %v2009
  %v2011 = vpop.f32.mrb[0].mxu0
  %2012 = vmatprep.mubr.bf16.mxu0 0
  %2013 = vmatmul.mubr.bf16.gmra.mrb[0].mxu0 %v1865
  %v2014 = vpop.f32.mrb[0].mxu0
  %v2015 = vadd.f32 0.0, %v2014
  %v2016 = vpop.f32.mrb[0].mxu0
  %v2017 = vpop.f32.mrb[0].mxu0
  %v2018 = vadd.f32 0.0, %v2017
  %v2019 = vpop.f32.mrb[0].mxu0
  %2020 = vmatprep.mubr.bf16.mxu0 0
  %2021 = vmatmul.mubr.bf16.gmra.mrb[0].mxu0 %v1868
  %v2022 = vpop.f32.mrb[0].mxu0
  %v2023 = vadd.f32 0.0, %v2022
  %v2024 = vpop.f32.mrb[0].mxu0
  %v2025 = vpop.f32.mrb[0].mxu0
  %v2026 = vadd.f32 0.0, %v2025
  %v2027 = vpop.f32.mrb[0].mxu0
  %2028 = vmatprep.mubr.bf16.mxu0 0
  %2029 = vmatmul.mubr.bf16.gmra.mrb[0].mxu0 %v1871
  %v2030 = vpop.f32.mrb[0].mxu0
  %v2031 = vadd.f32 0.0, %v2030
  %v2032 = vpop.f32.mrb[0].mxu0
  %v2033 = vpop.f32.mrb[0].mxu0
  %v2034 = vadd.f32 0.0, %v2033
  %v2035 = vpop.f32.mrb[0].mxu0
  %2036 = vmatprep.mubr.bf16.mxu0 0
  %2037 = vmatmul.mubr.bf16.gmra.mrb[0].mxu0 %v1874
  %v2038 = vpop.f32.mrb[0].mxu0
  %v2039 = vadd.f32 0.0, %v2038
  %v2040 = vpop.f32.mrb[0].mxu0
  %v2041 = vpop.f32.mrb[0].mxu0
  %v2042 = vadd.f32 0.0, %v2041
  %v2043 = vpop.f32.mrb[0].mxu0
  %2044 = vmatprep.mubr.bf16.mxu0 0
  %2045 = vmatmul.mubr.bf16.gmra.mrb[0].mxu0 %v1877
  %v2046 = vpop.f32.mrb[0].mxu0
  %v2047 = vadd.f32 0.0, %v2046
  %v2048 = vpop.f32.mrb[0].mxu0
  %v2049 = vpop.f32.mrb[0].mxu0
  %v2050 = vadd.f32 0.0, %v2049
  %v2051 = vpop.f32.mrb[0].mxu0
  %2052 = vmatprep.mubr.bf16.mxu0 0
  %2053 = vmatmul.mubr.bf16.gmra.mrb[0].mxu0 %v1880
  %v2054 = vpop.f32.mrb[0].mxu0
  %v2055 = vadd.f32 0.0, %v2054
  %v2056 = vpop.f32.mrb[0].mxu0
  %v2057 = vpop.f32.mrb[0].mxu0
  %v2058 = vadd.f32 0.0, %v2057
  %v2059 = vpop.f32.mrb[0].mxu0
  %2060 = vmatprep.mubr.bf16.mxu0 0
  %2061 = vmatmul.mubr.bf16.gmra.mrb[0].mxu0 %v1883
  %v2062 = vpop.f32.mrb[0].mxu0
  %v2063 = vadd.f32 0.0, %v2062
  %v2064 = vpop.f32.mrb[0].mxu0
  %v2065 = vpop.f32.mrb[0].mxu0
  %v2066 = vadd.f32 0.0, %v2065
  %v2067 = vpop.f32.mrb[0].mxu0
  %2068 = vmatprep.mubr.bf16.mxu0 0
  %2069 = vmatmul.mubr.bf16.gmra.mrb[0].mxu0 %v1886
  %v2070 = vpop.f32.mrb[0].mxu0
  %v2071 = vadd.f32 0.0, %v2070
  %v2072 = vpop.f32.mrb[0].mxu0
  %v2073 = vpop.f32.mrb[0].mxu0
  %v2074 = vadd.f32 0.0, %v2073
  %v2075 = vpop.f32.mrb[0].mxu0
  %2076 = vmatprep.mubr.bf16.mxu0 0
  %2077 = vmatmul.mubr.bf16.gmra.mrb[0].mxu0 %v1889
  %v2078 = vpop.f32.mrb[0].mxu0
  %v2079 = vadd.f32 0.0, %v2078
  %v2080 = vpop.f32.mrb[0].mxu0
  %v2081 = vpop.f32.mrb[0].mxu0
  %v2082 = vadd.f32 0.0, %v2081
  %v2083 = vpop.f32.mrb[0].mxu0
  %2084 = vmatprep.mubr.bf16.mxu0 0
  %2085 = vmatmul.mubr.bf16.gmra.mrb[0].mxu0 %v1892
  %v2086 = vpop.f32.mrb[0].mxu0
  %v2087 = vadd.f32 0.0, %v2086
  %v2088 = vpop.f32.mrb[0].mxu0
  %v2089 = vpop.f32.mrb[0].mxu0
  %v2090 = vadd.f32 0.0, %v2089
  %v2091 = vpop.f32.mrb[0].mxu0
  %2092 = vmatprep.mubr.bf16.mxu0 0
  %2093 = vmatmul.mubr.bf16.gmra.mrb[0].mxu0 %v1895
  %v2094 = vpop.f32.mrb[0].mxu0
  %v2095 = vadd.f32 0.0, %v2094
  %v2096 = vpop.f32.mrb[0].mxu0
  %v2097 = vpop.f32.mrb[0].mxu0
  %v2098 = vadd.f32 0.0, %v2097
  %v2099 = vpop.f32.mrb[0].mxu0
  %2100 = vmatprep.mubr.bf16.mxu0 0
  %2101 = vmatmul.mubr.bf16.gmra.mrb[0].mxu0 %v1898
  %v2102 = vpop.f32.mrb[0].mxu0
  %v2103 = vadd.f32 0.0, %v2102
  %v2104 = vpop.f32.mrb[0].mxu0
  %v2105 = vpop.f32.mrb[0].mxu0
  %v2106 = vadd.f32 0.0, %v2105
  %v2107 = vpop.f32.mrb[0].mxu0
  %2108 = vmatprep.mubr.bf16.mxu0 0
  %2109 = vmatmul.mubr.bf16.gmra.mrb[0].mxu0 %v1901
  %v2110 = vpop.f32.mrb[0].mxu0
  %v2111 = vadd.f32 0.0, %v2110
  %v2112 = vpop.f32.mrb[0].mxu0
  %v2113 = vpop.f32.mrb[0].mxu0
  %v2114 = vadd.f32 0.0, %v2113
  %v2115 = vpop.f32.mrb[0].mxu0
  %2116 = vmatprep.mubr.bf16.mxu0 0
  %2117 = vmatmul.mubr.bf16.gmra.mrb[0].mxu0 %v1904
  %v2118 = vpop.f32.mrb[0].mxu0
  %v2119 = vadd.f32 0.0, %v2118
  %v2120 = vpop.f32.mrb[0].mxu0
  %v2121 = vpop.f32.mrb[0].mxu0
  %v2122 = vadd.f32 0.0, %v2121
  %v2123 = vpop.f32.mrb[0].mxu0
  %2124 = vmatprep.mubr.bf16.mxu0 0
  %2125 = vmatmul.mubr.bf16.gmra.mrb[0].mxu0 %v1907
  %v2126 = vpop.f32.mrb[0].mxu0
  %v2127 = vadd.f32 0.0, %v2126
  %v2128 = vpop.f32.mrb[0].mxu0
  %v2129 = vpop.f32.mrb[0].mxu0
  %v2130 = vadd.f32 0.0, %v2129
  %v2131 = vpop.f32.mrb[0].mxu0
  %2132 = vmatprep.mubr.bf16.mxu0 0
  %2133 = vmatmul.mubr.bf16.gmra.mrb[0].mxu0 %v1910
  %v2134 = vpop.f32.mrb[0].mxu0
  %v2135 = vadd.f32 0.0, %v2134
  %v2136 = vpop.f32.mrb[0].mxu0
  %v2137 = vpop.f32.mrb[0].mxu0
  %v2138 = vadd.f32 0.0, %v2137
  %v2139 = vpop.f32.mrb[0].mxu0
  %2140 = vmatprep.mubr.bf16.mxu0 0
  %2141 = vmatmul.mubr.bf16.gmra.mrb[0].mxu0 %v1913
  %v2142 = vpop.f32.mrb[0].mxu0
  %v2143 = vadd.f32 0.0, %v2142
  %v2144 = vpop.f32.mrb[0].mxu0
  %v2145 = vpop.f32.mrb[0].mxu0
  %v2146 = vadd.f32 0.0, %v2145
  %v2147 = vpop.f32.mrb[0].mxu0
  %2148 = vmatprep.mubr.bf16.mxu0 0
  %2149 = vmatmul.mubr.bf16.gmra.mrb[0].mxu0 %v1916
  %v2150 = vpop.f32.mrb[0].mxu0
  %v2151 = vadd.f32 0.0, %v2150
  %v2152 = vpop.f32.mrb[0].mxu0
  %v2153 = vpop.f32.mrb[0].mxu0
  %v2154 = vadd.f32 0.0, %v2153
  %v2155 = vpop.f32.mrb[0].mxu0
  %2156 = vmatprep.mubr.bf16.mxu0 0
  %2157 = vmatmul.mubr.bf16.gmra.mrb[0].mxu0 %v1919
  %v2158 = vpop.f32.mrb[0].mxu0
  %v2159 = vadd.f32 0.0, %v2158
  %v2160 = vpop.f32.mrb[0].mxu0
  %v2161 = vpop.f32.mrb[0].mxu0
  %v2162 = vadd.f32 0.0, %v2161
  %v2163 = vpop.f32.mrb[0].mxu0
  %2164 = vmatprep.mubr.bf16.mxu0 0
  %2165 = vmatmul.mubr.bf16.gmra.mrb[0].mxu0 %v1922
  %v2166 = vpop.f32.mrb[0].mxu0
  %v2167 = vadd.f32 0.0, %v2166
  %v2168 = vpop.f32.mrb[0].mxu0
  %v2169 = vpop.f32.mrb[0].mxu0
  %v2170 = vadd.f32 0.0, %v2169
  %v2171 = vpop.f32.mrb[0].mxu0
  %2172 = vmatprep.mubr.bf16.mxu0 0
  %2173 = vmatmul.mubr.bf16.gmra.mrb[0].mxu0 %v1925
  %v2174 = vpop.f32.mrb[0].mxu0
  %v2175 = vadd.f32 0.0, %v2174
  %v2176 = vpop.f32.mrb[0].mxu0
  %v2177 = vpop.f32.mrb[0].mxu0
  %v2178 = vadd.f32 0.0, %v2177
  %v2179 = vpop.f32.mrb[0].mxu0
  %2180 = vmatprep.mubr.bf16.mxu0 0
  %2181 = vmatmul.mubr.bf16.gmra.mrb[0].mxu0 %v1928
  %v2182 = vpop.f32.mrb[0].mxu0
  %v2183 = vadd.f32 0.0, %v2182
  %v2184 = vpop.f32.mrb[0].mxu0
  %v2185 = vpop.f32.mrb[0].mxu0
  %v2186 = vadd.f32 0.0, %v2185
  %v2187 = vpop.f32.mrb[0].mxu0
  %2188 = vmatprep.mubr.bf16.mxu0 0
  %2189 = vmatmul.mubr.bf16.gmra.mrb[0].mxu0 %v1931
  %v2190 = vpop.f32.mrb[0].mxu0
  %v2191 = vadd.f32 0.0, %v2190
  %v2192 = vpop.f32.mrb[0].mxu0
  %v2193 = vpop.f32.mrb[0].mxu0
  %v2194 = vadd.f32 0.0, %v2193
  %v2195 = vpop.f32.mrb[0].mxu0
  %2196 = vmatprep.mubr.bf16.mxu0 0
  %2197 = vmatmul.mubr.bf16.gmra.mrb[0].mxu0 %v1934
  %v2198 = vpop.f32.mrb[0].mxu0
  %v2199 = vadd.f32 0.0, %v2198
  %v2200 = vpop.f32.mrb[0].mxu0
  %v2201 = vpop.f32.mrb[0].mxu0
  %v2202 = vadd.f32 0.0, %v2201
  %v2203 = vpop.f32.mrb[0].mxu0
  %2204 = vmatprep.mubr.bf16.mxu0 0
  %2205 = vmatmul.mubr.bf16.gmra.mrb[0].mxu0 %v1937
  %v2206 = vpop.f32.mrb[0].mxu0
  %v2207 = vadd.f32 0.0, %v2206
  %v2208 = vpop.f32.mrb[0].mxu0
  %v2209 = vpop.f32.mrb[0].mxu0
  %v2210 = vadd.f32 0.0, %v2209
  %v2211 = vpop.f32.mrb[0].mxu0
  %2212 = vmatprep.mubr.bf16.mxu0 0
  %2213 = vmatmul.mubr.bf16.gmra.mrb[0].mxu0 %v1940
  %v2214 = vpop.f32.mrb[0].mxu0
  %v2215 = vadd.f32 0.0, %v2214
  %v2216 = vpop.f32.mrb[0].mxu0
  %v2217 = vpop.f32.mrb[0].mxu0
  %v2218 = vadd.f32 0.0, %v2217
  %v2219 = vpop.f32.mrb[0].mxu0
  %2220 = vmatprep.mubr.bf16.mxu0 0
  %2221 = vmatmul.mubr.bf16.gmra.mrb[0].mxu0 %v1943
  %v2222 = vpop.f32.mrb[0].mxu0
  %v2223 = vadd.f32 0.0, %v2222
  %v2224 = vpop.f32.mrb[0].mxu0
  %v2225 = vpop.f32.mrb[0].mxu0
  %v2226 = vadd.f32 0.0, %v2225
  %v2227 = vpop.f32.mrb[0].mxu0
  %2228 = vmatprep.mubr.bf16.mxu0 0
  %2229 = vmatmul.mubr.bf16.gmra.mrb[0].mxu0 %v1946
  %v2230 = vpop.f32.mrb[0].mxu0
  %v2231 = vadd.f32 0.0, %v2230
  %v2232 = vpop.f32.mrb[0].mxu0
  %v2233 = vpop.f32.mrb[0].mxu0
  %v2234 = vadd.f32 0.0, %v2233
  %v2235 = vpop.f32.mrb[0].mxu0
  %2236 = vdwg.mxu0
  %v2237 = vpack.c.bf16 %v1986, %v1983
  %v2238 = vpack.c.bf16 %v1994, %v1991
  %v2239 = vpack.c.bf16 %v2002, %v1999
  %v2240 = vpack.c.bf16 %v2010, %v2007
  %v2241 = vpack.c.bf16 %v2018, %v2015
  %v2242 = vpack.c.bf16 %v2026, %v2023
  %v2243 = vpack.c.bf16 %v2034, %v2031
  %v2244 = vpack.c.bf16 %v2042, %v2039
  %v2245 = vpack.c.bf16 %v2050, %v2047
  %v2246 = vpack.c.bf16 %v2058, %v2055
  %v2247 = vpack.c.bf16 %v2066, %v2063
  %v2248 = vpack.c.bf16 %v2074, %v2071
  %v2249 = vpack.c.bf16 %v2082, %v2079
  %v2250 = vpack.c.bf16 %v2090, %v2087
  %v2251 = vpack.c.bf16 %v2098, %v2095
  %v2252 = vpack.c.bf16 %v2106, %v2103
  %v2253 = vpack.c.bf16 %v2114, %v2111
  %v2254 = vpack.c.bf16 %v2122, %v2119
  %v2255 = vpack.c.bf16 %v2130, %v2127
  %v2256 = vpack.c.bf16 %v2138, %v2135
  %v2257 = vpack.c.bf16 %v2146, %v2143
  %v2258 = vpack.c.bf16 %v2154, %v2151
  %v2259 = vpack.c.bf16 %v2162, %v2159
  %v2260 = vpack.c.bf16 %v2170, %v2167
  %v2261 = vpack.c.bf16 %v2178, %v2175
  %v2262 = vpack.c.bf16 %v2186, %v2183
  %v2263 = vpack.c.bf16 %v2194, %v2191
  %v2264 = vpack.c.bf16 %v2202, %v2199
  %v2265 = vpack.c.bf16 %v2210, %v2207
  %v2266 = vpack.c.bf16 %v2218, %v2215
  %v2267 = vpack.c.bf16 %v2226, %v2223
  %v2268 = vpack.c.bf16 %v2234, %v2231
  %v2269 = vld [vmem:[%s8] sm:$0x1]
  %v2271 = vpack.i.b16 %v2269, %v2269
  %v2273 = vlaneseq
  %v2274 = vshrl.u32 %v2273, 7
  %v2275 = vsub.s32 0, %v2274
  %v2276 = vrot.slane %v2271, %v2275
  %v2277 = vadd.bf16 %v2237, %v2276
  %v2278 = vadd.bf16 %v2238, %v2276
  %v2279 = vadd.bf16 %v2239, %v2276
  %v2280 = vadd.bf16 %v2240, %v2276
  %v2281 = vadd.bf16 %v2241, %v2276
  %v2282 = vadd.bf16 %v2242, %v2276
  %v2283 = vadd.bf16 %v2243, %v2276
  %v2284 = vadd.bf16 %v2244, %v2276
  %v2285 = vadd.bf16 %v2245, %v2276
  %v2286 = vadd.bf16 %v2246, %v2276
  %v2287 = vadd.bf16 %v2247, %v2276
  %v2288 = vadd.bf16 %v2248, %v2276
  %v2289 = vadd.bf16 %v2249, %v2276
  %v2290 = vadd.bf16 %v2250, %v2276
  %v2291 = vadd.bf16 %v2251, %v2276
  %v2292 = vadd.bf16 %v2252, %v2276
  %v2293 = vadd.bf16 %v2253, %v2276
  %v2294 = vadd.bf16 %v2254, %v2276
  %v2295 = vadd.bf16 %v2255, %v2276
  %v2296 = vadd.bf16 %v2256, %v2276
  %v2297 = vadd.bf16 %v2257, %v2276
  %v2298 = vadd.bf16 %v2258, %v2276
  %v2299 = vadd.bf16 %v2259, %v2276
  %v2300 = vadd.bf16 %v2260, %v2276
  %v2301 = vadd.bf16 %v2261, %v2276
  %v2302 = vadd.bf16 %v2262, %v2276
  %v2303 = vadd.bf16 %v2263, %v2276
  %v2304 = vadd.bf16 %v2264, %v2276
  %v2305 = vadd.bf16 %v2265, %v2276
  %v2306 = vadd.bf16 %v2266, %v2276
  %v2307 = vadd.bf16 %v2267, %v2276
  %v2308 = vadd.bf16 %v2268, %v2276
  %v2309 = vmax.bf16 %v2277, 0
  %v2310 = vmax.bf16 %v2278, 0
  %v2311 = vmax.bf16 %v2279, 0
  %v2312 = vmax.bf16 %v2280, 0
  %v2313 = vmax.bf16 %v2281, 0
  %v2314 = vmax.bf16 %v2282, 0
  %v2315 = vmax.bf16 %v2283, 0
  %v2316 = vmax.bf16 %v2284, 0
  %v2317 = vmax.bf16 %v2285, 0
  %v2318 = vmax.bf16 %v2286, 0
  %v2319 = vmax.bf16 %v2287, 0
  %v2320 = vmax.bf16 %v2288, 0
  %v2321 = vmax.bf16 %v2289, 0
  %v2322 = vmax.bf16 %v2290, 0
  %v2323 = vmax.bf16 %v2291, 0
  %v2324 = vmax.bf16 %v2292, 0
  %v2325 = vmax.bf16 %v2293, 0
  %v2326 = vmax.bf16 %v2294, 0
  %v2327 = vmax.bf16 %v2295, 0
  %v2328 = vmax.bf16 %v2296, 0
  %v2329 = vmax.bf16 %v2297, 0
  %v2330 = vmax.bf16 %v2298, 0
  %v2331 = vmax.bf16 %v2299, 0
  %v2332 = vmax.bf16 %v2300, 0
  %v2333 = vmax.bf16 %v2301, 0
  %v2334 = vmax.bf16 %v2302, 0
  %v2335 = vmax.bf16 %v2303, 0
  %v2336 = vmax.bf16 %v2304, 0
  %v2337 = vmax.bf16 %v2305, 0
  %v2338 = vmax.bf16 %v2306, 0
  %v2339 = vmax.bf16 %v2307, 0
  %v2340 = vmax.bf16 %v2308, 0
  %v2341 = vunpack.c.l.bf16 %v2309
  %v2342 = vunpack.c.h.bf16 %v2309
  %v2343 = vunpack.c.l.bf16 %v2310
  %v2344 = vunpack.c.h.bf16 %v2310
  %v2345 = vunpack.c.l.bf16 %v2311
  %v2346 = vunpack.c.h.bf16 %v2311
  %v2347 = vunpack.c.l.bf16 %v2312
  %v2348 = vunpack.c.h.bf16 %v2312
  %v2349 = vunpack.c.l.bf16 %v2313
  %v2350 = vunpack.c.h.bf16 %v2313
  %v2351 = vunpack.c.l.bf16 %v2314
  %v2352 = vunpack.c.h.bf16 %v2314
  %v2353 = vunpack.c.l.bf16 %v2315
  %v2354 = vunpack.c.h.bf16 %v2315
  %v2355 = vunpack.c.l.bf16 %v2316
  %v2356 = vunpack.c.h.bf16 %v2316
  %v2357 = vunpack.c.l.bf16 %v2317
  %v2358 = vunpack.c.h.bf16 %v2317
  %v2359 = vunpack.c.l.bf16 %v2318
  %v2360 = vunpack.c.h.bf16 %v2318
  %v2361 = vunpack.c.l.bf16 %v2319
  %v2362 = vunpack.c.h.bf16 %v2319
  %v2363 = vunpack.c.l.bf16 %v2320
  %v2364 = vunpack.c.h.bf16 %v2320
  %v2365 = vunpack.c.l.bf16 %v2321
  %v2366 = vunpack.c.h.bf16 %v2321
  %v2367 = vunpack.c.l.bf16 %v2322
  %v2368 = vunpack.c.h.bf16 %v2322
  %v2369 = vunpack.c.l.bf16 %v2323
  %v2370 = vunpack.c.h.bf16 %v2323
  %v2371 = vunpack.c.l.bf16 %v2324
  %v2372 = vunpack.c.h.bf16 %v2324
  %v2373 = vunpack.c.l.bf16 %v2325
  %v2374 = vunpack.c.h.bf16 %v2325
  %v2375 = vunpack.c.l.bf16 %v2326
  %v2376 = vunpack.c.h.bf16 %v2326
  %v2377 = vunpack.c.l.bf16 %v2327
  %v2378 = vunpack.c.h.bf16 %v2327
  %v2379 = vunpack.c.l.bf16 %v2328
  %v2380 = vunpack.c.h.bf16 %v2328
  %v2381 = vunpack.c.l.bf16 %v2329
  %v2382 = vunpack.c.h.bf16 %v2329
  %v2383 = vunpack.c.l.bf16 %v2330
  %v2384 = vunpack.c.h.bf16 %v2330
  %v2385 = vunpack.c.l.bf16 %v2331
  %v2386 = vunpack.c.h.bf16 %v2331
  %v2387 = vunpack.c.l.bf16 %v2332
  %v2388 = vunpack.c.h.bf16 %v2332
  %v2389 = vunpack.c.l.bf16 %v2333
  %v2390 = vunpack.c.h.bf16 %v2333
  %v2391 = vunpack.c.l.bf16 %v2334
  %v2392 = vunpack.c.h.bf16 %v2334
  %v2393 = vunpack.c.l.bf16 %v2335
  %v2394 = vunpack.c.h.bf16 %v2335
  %v2395 = vunpack.c.l.bf16 %v2336
  %v2396 = vunpack.c.h.bf16 %v2336
  %v2397 = vunpack.c.l.bf16 %v2337
  %v2398 = vunpack.c.h.bf16 %v2337
  %v2399 = vunpack.c.l.bf16 %v2338
  %v2400 = vunpack.c.h.bf16 %v2338
  %v2401 = vunpack.c.l.bf16 %v2339
  %v2402 = vunpack.c.h.bf16 %v2339
  %v2403 = vunpack.c.l.bf16 %v2340
  %v2404 = vunpack.c.h.bf16 %v2340
  %v2405 = vld [vmem:[%s9] sm:$0x1]
  %v2407 = vlaneseq
  %v2408 = vshrl.u32 %v2407, 7
  %v2409 = vsub.s32 0, %v2408
  %v2410 = vrot.slane %v2405, %v2409
  %v2412 = vmul.f32 %v2341, %v2410
  %v2413 = vmul.f32 %v2342, %v2410
  %v2414 = vmul.f32 %v2343, %v2410
  %v2415 = vmul.f32 %v2344, %v2410
  %v2416 = vmul.f32 %v2345, %v2410
  %v2417 = vmul.f32 %v2346, %v2410
  %v2418 = vmul.f32 %v2347, %v2410
  %v2419 = vmul.f32 %v2348, %v2410
  %v2420 = vmul.f32 %v2349, %v2410
  %v2421 = vmul.f32 %v2350, %v2410
  %v2422 = vmul.f32 %v2351, %v2410
  %v2423 = vmul.f32 %v2352, %v2410
  %v2424 = vmul.f32 %v2353, %v2410
  %v2425 = vmul.f32 %v2354, %v2410
  %v2426 = vmul.f32 %v2355, %v2410
  %v2427 = vmul.f32 %v2356, %v2410
  %v2428 = vmul.f32 %v2357, %v2410
  %v2429 = vmul.f32 %v2358, %v2410
  %v2430 = vmul.f32 %v2359, %v2410
  %v2431 = vmul.f32 %v2360, %v2410
  %v2432 = vmul.f32 %v2361, %v2410
  %v2433 = vmul.f32 %v2362, %v2410
  %v2434 = vmul.f32 %v2363, %v2410
  %v2435 = vmul.f32 %v2364, %v2410
  %v2436 = vmul.f32 %v2365, %v2410
  %v2437 = vmul.f32 %v2366, %v2410
  %v2438 = vmul.f32 %v2367, %v2410
  %v2439 = vmul.f32 %v2368, %v2410
  %v2440 = vmul.f32 %v2369, %v2410
  %v2441 = vmul.f32 %v2370, %v2410
  %v2442 = vmul.f32 %v2371, %v2410
  %v2443 = vmul.f32 %v2372, %v2410
  %v2444 = vmul.f32 %v2373, %v2410
  %v2445 = vmul.f32 %v2374, %v2410
  %v2446 = vmul.f32 %v2375, %v2410
  %v2447 = vmul.f32 %v2376, %v2410
  %v2448 = vmul.f32 %v2377, %v2410
  %v2449 = vmul.f32 %v2378, %v2410
  %v2450 = vmul.f32 %v2379, %v2410
  %v2451 = vmul.f32 %v2380, %v2410
  %v2452 = vmul.f32 %v2381, %v2410
  %v2453 = vmul.f32 %v2382, %v2410
  %v2454 = vmul.f32 %v2383, %v2410
  %v2455 = vmul.f32 %v2384, %v2410
  %v2456 = vmul.f32 %v2385, %v2410
  %v2457 = vmul.f32 %v2386, %v2410
  %v2458 = vmul.f32 %v2387, %v2410
  %v2459 = vmul.f32 %v2388, %v2410
  %v2460 = vmul.f32 %v2389, %v2410
  %v2461 = vmul.f32 %v2390, %v2410
  %v2462 = vmul.f32 %v2391, %v2410
  %v2463 = vmul.f32 %v2392, %v2410
  %v2464 = vmul.f32 %v2393, %v2410
  %v2465 = vmul.f32 %v2394, %v2410
  %v2466 = vmul.f32 %v2395, %v2410
  %v2467 = vmul.f32 %v2396, %v2410
  %v2468 = vmul.f32 %v2397, %v2410
  %v2469 = vmul.f32 %v2398, %v2410
  %v2470 = vmul.f32 %v2399, %v2410
  %v2471 = vmul.f32 %v2400, %v2410
  %v2472 = vmul.f32 %v2401, %v2410
  %v2473 = vmul.f32 %v2402, %v2410
  %v2474 = vmul.f32 %v2403, %v2410
  %v2475 = vmul.f32 %v2404, %v2410
  %v2476 = vsel %vm161, %v2412, 0.0
  %2477 = vadd.xlane.f32.xlu0 %v2476
  %v2478 = vpop.xlane.xlu0 %2477
  %v2479 = vsel %vm161, %v2413, 0.0
  %2480 = vadd.xlane.f32.xlu0 %v2479
  %v2481 = vpop.xlane.xlu0 %2480
  %v2482 = vsel %vm161, %v2414, 0.0
  %2483 = vadd.xlane.f32.xlu0 %v2482
  %v2484 = vpop.xlane.xlu0 %2483
  %v2485 = vsel %vm161, %v2415, 0.0
  %2486 = vadd.xlane.f32.xlu0 %v2485
  %v2487 = vpop.xlane.xlu0 %2486
  %v2488 = vsel %vm161, %v2416, 0.0
  %2489 = vadd.xlane.f32.xlu0 %v2488
  %v2490 = vpop.xlane.xlu0 %2489
  %v2491 = vsel %vm161, %v2417, 0.0
  %2492 = vadd.xlane.f32.xlu0 %v2491
  %v2493 = vpop.xlane.xlu0 %2492
  %v2494 = vsel %vm161, %v2418, 0.0
  %2495 = vadd.xlane.f32.xlu0 %v2494
  %v2496 = vpop.xlane.xlu0 %2495
  %v2497 = vsel %vm161, %v2419, 0.0
  %2498 = vadd.xlane.f32.xlu0 %v2497
  %v2499 = vpop.xlane.xlu0 %2498
  %v2500 = vsel %vm161, %v2420, 0.0
  %2501 = vadd.xlane.f32.xlu0 %v2500
  %v2502 = vpop.xlane.xlu0 %2501
  %v2503 = vsel %vm161, %v2421, 0.0
  %2504 = vadd.xlane.f32.xlu0 %v2503
  %v2505 = vpop.xlane.xlu0 %2504
  %v2506 = vsel %vm161, %v2422, 0.0
  %2507 = vadd.xlane.f32.xlu0 %v2506
  %v2508 = vpop.xlane.xlu0 %2507
  %v2509 = vsel %vm161, %v2423, 0.0
  %2510 = vadd.xlane.f32.xlu0 %v2509
  %v2511 = vpop.xlane.xlu0 %2510
  %v2512 = vsel %vm161, %v2424, 0.0
  %2513 = vadd.xlane.f32.xlu0 %v2512
  %v2514 = vpop.xlane.xlu0 %2513
  %v2515 = vsel %vm161, %v2425, 0.0
  %2516 = vadd.xlane.f32.xlu0 %v2515
  %v2517 = vpop.xlane.xlu0 %2516
  %v2518 = vsel %vm161, %v2426, 0.0
  %2519 = vadd.xlane.f32.xlu0 %v2518
  %v2520 = vpop.xlane.xlu0 %2519
  %v2521 = vsel %vm161, %v2427, 0.0
  %2522 = vadd.xlane.f32.xlu0 %v2521
  %v2523 = vpop.xlane.xlu0 %2522
  %v2524 = vsel %vm161, %v2428, 0.0
  %2525 = vadd.xlane.f32.xlu0 %v2524
  %v2526 = vpop.xlane.xlu0 %2525
  %v2527 = vsel %vm161, %v2429, 0.0
  %2528 = vadd.xlane.f32.xlu0 %v2527
  %v2529 = vpop.xlane.xlu0 %2528
  %v2530 = vsel %vm161, %v2430, 0.0
  %2531 = vadd.xlane.f32.xlu0 %v2530
  %v2532 = vpop.xlane.xlu0 %2531
  %v2533 = vsel %vm161, %v2431, 0.0
  %2534 = vadd.xlane.f32.xlu0 %v2533
  %v2535 = vpop.xlane.xlu0 %2534
  %v2536 = vsel %vm161, %v2432, 0.0
  %2537 = vadd.xlane.f32.xlu0 %v2536
  %v2538 = vpop.xlane.xlu0 %2537
  %v2539 = vsel %vm161, %v2433, 0.0
  %2540 = vadd.xlane.f32.xlu0 %v2539
  %v2541 = vpop.xlane.xlu0 %2540
  %v2542 = vsel %vm161, %v2434, 0.0
  %2543 = vadd.xlane.f32.xlu0 %v2542
  %v2544 = vpop.xlane.xlu0 %2543
  %v2545 = vsel %vm161, %v2435, 0.0
  %2546 = vadd.xlane.f32.xlu0 %v2545
  %v2547 = vpop.xlane.xlu0 %2546
  %v2548 = vsel %vm161, %v2436, 0.0
  %2549 = vadd.xlane.f32.xlu0 %v2548
  %v2550 = vpop.xlane.xlu0 %2549
  %v2551 = vsel %vm161, %v2437, 0.0
  %2552 = vadd.xlane.f32.xlu0 %v2551
  %v2553 = vpop.xlane.xlu0 %2552
  %v2554 = vsel %vm161, %v2438, 0.0
  %2555 = vadd.xlane.f32.xlu0 %v2554
  %v2556 = vpop.xlane.xlu0 %2555
  %v2557 = vsel %vm161, %v2439, 0.0
  %2558 = vadd.xlane.f32.xlu0 %v2557
  %v2559 = vpop.xlane.xlu0 %2558
  %v2560 = vsel %vm161, %v2440, 0.0
  %2561 = vadd.xlane.f32.xlu0 %v2560
  %v2562 = vpop.xlane.xlu0 %2561
  %v2563 = vsel %vm161, %v2441, 0.0
  %2564 = vadd.xlane.f32.xlu0 %v2563
  %v2565 = vpop.xlane.xlu0 %2564
  %v2566 = vsel %vm161, %v2442, 0.0
  %2567 = vadd.xlane.f32.xlu0 %v2566
  %v2568 = vpop.xlane.xlu0 %2567
  %v2569 = vsel %vm161, %v2443, 0.0
  %2570 = vadd.xlane.f32.xlu0 %v2569
  %v2571 = vpop.xlane.xlu0 %2570
  %v2572 = vsel %vm161, %v2444, 0.0
  %2573 = vadd.xlane.f32.xlu0 %v2572
  %v2574 = vpop.xlane.xlu0 %2573
  %v2575 = vsel %vm161, %v2445, 0.0
  %2576 = vadd.xlane.f32.xlu0 %v2575
  %v2577 = vpop.xlane.xlu0 %2576
  %v2578 = vsel %vm161, %v2446, 0.0
  %2579 = vadd.xlane.f32.xlu0 %v2578
  %v2580 = vpop.xlane.xlu0 %2579
  %v2581 = vsel %vm161, %v2447, 0.0
  %2582 = vadd.xlane.f32.xlu0 %v2581
  %v2583 = vpop.xlane.xlu0 %2582
  %v2584 = vsel %vm161, %v2448, 0.0
  %2585 = vadd.xlane.f32.xlu0 %v2584
  %v2586 = vpop.xlane.xlu0 %2585
  %v2587 = vsel %vm161, %v2449, 0.0
  %2588 = vadd.xlane.f32.xlu0 %v2587
  %v2589 = vpop.xlane.xlu0 %2588
  %v2590 = vsel %vm161, %v2450, 0.0
  %2591 = vadd.xlane.f32.xlu0 %v2590
  %v2592 = vpop.xlane.xlu0 %2591
  %v2593 = vsel %vm161, %v2451, 0.0
  %2594 = vadd.xlane.f32.xlu0 %v2593
  %v2595 = vpop.xlane.xlu0 %2594
  %v2596 = vsel %vm161, %v2452, 0.0
  %2597 = vadd.xlane.f32.xlu0 %v2596
  %v2598 = vpop.xlane.xlu0 %2597
  %v2599 = vsel %vm161, %v2453, 0.0
  %2600 = vadd.xlane.f32.xlu0 %v2599
  %v2601 = vpop.xlane.xlu0 %2600
  %v2602 = vsel %vm161, %v2454, 0.0
  %2603 = vadd.xlane.f32.xlu0 %v2602
  %v2604 = vpop.xlane.xlu0 %2603
  %v2605 = vsel %vm161, %v2455, 0.0
  %2606 = vadd.xlane.f32.xlu0 %v2605
  %v2607 = vpop.xlane.xlu0 %2606
  %v2608 = vsel %vm161, %v2456, 0.0
  %2609 = vadd.xlane.f32.xlu0 %v2608
  %v2610 = vpop.xlane.xlu0 %2609
  %v2611 = vsel %vm161, %v2457, 0.0
  %2612 = vadd.xlane.f32.xlu0 %v2611
  %v2613 = vpop.xlane.xlu0 %2612
  %v2614 = vsel %vm161, %v2458, 0.0
  %2615 = vadd.xlane.f32.xlu0 %v2614
  %v2616 = vpop.xlane.xlu0 %2615
  %v2617 = vsel %vm161, %v2459, 0.0
  %2618 = vadd.xlane.f32.xlu0 %v2617
  %v2619 = vpop.xlane.xlu0 %2618
  %v2620 = vsel %vm161, %v2460, 0.0
  %2621 = vadd.xlane.f32.xlu0 %v2620
  %v2622 = vpop.xlane.xlu0 %2621
  %v2623 = vsel %vm161, %v2461, 0.0
  %2624 = vadd.xlane.f32.xlu0 %v2623
  %v2625 = vpop.xlane.xlu0 %2624
  %v2626 = vsel %vm161, %v2462, 0.0
  %2627 = vadd.xlane.f32.xlu0 %v2626
  %v2628 = vpop.xlane.xlu0 %2627
  %v2629 = vsel %vm161, %v2463, 0.0
  %2630 = vadd.xlane.f32.xlu0 %v2629
  %v2631 = vpop.xlane.xlu0 %2630
  %v2632 = vsel %vm161, %v2464, 0.0
  %2633 = vadd.xlane.f32.xlu0 %v2632
  %v2634 = vpop.xlane.xlu0 %2633
  %v2635 = vsel %vm161, %v2465, 0.0
  %2636 = vadd.xlane.f32.xlu0 %v2635
  %v2637 = vpop.xlane.xlu0 %2636
  %v2638 = vsel %vm161, %v2466, 0.0
  %2639 = vadd.xlane.f32.xlu0 %v2638
  %v2640 = vpop.xlane.xlu0 %2639
  %v2641 = vsel %vm161, %v2467, 0.0
  %2642 = vadd.xlane.f32.xlu0 %v2641
  %v2643 = vpop.xlane.xlu0 %2642
  %v2644 = vsel %vm161, %v2468, 0.0
  %2645 = vadd.xlane.f32.xlu0 %v2644
  %v2646 = vpop.xlane.xlu0 %2645
  %v2647 = vsel %vm161, %v2469, 0.0
  %2648 = vadd.xlane.f32.xlu0 %v2647
  %v2649 = vpop.xlane.xlu0 %2648
  %v2650 = vsel %vm161, %v2470, 0.0
  %2651 = vadd.xlane.f32.xlu0 %v2650
  %v2652 = vpop.xlane.xlu0 %2651
  %v2653 = vsel %vm161, %v2471, 0.0
  %2654 = vadd.xlane.f32.xlu0 %v2653
  %v2655 = vpop.xlane.xlu0 %2654
  %v2656 = vsel %vm161, %v2472, 0.0
  %2657 = vadd.xlane.f32.xlu0 %v2656
  %v2658 = vpop.xlane.xlu0 %2657
  %v2659 = vsel %vm161, %v2473, 0.0
  %2660 = vadd.xlane.f32.xlu0 %v2659
  %v2661 = vpop.xlane.xlu0 %2660
  %v2662 = vsel %vm161, %v2474, 0.0
  %2663 = vadd.xlane.f32.xlu0 %v2662
  %v2664 = vpop.xlane.xlu0 %2663
  %v2665 = vsel %vm161, %v2475, 0.0
  %2666 = vadd.xlane.f32.xlu0 %v2665
  %v2667 = vpop.xlane.xlu0 %2666
  %v2668 = vld [vmem:[#allocation2] sm:$0x1]
  %v2670 = vlaneseq
  %v2671 = vshrl.u32 %v2670, 7
  %v2672 = vsub.s32 0, %v2671
  %v2673 = vrot.slane %v2668, %v2672
  %v2675 = vadd.f32 %v2478, %v2673
  %v2676 = vadd.f32 %v2481, %v2673
  %v2677 = vadd.f32 %v2484, %v2673
  %v2678 = vadd.f32 %v2487, %v2673
  %v2679 = vadd.f32 %v2490, %v2673
  %v2680 = vadd.f32 %v2493, %v2673
  %v2681 = vadd.f32 %v2496, %v2673
  %v2682 = vadd.f32 %v2499, %v2673
  %v2683 = vadd.f32 %v2502, %v2673
  %v2684 = vadd.f32 %v2505, %v2673
  %v2685 = vadd.f32 %v2508, %v2673
  %v2686 = vadd.f32 %v2511, %v2673
  %v2687 = vadd.f32 %v2514, %v2673
  %v2688 = vadd.f32 %v2517, %v2673
  %v2689 = vadd.f32 %v2520, %v2673
  %v2690 = vadd.f32 %v2523, %v2673
  %v2691 = vadd.f32 %v2526, %v2673
  %v2692 = vadd.f32 %v2529, %v2673
  %v2693 = vadd.f32 %v2532, %v2673
  %v2694 = vadd.f32 %v2535, %v2673
  %v2695 = vadd.f32 %v2538, %v2673
  %v2696 = vadd.f32 %v2541, %v2673
  %v2697 = vadd.f32 %v2544, %v2673
  %v2698 = vadd.f32 %v2547, %v2673
  %v2699 = vadd.f32 %v2550, %v2673
  %v2700 = vadd.f32 %v2553, %v2673
  %v2701 = vadd.f32 %v2556, %v2673
  %v2702 = vadd.f32 %v2559, %v2673
  %v2703 = vadd.f32 %v2562, %v2673
  %v2704 = vadd.f32 %v2565, %v2673
  %v2705 = vadd.f32 %v2568, %v2673
  %v2706 = vadd.f32 %v2571, %v2673
  %v2707 = vadd.f32 %v2574, %v2673
  %v2708 = vadd.f32 %v2577, %v2673
  %v2709 = vadd.f32 %v2580, %v2673
  %v2710 = vadd.f32 %v2583, %v2673
  %v2711 = vadd.f32 %v2586, %v2673
  %v2712 = vadd.f32 %v2589, %v2673
  %v2713 = vadd.f32 %v2592, %v2673
  %v2714 = vadd.f32 %v2595, %v2673
  %v2715 = vadd.f32 %v2598, %v2673
  %v2716 = vadd.f32 %v2601, %v2673
  %v2717 = vadd.f32 %v2604, %v2673
  %v2718 = vadd.f32 %v2607, %v2673
  %v2719 = vadd.f32 %v2610, %v2673
  %v2720 = vadd.f32 %v2613, %v2673
  %v2721 = vadd.f32 %v2616, %v2673
  %v2722 = vadd.f32 %v2619, %v2673
  %v2723 = vadd.f32 %v2622, %v2673
  %v2724 = vadd.f32 %v2625, %v2673
  %v2725 = vadd.f32 %v2628, %v2673
  %v2726 = vadd.f32 %v2631, %v2673
  %v2727 = vadd.f32 %v2634, %v2673
  %v2728 = vadd.f32 %v2637, %v2673
  %v2729 = vadd.f32 %v2640, %v2673
  %v2730 = vadd.f32 %v2643, %v2673
  %v2731 = vadd.f32 %v2646, %v2673
  %v2732 = vadd.f32 %v2649, %v2673
  %v2733 = vadd.f32 %v2652, %v2673
  %v2734 = vadd.f32 %v2655, %v2673
  %v2735 = vadd.f32 %v2658, %v2673
  %v2736 = vadd.f32 %v2661, %v2673
  %v2737 = vadd.f32 %v2664, %v2673
  %v2738 = vadd.f32 %v2667, %v2673
  %vm2739 = vcmask 7168
  %2740 = vst.msk [vmem:[%s11] sm:$0xff] %vm2739, %v2675
  %2741 = vst.msk [vmem:[%s11 + $0x8] sm:$0xff] %vm2739, %v2676
  %2742 = vst.msk [vmem:[%s11 + $0x10] sm:$0xff] %vm2739, %v2677
  %2743 = vst.msk [vmem:[%s11 + $0x18] sm:$0xff] %vm2739, %v2678
  %2744 = vst.msk [vmem:[%s11 + $0x20] sm:$0xff] %vm2739, %v2679
  %2745 = vst.msk [vmem:[%s11 + $0x28] sm:$0xff] %vm2739, %v2680
  %2746 = vst.msk [vmem:[%s11 + $0x30] sm:$0xff] %vm2739, %v2681
  %2747 = vst.msk [vmem:[%s11 + $0x38] sm:$0xff] %vm2739, %v2682
  %2748 = vst.msk [vmem:[%s11 + $0x40] sm:$0xff] %vm2739, %v2683
  %2749 = vst.msk [vmem:[%s11 + $0x48] sm:$0xff] %vm2739, %v2684
  %2750 = vst.msk [vmem:[%s11 + $0x50] sm:$0xff] %vm2739, %v2685
  %2751 = vst.msk [vmem:[%s11 + $0x58] sm:$0xff] %vm2739, %v2686
  %2752 = vst.msk [vmem:[%s11 + $0x60] sm:$0xff] %vm2739, %v2687
  %2753 = vst.msk [vmem:[%s11 + $0x68] sm:$0xff] %vm2739, %v2688
  %2754 = vst.msk [vmem:[%s11 + $0x70] sm:$0xff] %vm2739, %v2689
  %2755 = vst.msk [vmem:[%s11 + $0x78] sm:$0xff] %vm2739, %v2690
  %2756 = vst.msk [vmem:[%s11 + $0x80] sm:$0xff] %vm2739, %v2691
  %2757 = vst.msk [vmem:[%s11 + $0x88] sm:$0xff] %vm2739, %v2692
  %2758 = vst.msk [vmem:[%s11 + $0x90] sm:$0xff] %vm2739, %v2693
  %2759 = vst.msk [vmem:[%s11 + $0x98] sm:$0xff] %vm2739, %v2694
  %2760 = vst.msk [vmem:[%s11 + $0xa0] sm:$0xff] %vm2739, %v2695
  %2761 = vst.msk [vmem:[%s11 + $0xa8] sm:$0xff] %vm2739, %v2696
  %2762 = vst.msk [vmem:[%s11 + $0xb0] sm:$0xff] %vm2739, %v2697
  %2763 = vst.msk [vmem:[%s11 + $0xb8] sm:$0xff] %vm2739, %v2698
  %2764 = vst.msk [vmem:[%s11 + $0xc0] sm:$0xff] %vm2739, %v2699
  %2765 = vst.msk [vmem:[%s11 + $0xc8] sm:$0xff] %vm2739, %v2700
  %2766 = vst.msk [vmem:[%s11 + $0xd0] sm:$0xff] %vm2739, %v2701
  %2767 = vst.msk [vmem:[%s11 + $0xd8] sm:$0xff] %vm2739, %v2702
  %2768 = vst.msk [vmem:[%s11 + $0xe0] sm:$0xff] %vm2739, %v2703
  %2769 = vst.msk [vmem:[%s11 + $0xe8] sm:$0xff] %vm2739, %v2704
  %2770 = vst.msk [vmem:[%s11 + $0xf0] sm:$0xff] %vm2739, %v2705
  %2771 = vst.msk [vmem:[%s11 + $0xf8] sm:$0xff] %vm2739, %v2706
  %2772 = vst.msk [vmem:[%s11 + $0x100] sm:$0xff] %vm2739, %v2707
  %2773 = vst.msk [vmem:[%s11 + $0x108] sm:$0xff] %vm2739, %v2708
  %2774 = vst.msk [vmem:[%s11 + $0x110] sm:$0xff] %vm2739, %v2709
  %2775 = vst.msk [vmem:[%s11 + $0x118] sm:$0xff] %vm2739, %v2710
  %2776 = vst.msk [vmem:[%s11 + $0x120] sm:$0xff] %vm2739, %v2711
  %2777 = vst.msk [vmem:[%s11 + $0x128] sm:$0xff] %vm2739, %v2712
  %2778 = vst.msk [vmem:[%s11 + $0x130] sm:$0xff] %vm2739, %v2713
  %2779 = vst.msk [vmem:[%s11 + $0x138] sm:$0xff] %vm2739, %v2714
  %2780 = vst.msk [vmem:[%s11 + $0x140] sm:$0xff] %vm2739, %v2715
  %2781 = vst.msk [vmem:[%s11 + $0x148] sm:$0xff] %vm2739, %v2716
  %2782 = vst.msk [vmem:[%s11 + $0x150] sm:$0xff] %vm2739, %v2717
  %2783 = vst.msk [vmem:[%s11 + $0x158] sm:$0xff] %vm2739, %v2718
  %2784 = vst.msk [vmem:[%s11 + $0x160] sm:$0xff] %vm2739, %v2719
  %2785 = vst.msk [vmem:[%s11 + $0x168] sm:$0xff] %vm2739, %v2720
  %2786 = vst.msk [vmem:[%s11 + $0x170] sm:$0xff] %vm2739, %v2721
  %2787 = vst.msk [vmem:[%s11 + $0x178] sm:$0xff] %vm2739, %v2722
  %2788 = vst.msk [vmem:[%s11 + $0x180] sm:$0xff] %vm2739, %v2723
  %2789 = vst.msk [vmem:[%s11 + $0x188] sm:$0xff] %vm2739, %v2724
  %2790 = vst.msk [vmem:[%s11 + $0x190] sm:$0xff] %vm2739, %v2725
  %2791 = vst.msk [vmem:[%s11 + $0x198] sm:$0xff] %vm2739, %v2726
  %2792 = vst.msk [vmem:[%s11 + $0x1a0] sm:$0xff] %vm2739, %v2727
  %2793 = vst.msk [vmem:[%s11 + $0x1a8] sm:$0xff] %vm2739, %v2728
  %2794 = vst.msk [vmem:[%s11 + $0x1b0] sm:$0xff] %vm2739, %v2729
  %2795 = vst.msk [vmem:[%s11 + $0x1b8] sm:$0xff] %vm2739, %v2730
  %2796 = vst.msk [vmem:[%s11 + $0x1c0] sm:$0xff] %vm2739, %v2731
  %2797 = vst.msk [vmem:[%s11 + $0x1c8] sm:$0xff] %vm2739, %v2732
  %2798 = vst.msk [vmem:[%s11 + $0x1d0] sm:$0xff] %vm2739, %v2733
  %2799 = vst.msk [vmem:[%s11 + $0x1d8] sm:$0xff] %vm2739, %v2734
  %2800 = vst.msk [vmem:[%s11 + $0x1e0] sm:$0xff] %vm2739, %v2735
  %2801 = vst.msk [vmem:[%s11 + $0x1e8] sm:$0xff] %vm2739, %v2736
  %2802 = vst.msk [vmem:[%s11 + $0x1f0] sm:$0xff] %vm2739, %v2737
  %2803 = vst.msk [vmem:[%s11 + $0x1f8] sm:$0xff] %vm2739, %v2738
  // Predicated region
  $region46: #{tpu_custom_call.1} parent=0 // pred_check
    _
  $region47: #{tpu_custom_call.1} parent=0 // pred_check_branch
    %2805 = sbr.rel (0) target = $region49
  $region48: #{tpu_custom_call.1} parent=0 // pred_region
    _
  $region49: #{tpu_custom_call.1} parent=0 // pred_fallthru
    _
  // Predicated region
  $region50: #{tpu_custom_call.1} parent=0 // pred_check
    _
  $region51: #{tpu_custom_call.1} parent=0 // pred_check_branch
    %2807 = sbr.rel (0) target = $region53
  $region52: #{tpu_custom_call.1} parent=0 // pred_region
    _
  $region53: #{tpu_custom_call.1} parent=0 // pred_fallthru
    _

</llo_original>
